<compile_context>
chip_gen: v5e
topology: v5e:2x2
jax: 0.10.0
libtpu: 0.0.40
codegen_flags: <defaults>
</compile_context>

<pallas_src>
import math

import jax
import jax.numpy as jnp
import numpy as np
from jax.experimental import pallas as pl
from jax.experimental.pallas import tpu as pltpu

EPS = 1e-6


def _make_encoder_kernel(num_heads: int, d_k: int, eps: float):
    f32 = jnp.float32
    bf16 = jnp.bfloat16

    def kernel(x_ref, wqkv_ref, wo_ref, w1_ref, b1_ref, w2_ref, b2_ref,
               g1_ref, be1_ref, g2_ref, be2_ref, o_ref):
        x = x_ref[0].astype(f32)                      # (S, D); no-op for f32 input
        S, D = x.shape

        def layernorm(v, gamma, beta):
            # torch.Tensor.std() default: unbiased (ddof=1); eps added to std.
            # Exact divide here (approx reciprocal reserved for softmax).
            mean = jnp.mean(v, axis=-1, keepdims=True)
            var = jnp.sum((v - mean) ** 2, axis=-1, keepdims=True) * (1.0 / (D - 1))
            return gamma * (v - mean) / (jnp.sqrt(var) + eps) + beta

        # -------- residual connection 0: multi-head self-attention --------
        ln1_bf = layernorm(x, g1_ref[...], be1_ref[...]).astype(bf16)

        # One lane-dense fused projection for Q|K|V of all heads.
        # The 1/sqrt(d_k) scale is pre-folded into the Q columns (wrapper).
        qkv = jnp.dot(ln1_bf, wqkv_ref[...], preferred_element_type=f32)   # (S, 3D)
        qkv_bf = qkv.astype(bf16)

        attn = None
        # Static head loop (H is small here).
        # TODO(synk): switch to lax.fori_loop for large H / large S to bound
        # per-head live ranges (vreg / VMEM pressure).
        for h in range(num_heads):
            c0 = h * d_k
            qh = qkv_bf[:, c0:c0 + d_k]                                     # (S, d_k)
            kh = qkv_bf[:, D + c0:D + c0 + d_k]                             # (S, d_k)
            vh = qkv_bf[:, 2 * D + c0:2 * D + c0 + d_k]                     # (S, d_k)

            # scores: contract over d_k (scale already folded into wq).
            s = jnp.einsum('qd,kd->qk', qh, kh,
                           preferred_element_type=f32)                      # (S, S)
            # src_mask: no-op in the reference (masked_fill is not in-place).
            p = jnp.exp(s - jnp.max(s, axis=-1, keepdims=True))             # in (0,1]

            # Deferred softmax normalization: normalize the (S,d_k) output,
            # not the (S,S) probability tile.
            oh = jnp.dot(p.astype(bf16), vh, preferred_element_type=f32)    # (S, d_k)
            oh = oh * pl.reciprocal(jnp.sum(p, axis=-1, keepdims=True), approx=True)

            contrib = jnp.dot(oh.astype(bf16), wo_ref[h],
                              preferred_element_type=f32)                   # (S, D)
            attn = contrib if attn is None else attn + contrib

        x1 = x + attn                                 # dropout = identity (eval)

        # -------- residual connection 1: feed-forward network --------
        ln2_bf = layernorm(x1, g2_ref[...], be2_ref[...]).astype(bf16)
        h1 = jnp.dot(ln2_bf, w1_ref[...], preferred_element_type=f32) + b1_ref[...]
        h1_bf = jnp.maximum(h1, 0.0).astype(bf16)     # relu; drop f32 copy immediately
        h2 = jnp.dot(h1_bf, w2_ref[...], preferred_element_type=f32) + b2_ref[...]
        out = x1 + h2                                 # dropout = identity (eval)

        o_ref[0] = out.astype(o_ref.dtype)

    return kernel


def encoder_block(x, src_mask, params, num_heads):
    """Pallas EncoderBlock forward.  x: (B, S, D).  src_mask ignored (see header)."""
    del src_mask   # no-op in the PyTorch reference (masked_fill is not in-place)
    B, S, D = x.shape
    d_ff = params['w1'].shape[0]
    d_k = D // num_heads
    bf16, f32 = jnp.bfloat16, jnp.float32
    scale = 1.0 / math.sqrt(d_k)

    # nn.Linear stores (out, in) -> transpose to (in, out).
    # Fold the attention scale into the Q columns, then fuse Q|K|V into one
    # lane-dense (D, 3D) bf16 weight (single wide projection matmul in-kernel).
    wqkv = jnp.concatenate(
        [params['wq'].T * scale, params['wk'].T, params['wv'].T], axis=1
    ).astype(bf16)                                                  # (D, 3D)
    # Output projection split per head -> accumulate via leading-dim indexing,
    # no lane-axis concat of activations in the kernel.
    wo_h = params['wo'].T.reshape(num_heads, d_k, D).astype(bf16)   # (H, d_k, D)
    w1_t = params['w1'].T.astype(bf16)                              # (D, d_ff)
    w2_t = params['w2'].T.astype(bf16)                              # (d_ff, D)
    b1 = params['b1'].reshape(1, d_ff).astype(f32)
    b2 = params['b2'].reshape(1, D).astype(f32)
    g1 = params['gamma1'].reshape(1, D).astype(f32)
    be1 = params['beta1'].reshape(1, D).astype(f32)
    g2 = params['gamma2'].reshape(1, D).astype(f32)
    be2 = params['beta2'].reshape(1, D).astype(f32)

    # Generation-aware VMEM limit (v5e/v6e: 128 MiB physical, v7x: 64 MiB):
    # ~75% of physical per-core VMEM, capped, so Mosaic keeps headroom.
    try:
        vmem_cap = pltpu.get_tpu_info().vmem_capacity_bytes
    except Exception:
        vmem_cap = 128 * 1024 * 1024
    vmem_limit = int(min(vmem_cap * 3 // 4, 96 * 1024 * 1024))

    kernel = _make_encoder_kernel(num_heads, d_k, EPS)
    out_shape = jax.ShapeDtypeStruct((B, S, D), x.dtype)

    def build(single_buffer_weights: bool):
        def full(shape):
            # Loop-invariant operand: constant index_map -> DMA'd once.
            kwargs = {}
            if single_buffer_weights:
                # No prefetch buffer needed for grid-invariant operands:
                # halves resident weight VMEM vs the default double buffer.
                kwargs['pipeline_mode'] = pl.Buffered(1)
            return pl.BlockSpec(shape, lambda b: (0,) * len(shape), **kwargs)

        grid_spec = pltpu.PrefetchScalarGridSpec(
            num_scalar_prefetch=0,
            grid=(B,),
            in_specs=[
                pl.BlockSpec((1, S, D), lambda b: (b, 0, 0)),   # x: one sequence/step
                full((D, 3 * D)),                               # fused wqkv
                full((num_heads, d_k, D)),                      # wo per head
                full((D, d_ff)), full((1, d_ff)),
                full((d_ff, D)), full((1, D)),
                full((1, D)), full((1, D)), full((1, D)), full((1, D)),
            ],
            out_specs=pl.BlockSpec((1, S, D), lambda b: (b, 0, 0)),
        )
        return pl.pallas_call(
            kernel,
            out_shape=out_shape,
            grid_spec=grid_spec,
            compiler_params=pltpu.CompilerParams(
                dimension_semantics=("parallel",),
                vmem_limit_bytes=vmem_limit,
            ),
        )

    args = (x, wqkv, wo_h, w1_t, b1, w2_t, b2, g1, be1, g2, be2)
    try:
        return build(single_buffer_weights=True)(*args)
    except Exception:
        # Fallback: jax versions where pipeline_mode=pl.Buffered(1) is not
        # accepted on top-level pallas_call BlockSpecs -> default buffering.
        return build(single_buffer_weights=False)(*args)


def encoder_block_ref(x, params, num_heads):
    """Pure-JAX reference mirroring the kernel's bf16-matmul / f32-accumulate path."""
    B, S, D = x.shape
    d_k = D // num_heads
    bf16, f32 = jnp.bfloat16, jnp.float32

    def mm(a, b):
        return jnp.dot(a.astype(bf16), b.astype(bf16), preferred_element_type=f32)

    def layernorm(v, gamma, beta):
        mean = jnp.mean(v, axis=-1, keepdims=True)
        var = jnp.sum((v - mean) ** 2, axis=-1, keepdims=True) / (D - 1)
        std = jnp.sqrt(var)
        return gamma * (v - mean) / (std + EPS) + beta

    ln1 = layernorm(x, params['gamma1'], params['beta1'])
    wqT, wkT = params['wq'].T, params['wk'].T
    wvT, woT = params['wv'].T, params['wo'].T
    attn = jnp.zeros_like(x)
    for h in range(num_heads):
        sl = slice(h * d_k, (h + 1) * d_k)
        qh, kh, vh = mm(ln1, wqT[:, sl]), mm(ln1, wkT[:, sl]), mm(ln1, wvT[:, sl])
        s = jnp.einsum('bqd,bkd->bqk', qh.astype(bf16), kh.astype(bf16),
                       preferred_element_type=f32) / math.sqrt(d_k)
        p = jax.nn.softmax(s, axis=-1)
        oh = jnp.einsum('bqk,bkd->bqd', p.astype(bf16), vh.astype(bf16),
                        preferred_element_type=f32)
        attn = attn + mm(oh, woT[sl, :])
    x1 = x + attn
    ln2 = layernorm(x1, params['gamma2'], params['beta2'])
    h1 = jnp.maximum(mm(ln2, params['w1'].T) + params['b1'], 0.0)
    return x1 + mm(h1, params['w2'].T) + params['b2']


if __name__ == "__main__":
    B, S, D, H, D_FF = 2, 16, 128, 4, 256

    key = jax.random.PRNGKey(0)
    ks = jax.random.split(key, 16)
    params = {
        'wq': 0.05 * jax.random.normal(ks[0], (D, D), jnp.float32),
        'wk': 0.05 * jax.random.normal(ks[1], (D, D), jnp.float32),
        'wv': 0.05 * jax.random.normal(ks[2], (D, D), jnp.float32),
        'wo': 0.05 * jax.random.normal(ks[3], (D, D), jnp.float32),
        'w1': 0.05 * jax.random.normal(ks[4], (D_FF, D), jnp.float32),
        'b1': 0.05 * jax.random.normal(ks[5], (D_FF,), jnp.float32),
        'w2': 0.05 * jax.random.normal(ks[6], (D, D_FF), jnp.float32),
        'b2': 0.05 * jax.random.normal(ks[7], (D,), jnp.float32),
        'gamma1': 1.0 + 0.1 * jax.random.normal(ks[9], (D,), jnp.float32),
        'beta1': 0.1 * jax.random.normal(ks[10], (D,), jnp.float32),
        'gamma2': 1.0 + 0.1 * jax.random.normal(ks[11], (D,), jnp.float32),
        'beta2': 0.1 * jax.random.normal(ks[12], (D,), jnp.float32),
    }

    x = jax.random.normal(ks[8], (B, S, D), jnp.float32)
    src_mask = jnp.ones((B, 1, S, S), jnp.float32)   # ignored (no-op in reference)

    out = encoder_block(x, src_mask, params, H)
    out = jax.block_until_ready(out)

    ref = encoder_block_ref(x, params, H)
    np.testing.assert_allclose(np.asarray(out), np.asarray(ref), rtol=5e-3, atol=5e-3)

    print("KERNEL_OK")
</pallas_src>

<mosaic_0001>
module attributes {stable_mosaic.version = 11 : i64} {
  func.func @kernel(%arg0: i32, %arg1: memref<1x16x128xf32, #tpu.memory_space<vmem>>, %arg2: memref<128x384xbf16, #tpu.memory_space<vmem>>, %arg3: memref<4x32x128xbf16, #tpu.memory_space<vmem>>, %arg4: memref<128x256xbf16, #tpu.memory_space<vmem>>, %arg5: memref<1x256xf32, #tpu.memory_space<vmem>>, %arg6: memref<256x128xbf16, #tpu.memory_space<vmem>>, %arg7: memref<1x128xf32, #tpu.memory_space<vmem>>, %arg8: memref<1x128xf32, #tpu.memory_space<vmem>>, %arg9: memref<1x128xf32, #tpu.memory_space<vmem>>, %arg10: memref<1x128xf32, #tpu.memory_space<vmem>>, %arg11: memref<1x128xf32, #tpu.memory_space<vmem>>, %arg12: memref<1x16x128xf32, #tpu.memory_space<vmem>>) attributes {dimension_semantics = [#tpu.dimension_semantics<parallel>], iteration_bounds = array<i64: 2>, scalar_prefetch = 0 : i64, scratch_operands = 0 : i64, tpu.core_type = #tpu.core_type<tc>, window_params = [{transform_indices = @transform_0, window_bounds = array<i64: 1, 16, 128>}, {pipeline_mode = #tpu.pipeline_mode<synchronous>, transform_indices = @transform_1, window_bounds = array<i64: 128, 384>}, {pipeline_mode = #tpu.pipeline_mode<synchronous>, transform_indices = @transform_2, window_bounds = array<i64: 4, 32, 128>}, {pipeline_mode = #tpu.pipeline_mode<synchronous>, transform_indices = @transform_3, window_bounds = array<i64: 128, 256>}, {pipeline_mode = #tpu.pipeline_mode<synchronous>, transform_indices = @transform_4, window_bounds = array<i64: 1, 256>}, {pipeline_mode = #tpu.pipeline_mode<synchronous>, transform_indices = @transform_5, window_bounds = array<i64: 256, 128>}, {pipeline_mode = #tpu.pipeline_mode<synchronous>, transform_indices = @transform_6, window_bounds = array<i64: 1, 128>}, {pipeline_mode = #tpu.pipeline_mode<synchronous>, transform_indices = @transform_7, window_bounds = array<i64: 1, 128>}, {pipeline_mode = #tpu.pipeline_mode<synchronous>, transform_indices = @transform_8, window_bounds = array<i64: 1, 128>}, {pipeline_mode = #tpu.pipeline_mode<synchronous>, transform_indices = @transform_9, window_bounds = array<i64: 1, 128>}, {pipeline_mode = #tpu.pipeline_mode<synchronous>, transform_indices = @transform_10, window_bounds = array<i64: 1, 128>}, {transform_indices = @transform_11, window_bounds = array<i64: 1, 16, 128>}]} {
    %c0 = arith.constant 0 : index
    %c0_0 = arith.constant 0 : index
    %c0_1 = arith.constant 0 : index
    %0 = vector.load %arg1[%c0, %c0_0, %c0_1] : memref<1x16x128xf32, #tpu.memory_space<vmem>>, vector<1x16x128xf32>
    %1 = vector.shape_cast %0 : vector<1x16x128xf32> to vector<16x128xf32>
    %c0_2 = arith.constant 0 : index
    %c0_3 = arith.constant 0 : index
    %2 = vector.load %arg8[%c0_2, %c0_3] : memref<1x128xf32, #tpu.memory_space<vmem>>, vector<1x128xf32>
    %c0_4 = arith.constant 0 : index
    %c0_5 = arith.constant 0 : index
    %3 = vector.load %arg9[%c0_4, %c0_5] : memref<1x128xf32, #tpu.memory_space<vmem>>, vector<1x128xf32>
    %cst = arith.constant dense<0.000000e+00> : vector<16xf32>
    %4 = vector.multi_reduction <add>, %1, %cst [1] : vector<16x128xf32> to vector<16xf32>
    %5 = vector.shape_cast %4 : vector<16xf32> to vector<16x1xf32>
    %cst_6 = arith.constant 1.280000e+02 : f32
    %6 = vector.broadcast %cst_6 : f32 to vector<16x1xf32>
    %7 = arith.divf %5, %6 : vector<16x1xf32>
    %8 = vector.broadcast %7 : vector<16x1xf32> to vector<16x128xf32>
    %9 = arith.subf %1, %8 : vector<16x128xf32>
    %10 = arith.mulf %9, %9 : vector<16x128xf32>
    %cst_7 = arith.constant dense<0.000000e+00> : vector<16xf32>
    %11 = vector.multi_reduction <add>, %10, %cst_7 [1] : vector<16x128xf32> to vector<16xf32>
    %12 = vector.shape_cast %11 : vector<16xf32> to vector<16x1xf32>
    %cst_8 = arith.constant 0.00787401571 : f32
    %13 = vector.broadcast %cst_8 : f32 to vector<16x1xf32>
    %14 = arith.mulf %12, %13 : vector<16x1xf32>
    %15 = vector.broadcast %7 : vector<16x1xf32> to vector<16x128xf32>
    %16 = arith.subf %1, %15 : vector<16x128xf32>
    %17 = vector.broadcast %2 : vector<1x128xf32> to vector<16x128xf32>
    %18 = arith.mulf %17, %16 : vector<16x128xf32>
    %19 = math.sqrt %14 : vector<16x1xf32>
    %cst_9 = arith.constant 9.99999997E-7 : f32
    %20 = vector.broadcast %cst_9 : f32 to vector<16x1xf32>
    %21 = arith.addf %19, %20 : vector<16x1xf32>
    %22 = vector.broadcast %21 : vector<16x1xf32> to vector<16x128xf32>
    %23 = arith.divf %18, %22 : vector<16x128xf32>
    %24 = vector.broadcast %3 : vector<1x128xf32> to vector<16x128xf32>
    %25 = arith.addf %23, %24 : vector<16x128xf32>
    %26 = arith.truncf %25 : vector<16x128xf32> to vector<16x128xbf16>
    %c0_10 = arith.constant 0 : index
    %c0_11 = arith.constant 0 : index
    %27 = vector.load %arg2[%c0_10, %c0_11] : memref<128x384xbf16, #tpu.memory_space<vmem>>, vector<128x384xbf16>
    %cst_12 = arith.constant dense<0.000000e+00> : vector<16x384xf32>
    %28 = tpu.matmul %26, %27, %cst_12 {dimension_numbers = #tpu.dot_dimension_numbers<[1], [0], [0], [1], [0, 0, 1, 1], [], []>} : vector<16x128xbf16>, vector<128x384xbf16>, vector<16x384xf32> -> vector<16x384xf32>
    %29 = arith.truncf %28 : vector<16x384xf32> to vector<16x384xbf16>
    %30 = vector.extract_strided_slice %29 {offsets = [0, 0], sizes = [16, 32], strides = [1, 1]} : vector<16x384xbf16> to vector<16x32xbf16>
    %31 = vector.extract_strided_slice %29 {offsets = [0, 128], sizes = [16, 32], strides = [1, 1]} : vector<16x384xbf16> to vector<16x32xbf16>
    %32 = vector.extract_strided_slice %29 {offsets = [0, 256], sizes = [16, 32], strides = [1, 1]} : vector<16x384xbf16> to vector<16x32xbf16>
    "tpu.trace_start"() <{level = 10 : i32, message = "qd,kd->qk"}> : () -> ()
    %cst_13 = arith.constant dense<0.000000e+00> : vector<16x16xf32>
    %33 = tpu.matmul %30, %31, %cst_13 {dimension_numbers = #tpu.dot_dimension_numbers<[1], [1], [0], [0], [0, 0, 1, 0], [], []>} : vector<16x32xbf16>, vector<16x32xbf16>, vector<16x16xf32> -> vector<16x16xf32>
    "tpu.trace_stop"() : () -> ()
    %cst_14 = arith.constant dense<0xFF800000> : vector<16xf32>
    %34 = vector.multi_reduction <maximumf>, %33, %cst_14 [1] : vector<16x16xf32> to vector<16xf32>
    %35 = vector.shape_cast %34 : vector<16xf32> to vector<16x1xf32>
    %36 = vector.broadcast %35 : vector<16x1xf32> to vector<16x16xf32>
    %37 = arith.subf %33, %36 : vector<16x16xf32>
    %38 = math.exp %37 : vector<16x16xf32>
    %39 = arith.truncf %38 : vector<16x16xf32> to vector<16x16xbf16>
    %cst_15 = arith.constant dense<0.000000e+00> : vector<16x32xf32>
    %40 = tpu.matmul %39, %32, %cst_15 {dimension_numbers = #tpu.dot_dimension_numbers<[1], [0], [0], [1], [0, 0, 1, 1], [], []>} : vector<16x16xbf16>, vector<16x32xbf16>, vector<16x32xf32> -> vector<16x32xf32>
    %cst_16 = arith.constant dense<0.000000e+00> : vector<16xf32>
    %41 = vector.multi_reduction <add>, %38, %cst_16 [1] : vector<16x16xf32> to vector<16xf32>
    %42 = vector.shape_cast %41 : vector<16xf32> to vector<16x1xf32>
    %43 = tpu.reciprocal %42 {approx = true} : vector<16x1xf32> -> vector<16x1xf32>
    %44 = vector.broadcast %43 : vector<16x1xf32> to vector<16x32xf32>
    %45 = arith.mulf %40, %44 : vector<16x32xf32>
    %46 = arith.truncf %45 : vector<16x32xf32> to vector<16x32xbf16>
    %c0_17 = arith.constant 0 : index
    %c0_18 = arith.constant 0 : index
    %c0_19 = arith.constant 0 : index
    %47 = vector.load %arg3[%c0_17, %c0_18, %c0_19] : memref<4x32x128xbf16, #tpu.memory_space<vmem>>, vector<1x32x128xbf16>
    %48 = vector.shape_cast %47 : vector<1x32x128xbf16> to vector<32x128xbf16>
    %cst_20 = arith.constant dense<0.000000e+00> : vector<16x128xf32>
    %49 = tpu.matmul %46, %48, %cst_20 {dimension_numbers = #tpu.dot_dimension_numbers<[1], [0], [0], [1], [0, 0, 1, 1], [], []>} : vector<16x32xbf16>, vector<32x128xbf16>, vector<16x128xf32> -> vector<16x128xf32>
    %50 = vector.extract_strided_slice %29 {offsets = [0, 32], sizes = [16, 32], strides = [1, 1]} : vector<16x384xbf16> to vector<16x32xbf16>
    %51 = vector.extract_strided_slice %29 {offsets = [0, 160], sizes = [16, 32], strides = [1, 1]} : vector<16x384xbf16> to vector<16x32xbf16>
    %52 = vector.extract_strided_slice %29 {offsets = [0, 288], sizes = [16, 32], strides = [1, 1]} : vector<16x384xbf16> to vector<16x32xbf16>
    "tpu.trace_start"() <{level = 10 : i32, message = "qd,kd->qk"}> : () -> ()
    %cst_21 = arith.constant dense<0.000000e+00> : vector<16x16xf32>
    %53 = tpu.matmul %50, %51, %cst_21 {dimension_numbers = #tpu.dot_dimension_numbers<[1], [1], [0], [0], [0, 0, 1, 0], [], []>} : vector<16x32xbf16>, vector<16x32xbf16>, vector<16x16xf32> -> vector<16x16xf32>
    "tpu.trace_stop"() : () -> ()
    %cst_22 = arith.constant dense<0xFF800000> : vector<16xf32>
    %54 = vector.multi_reduction <maximumf>, %53, %cst_22 [1] : vector<16x16xf32> to vector<16xf32>
    %55 = vector.shape_cast %54 : vector<16xf32> to vector<16x1xf32>
    %56 = vector.broadcast %55 : vector<16x1xf32> to vector<16x16xf32>
    %57 = arith.subf %53, %56 : vector<16x16xf32>
    %58 = math.exp %57 : vector<16x16xf32>
    %59 = arith.truncf %58 : vector<16x16xf32> to vector<16x16xbf16>
    %cst_23 = arith.constant dense<0.000000e+00> : vector<16x32xf32>
    %60 = tpu.matmul %59, %52, %cst_23 {dimension_numbers = #tpu.dot_dimension_numbers<[1], [0], [0], [1], [0, 0, 1, 1], [], []>} : vector<16x16xbf16>, vector<16x32xbf16>, vector<16x32xf32> -> vector<16x32xf32>
    %cst_24 = arith.constant dense<0.000000e+00> : vector<16xf32>
    %61 = vector.multi_reduction <add>, %58, %cst_24 [1] : vector<16x16xf32> to vector<16xf32>
    %62 = vector.shape_cast %61 : vector<16xf32> to vector<16x1xf32>
    %63 = tpu.reciprocal %62 {approx = true} : vector<16x1xf32> -> vector<16x1xf32>
    %64 = vector.broadcast %63 : vector<16x1xf32> to vector<16x32xf32>
    %65 = arith.mulf %60, %64 : vector<16x32xf32>
    %66 = arith.truncf %65 : vector<16x32xf32> to vector<16x32xbf16>
    %c1 = arith.constant 1 : index
    %c0_25 = arith.constant 0 : index
    %c0_26 = arith.constant 0 : index
    %67 = vector.load %arg3[%c1, %c0_25, %c0_26] : memref<4x32x128xbf16, #tpu.memory_space<vmem>>, vector<1x32x128xbf16>
    %68 = vector.shape_cast %67 : vector<1x32x128xbf16> to vector<32x128xbf16>
    %cst_27 = arith.constant dense<0.000000e+00> : vector<16x128xf32>
    %69 = tpu.matmul %66, %68, %cst_27 {dimension_numbers = #tpu.dot_dimension_numbers<[1], [0], [0], [1], [0, 0, 1, 1], [], []>} : vector<16x32xbf16>, vector<32x128xbf16>, vector<16x128xf32> -> vector<16x128xf32>
    %70 = arith.addf %49, %69 : vector<16x128xf32>
    %71 = vector.extract_strided_slice %29 {offsets = [0, 64], sizes = [16, 32], strides = [1, 1]} : vector<16x384xbf16> to vector<16x32xbf16>
    %72 = vector.extract_strided_slice %29 {offsets = [0, 192], sizes = [16, 32], strides = [1, 1]} : vector<16x384xbf16> to vector<16x32xbf16>
    %73 = vector.extract_strided_slice %29 {offsets = [0, 320], sizes = [16, 32], strides = [1, 1]} : vector<16x384xbf16> to vector<16x32xbf16>
    "tpu.trace_start"() <{level = 10 : i32, message = "qd,kd->qk"}> : () -> ()
    %cst_28 = arith.constant dense<0.000000e+00> : vector<16x16xf32>
    %74 = tpu.matmul %71, %72, %cst_28 {dimension_numbers = #tpu.dot_dimension_numbers<[1], [1], [0], [0], [0, 0, 1, 0], [], []>} : vector<16x32xbf16>, vector<16x32xbf16>, vector<16x16xf32> -> vector<16x16xf32>
    "tpu.trace_stop"() : () -> ()
    %cst_29 = arith.constant dense<0xFF800000> : vector<16xf32>
    %75 = vector.multi_reduction <maximumf>, %74, %cst_29 [1] : vector<16x16xf32> to vector<16xf32>
    %76 = vector.shape_cast %75 : vector<16xf32> to vector<16x1xf32>
    %77 = vector.broadcast %76 : vector<16x1xf32> to vector<16x16xf32>
    %78 = arith.subf %74, %77 : vector<16x16xf32>
    %79 = math.exp %78 : vector<16x16xf32>
    %80 = arith.truncf %79 : vector<16x16xf32> to vector<16x16xbf16>
    %cst_30 = arith.constant dense<0.000000e+00> : vector<16x32xf32>
    %81 = tpu.matmul %80, %73, %cst_30 {dimension_numbers = #tpu.dot_dimension_numbers<[1], [0], [0], [1], [0, 0, 1, 1], [], []>} : vector<16x16xbf16>, vector<16x32xbf16>, vector<16x32xf32> -> vector<16x32xf32>
    %cst_31 = arith.constant dense<0.000000e+00> : vector<16xf32>
    %82 = vector.multi_reduction <add>, %79, %cst_31 [1] : vector<16x16xf32> to vector<16xf32>
    %83 = vector.shape_cast %82 : vector<16xf32> to vector<16x1xf32>
    %84 = tpu.reciprocal %83 {approx = true} : vector<16x1xf32> -> vector<16x1xf32>
    %85 = vector.broadcast %84 : vector<16x1xf32> to vector<16x32xf32>
    %86 = arith.mulf %81, %85 : vector<16x32xf32>
    %87 = arith.truncf %86 : vector<16x32xf32> to vector<16x32xbf16>
    %c2 = arith.constant 2 : index
    %c0_32 = arith.constant 0 : index
    %c0_33 = arith.constant 0 : index
    %88 = vector.load %arg3[%c2, %c0_32, %c0_33] : memref<4x32x128xbf16, #tpu.memory_space<vmem>>, vector<1x32x128xbf16>
    %89 = vector.shape_cast %88 : vector<1x32x128xbf16> to vector<32x128xbf16>
    %cst_34 = arith.constant dense<0.000000e+00> : vector<16x128xf32>
    %90 = tpu.matmul %87, %89, %cst_34 {dimension_numbers = #tpu.dot_dimension_numbers<[1], [0], [0], [1], [0, 0, 1, 1], [], []>} : vector<16x32xbf16>, vector<32x128xbf16>, vector<16x128xf32> -> vector<16x128xf32>
    %91 = arith.addf %70, %90 : vector<16x128xf32>
    %92 = vector.extract_strided_slice %29 {offsets = [0, 96], sizes = [16, 32], strides = [1, 1]} : vector<16x384xbf16> to vector<16x32xbf16>
    %93 = vector.extract_strided_slice %29 {offsets = [0, 224], sizes = [16, 32], strides = [1, 1]} : vector<16x384xbf16> to vector<16x32xbf16>
    %94 = vector.extract_strided_slice %29 {offsets = [0, 352], sizes = [16, 32], strides = [1, 1]} : vector<16x384xbf16> to vector<16x32xbf16>
    "tpu.trace_start"() <{level = 10 : i32, message = "qd,kd->qk"}> : () -> ()
    %cst_35 = arith.constant dense<0.000000e+00> : vector<16x16xf32>
    %95 = tpu.matmul %92, %93, %cst_35 {dimension_numbers = #tpu.dot_dimension_numbers<[1], [1], [0], [0], [0, 0, 1, 0], [], []>} : vector<16x32xbf16>, vector<16x32xbf16>, vector<16x16xf32> -> vector<16x16xf32>
    "tpu.trace_stop"() : () -> ()
    %cst_36 = arith.constant dense<0xFF800000> : vector<16xf32>
    %96 = vector.multi_reduction <maximumf>, %95, %cst_36 [1] : vector<16x16xf32> to vector<16xf32>
    %97 = vector.shape_cast %96 : vector<16xf32> to vector<16x1xf32>
    %98 = vector.broadcast %97 : vector<16x1xf32> to vector<16x16xf32>
    %99 = arith.subf %95, %98 : vector<16x16xf32>
    %100 = math.exp %99 : vector<16x16xf32>
    %101 = arith.truncf %100 : vector<16x16xf32> to vector<16x16xbf16>
    %cst_37 = arith.constant dense<0.000000e+00> : vector<16x32xf32>
    %102 = tpu.matmul %101, %94, %cst_37 {dimension_numbers = #tpu.dot_dimension_numbers<[1], [0], [0], [1], [0, 0, 1, 1], [], []>} : vector<16x16xbf16>, vector<16x32xbf16>, vector<16x32xf32> -> vector<16x32xf32>
    %cst_38 = arith.constant dense<0.000000e+00> : vector<16xf32>
    %103 = vector.multi_reduction <add>, %100, %cst_38 [1] : vector<16x16xf32> to vector<16xf32>
    %104 = vector.shape_cast %103 : vector<16xf32> to vector<16x1xf32>
    %105 = tpu.reciprocal %104 {approx = true} : vector<16x1xf32> -> vector<16x1xf32>
    %106 = vector.broadcast %105 : vector<16x1xf32> to vector<16x32xf32>
    %107 = arith.mulf %102, %106 : vector<16x32xf32>
    %108 = arith.truncf %107 : vector<16x32xf32> to vector<16x32xbf16>
    %c3 = arith.constant 3 : index
    %c0_39 = arith.constant 0 : index
    %c0_40 = arith.constant 0 : index
    %109 = vector.load %arg3[%c3, %c0_39, %c0_40] : memref<4x32x128xbf16, #tpu.memory_space<vmem>>, vector<1x32x128xbf16>
    %110 = vector.shape_cast %109 : vector<1x32x128xbf16> to vector<32x128xbf16>
    %cst_41 = arith.constant dense<0.000000e+00> : vector<16x128xf32>
    %111 = tpu.matmul %108, %110, %cst_41 {dimension_numbers = #tpu.dot_dimension_numbers<[1], [0], [0], [1], [0, 0, 1, 1], [], []>} : vector<16x32xbf16>, vector<32x128xbf16>, vector<16x128xf32> -> vector<16x128xf32>
    %112 = arith.addf %91, %111 : vector<16x128xf32>
    %113 = arith.addf %1, %112 : vector<16x128xf32>
    %c0_42 = arith.constant 0 : index
    %c0_43 = arith.constant 0 : index
    %114 = vector.load %arg10[%c0_42, %c0_43] : memref<1x128xf32, #tpu.memory_space<vmem>>, vector<1x128xf32>
    %c0_44 = arith.constant 0 : index
    %c0_45 = arith.constant 0 : index
    %115 = vector.load %arg11[%c0_44, %c0_45] : memref<1x128xf32, #tpu.memory_space<vmem>>, vector<1x128xf32>
    %cst_46 = arith.constant dense<0.000000e+00> : vector<16xf32>
    %116 = vector.multi_reduction <add>, %113, %cst_46 [1] : vector<16x128xf32> to vector<16xf32>
    %117 = vector.shape_cast %116 : vector<16xf32> to vector<16x1xf32>
    %cst_47 = arith.constant 1.280000e+02 : f32
    %118 = vector.broadcast %cst_47 : f32 to vector<16x1xf32>
    %119 = arith.divf %117, %118 : vector<16x1xf32>
    %120 = vector.broadcast %119 : vector<16x1xf32> to vector<16x128xf32>
    %121 = arith.subf %113, %120 : vector<16x128xf32>
    %122 = arith.mulf %121, %121 : vector<16x128xf32>
    %cst_48 = arith.constant dense<0.000000e+00> : vector<16xf32>
    %123 = vector.multi_reduction <add>, %122, %cst_48 [1] : vector<16x128xf32> to vector<16xf32>
    %124 = vector.shape_cast %123 : vector<16xf32> to vector<16x1xf32>
    %cst_49 = arith.constant 0.00787401571 : f32
    %125 = vector.broadcast %cst_49 : f32 to vector<16x1xf32>
    %126 = arith.mulf %124, %125 : vector<16x1xf32>
    %127 = vector.broadcast %119 : vector<16x1xf32> to vector<16x128xf32>
    %128 = arith.subf %113, %127 : vector<16x128xf32>
    %129 = vector.broadcast %114 : vector<1x128xf32> to vector<16x128xf32>
    %130 = arith.mulf %129, %128 : vector<16x128xf32>
    %131 = math.sqrt %126 : vector<16x1xf32>
    %cst_50 = arith.constant 9.99999997E-7 : f32
    %132 = vector.broadcast %cst_50 : f32 to vector<16x1xf32>
    %133 = arith.addf %131, %132 : vector<16x1xf32>
    %134 = vector.broadcast %133 : vector<16x1xf32> to vector<16x128xf32>
    %135 = arith.divf %130, %134 : vector<16x128xf32>
    %136 = vector.broadcast %115 : vector<1x128xf32> to vector<16x128xf32>
    %137 = arith.addf %135, %136 : vector<16x128xf32>
    %138 = arith.truncf %137 : vector<16x128xf32> to vector<16x128xbf16>
    %c0_51 = arith.constant 0 : index
    %c0_52 = arith.constant 0 : index
    %139 = vector.load %arg4[%c0_51, %c0_52] : memref<128x256xbf16, #tpu.memory_space<vmem>>, vector<128x256xbf16>
    %cst_53 = arith.constant dense<0.000000e+00> : vector<16x256xf32>
    %140 = tpu.matmul %138, %139, %cst_53 {dimension_numbers = #tpu.dot_dimension_numbers<[1], [0], [0], [1], [0, 0, 1, 1], [], []>} : vector<16x128xbf16>, vector<128x256xbf16>, vector<16x256xf32> -> vector<16x256xf32>
    %c0_54 = arith.constant 0 : index
    %c0_55 = arith.constant 0 : index
    %141 = vector.load %arg5[%c0_54, %c0_55] : memref<1x256xf32, #tpu.memory_space<vmem>>, vector<1x256xf32>
    %142 = vector.broadcast %141 : vector<1x256xf32> to vector<16x256xf32>
    %143 = arith.addf %140, %142 : vector<16x256xf32>
    %cst_56 = arith.constant 0.000000e+00 : f32
    %144 = vector.broadcast %cst_56 : f32 to vector<16x256xf32>
    %145 = arith.maximumf %143, %144 : vector<16x256xf32>
    %146 = arith.truncf %145 : vector<16x256xf32> to vector<16x256xbf16>
    %c0_57 = arith.constant 0 : index
    %c0_58 = arith.constant 0 : index
    %147 = vector.load %arg6[%c0_57, %c0_58] : memref<256x128xbf16, #tpu.memory_space<vmem>>, vector<256x128xbf16>
    %cst_59 = arith.constant dense<0.000000e+00> : vector<16x128xf32>
    %148 = tpu.matmul %146, %147, %cst_59 {dimension_numbers = #tpu.dot_dimension_numbers<[1], [0], [0], [1], [0, 0, 1, 1], [], []>} : vector<16x256xbf16>, vector<256x128xbf16>, vector<16x128xf32> -> vector<16x128xf32>
    %c0_60 = arith.constant 0 : index
    %c0_61 = arith.constant 0 : index
    %149 = vector.load %arg7[%c0_60, %c0_61] : memref<1x128xf32, #tpu.memory_space<vmem>>, vector<1x128xf32>
    %150 = vector.broadcast %149 : vector<1x128xf32> to vector<16x128xf32>
    %151 = arith.addf %148, %150 : vector<16x128xf32>
    %152 = arith.addf %113, %151 : vector<16x128xf32>
    %c0_62 = arith.constant 0 : index
    %c0_63 = arith.constant 0 : index
    %c0_64 = arith.constant 0 : index
    %153 = vector.load %arg12[%c0_62, %c0_63, %c0_64] : memref<1x16x128xf32, #tpu.memory_space<vmem>>, vector<1x16x128xf32>
    %154 = vector.shape_cast %153 : vector<1x16x128xf32> to vector<16x128xf32>
    %155 = vector.shape_cast %152 : vector<16x128xf32> to vector<1x16x128xf32>
    tpu.vector_store %arg12[%c0_62, %c0_63, %c0_64], %155 {strides = array<i32>} : memref<1x16x128xf32, #tpu.memory_space<vmem>>, vector<1x16x128xf32>,
    return
  }
  func.func @transform_0(%arg0: i32) -> (i32, i32, i32) {
    %c0_i32 = arith.constant 0 : i32
    %c0_i32_0 = arith.constant 0 : i32
    %c0_i32_1 = arith.constant 0 : i32
    return %arg0, %c0_i32, %c0_i32_0 : i32, i32, i32
  }
  func.func @transform_1(%arg0: i32) -> (i32, i32) {
    %c0_i32 = arith.constant 0 : i32
    %c0_i32_0 = arith.constant 0 : i32
    %c0_i32_1 = arith.constant 0 : i32
    return %c0_i32, %c0_i32_0 : i32, i32
  }
  func.func @transform_2(%arg0: i32) -> (i32, i32, i32) {
    %c0_i32 = arith.constant 0 : i32
    %c0_i32_0 = arith.constant 0 : i32
    %c0_i32_1 = arith.constant 0 : i32
    %c0_i32_2 = arith.constant 0 : i32
    return %c0_i32, %c0_i32_0, %c0_i32_1 : i32, i32, i32
  }
  func.func @transform_3(%arg0: i32) -> (i32, i32) {
    %c0_i32 = arith.constant 0 : i32
    %c0_i32_0 = arith.constant 0 : i32
    %c0_i32_1 = arith.constant 0 : i32
    return %c0_i32, %c0_i32_0 : i32, i32
  }
  func.func @transform_4(%arg0: i32) -> (i32, i32) {
    %c0_i32 = arith.constant 0 : i32
    %c0_i32_0 = arith.constant 0 : i32
    %c0_i32_1 = arith.constant 0 : i32
    return %c0_i32, %c0_i32_0 : i32, i32
  }
  func.func @transform_5(%arg0: i32) -> (i32, i32) {
    %c0_i32 = arith.constant 0 : i32
    %c0_i32_0 = arith.constant 0 : i32
    %c0_i32_1 = arith.constant 0 : i32
    return %c0_i32, %c0_i32_0 : i32, i32
  }
  func.func @transform_6(%arg0: i32) -> (i32, i32) {
    %c0_i32 = arith.constant 0 : i32
    %c0_i32_0 = arith.constant 0 : i32
    %c0_i32_1 = arith.constant 0 : i32
    return %c0_i32, %c0_i32_0 : i32, i32
  }
  func.func @transform_7(%arg0: i32) -> (i32, i32) {
    %c0_i32 = arith.constant 0 : i32
    %c0_i32_0 = arith.constant 0 : i32
    %c0_i32_1 = arith.constant 0 : i32
    return %c0_i32, %c0_i32_0 : i32, i32
  }
  func.func @transform_8(%arg0: i32) -> (i32, i32) {
    %c0_i32 = arith.constant 0 : i32
    %c0_i32_0 = arith.constant 0 : i32
    %c0_i32_1 = arith.constant 0 : i32
    return %c0_i32, %c0_i32_0 : i32, i32
  }
  func.func @transform_9(%arg0: i32) -> (i32, i32) {
    %c0_i32 = arith.constant 0 : i32
    %c0_i32_0 = arith.constant 0 : i32
    %c0_i32_1 = arith.constant 0 : i32
    return %c0_i32, %c0_i32_0 : i32, i32
  }
  func.func @transform_10(%arg0: i32) -> (i32, i32) {
    %c0_i32 = arith.constant 0 : i32
    %c0_i32_0 = arith.constant 0 : i32
    %c0_i32_1 = arith.constant 0 : i32
    return %c0_i32, %c0_i32_0 : i32, i32
  }
  func.func @transform_11(%arg0: i32) -> (i32, i32, i32) {
    %c0_i32 = arith.constant 0 : i32
    %c0_i32_0 = arith.constant 0 : i32
    %c0_i32_1 = arith.constant 0 : i32
    return %arg0, %c0_i32, %c0_i32_0 : i32, i32, i32
  }
}

module attributes {stable_mosaic.version = 11 : i64} {
  func.func @kernel(%arg0: i32, %arg1: memref<1x16x128xf32, #tpu.memory_space<vmem>>, %arg2: memref<128x384xbf16, #tpu.memory_space<vmem>>, %arg3: memref<4x32x128xbf16, #tpu.memory_space<vmem>>, %arg4: memref<128x256xbf16, #tpu.memory_space<vmem>>, %arg5: memref<1x256xf32, #tpu.memory_space<vmem>>, %arg6: memref<256x128xbf16, #tpu.memory_space<vmem>>, %arg7: memref<1x128xf32, #tpu.memory_space<vmem>>, %arg8: memref<1x128xf32, #tpu.memory_space<vmem>>, %arg9: memref<1x128xf32, #tpu.memory_space<vmem>>, %arg10: memref<1x128xf32, #tpu.memory_space<vmem>>, %arg11: memref<1x128xf32, #tpu.memory_space<vmem>>, %arg12: memref<1x16x128xf32, #tpu.memory_space<vmem>>) attributes {dimension_semantics = [#tpu.dimension_semantics<parallel>], iteration_bounds = array<i64: 2>, scalar_prefetch = 0 : i64, scratch_operands = 0 : i64, tpu.core_type = #tpu.core_type<tc>, window_params = [{transform_indices = @transform_0, window_bounds = array<i64: 1, 16, 128>}, {pipeline_mode = #tpu.pipeline_mode<synchronous>, transform_indices = @transform_1, window_bounds = array<i64: 128, 384>}, {pipeline_mode = #tpu.pipeline_mode<synchronous>, transform_indices = @transform_2, window_bounds = array<i64: 4, 32, 128>}, {pipeline_mode = #tpu.pipeline_mode<synchronous>, transform_indices = @transform_3, window_bounds = array<i64: 128, 256>}, {pipeline_mode = #tpu.pipeline_mode<synchronous>, transform_indices = @transform_4, window_bounds = array<i64: 1, 256>}, {pipeline_mode = #tpu.pipeline_mode<synchronous>, transform_indices = @transform_5, window_bounds = array<i64: 256, 128>}, {pipeline_mode = #tpu.pipeline_mode<synchronous>, transform_indices = @transform_6, window_bounds = array<i64: 1, 128>}, {pipeline_mode = #tpu.pipeline_mode<synchronous>, transform_indices = @transform_7, window_bounds = array<i64: 1, 128>}, {pipeline_mode = #tpu.pipeline_mode<synchronous>, transform_indices = @transform_8, window_bounds = array<i64: 1, 128>}, {pipeline_mode = #tpu.pipeline_mode<synchronous>, transform_indices = @transform_9, window_bounds = array<i64: 1, 128>}, {pipeline_mode = #tpu.pipeline_mode<synchronous>, transform_indices = @transform_10, window_bounds = array<i64: 1, 128>}, {transform_indices = @transform_11, window_bounds = array<i64: 1, 16, 128>}]} {
    %c0 = arith.constant 0 : index
    %c0_0 = arith.constant 0 : index
    %c0_1 = arith.constant 0 : index
    %0 = vector.load %arg1[%c0, %c0_0, %c0_1] : memref<1x16x128xf32, #tpu.memory_space<vmem>>, vector<1x16x128xf32>
    %1 = vector.shape_cast %0 : vector<1x16x128xf32> to vector<16x128xf32>
    %c0_2 = arith.constant 0 : index
    %c0_3 = arith.constant 0 : index
    %2 = vector.load %arg8[%c0_2, %c0_3] : memref<1x128xf32, #tpu.memory_space<vmem>>, vector<1x128xf32>
    %c0_4 = arith.constant 0 : index
    %c0_5 = arith.constant 0 : index
    %3 = vector.load %arg9[%c0_4, %c0_5] : memref<1x128xf32, #tpu.memory_space<vmem>>, vector<1x128xf32>
    %cst = arith.constant dense<0.000000e+00> : vector<16xf32>
    %4 = vector.multi_reduction <add>, %1, %cst [1] : vector<16x128xf32> to vector<16xf32>
    %5 = vector.shape_cast %4 : vector<16xf32> to vector<16x1xf32>
    %cst_6 = arith.constant 1.280000e+02 : f32
    %6 = vector.broadcast %cst_6 : f32 to vector<16x1xf32>
    %7 = arith.divf %5, %6 : vector<16x1xf32>
    %8 = vector.broadcast %7 : vector<16x1xf32> to vector<16x128xf32>
    %9 = arith.subf %1, %8 : vector<16x128xf32>
    %10 = arith.mulf %9, %9 : vector<16x128xf32>
    %cst_7 = arith.constant dense<0.000000e+00> : vector<16xf32>
    %11 = vector.multi_reduction <add>, %10, %cst_7 [1] : vector<16x128xf32> to vector<16xf32>
    %12 = vector.shape_cast %11 : vector<16xf32> to vector<16x1xf32>
    %cst_8 = arith.constant 0.00787401571 : f32
    %13 = vector.broadcast %cst_8 : f32 to vector<16x1xf32>
    %14 = arith.mulf %12, %13 : vector<16x1xf32>
    %15 = vector.broadcast %7 : vector<16x1xf32> to vector<16x128xf32>
    %16 = arith.subf %1, %15 : vector<16x128xf32>
    %17 = vector.broadcast %2 : vector<1x128xf32> to vector<16x128xf32>
    %18 = arith.mulf %17, %16 : vector<16x128xf32>
    %19 = math.sqrt %14 : vector<16x1xf32>
    %cst_9 = arith.constant 9.99999997E-7 : f32
    %20 = vector.broadcast %cst_9 : f32 to vector<16x1xf32>
    %21 = arith.addf %19, %20 : vector<16x1xf32>
    %22 = vector.broadcast %21 : vector<16x1xf32> to vector<16x128xf32>
    %23 = arith.divf %18, %22 : vector<16x128xf32>
    %24 = vector.broadcast %3 : vector<1x128xf32> to vector<16x128xf32>
    %25 = arith.addf %23, %24 : vector<16x128xf32>
    %26 = arith.truncf %25 : vector<16x128xf32> to vector<16x128xbf16>
    %c0_10 = arith.constant 0 : index
    %c0_11 = arith.constant 0 : index
    %27 = vector.load %arg2[%c0_10, %c0_11] : memref<128x384xbf16, #tpu.memory_space<vmem>>, vector<128x384xbf16>
    %cst_12 = arith.constant dense<0.000000e+00> : vector<16x384xf32>
    %28 = tpu.matmul %26, %27, %cst_12 {dimension_numbers = #tpu.dot_dimension_numbers<[1], [0], [0], [1], [0, 0, 1, 1], [], []>} : vector<16x128xbf16>, vector<128x384xbf16>, vector<16x384xf32> -> vector<16x384xf32>
    %29 = arith.truncf %28 : vector<16x384xf32> to vector<16x384xbf16>
    %30 = vector.extract_strided_slice %29 {offsets = [0, 0], sizes = [16, 32], strides = [1, 1]} : vector<16x384xbf16> to vector<16x32xbf16>
    %31 = vector.extract_strided_slice %29 {offsets = [0, 128], sizes = [16, 32], strides = [1, 1]} : vector<16x384xbf16> to vector<16x32xbf16>
    %32 = vector.extract_strided_slice %29 {offsets = [0, 256], sizes = [16, 32], strides = [1, 1]} : vector<16x384xbf16> to vector<16x32xbf16>
    "tpu.trace_start"() <{level = 10 : i32, message = "qd,kd->qk"}> : () -> ()
    %cst_13 = arith.constant dense<0.000000e+00> : vector<16x16xf32>
    %33 = tpu.matmul %30, %31, %cst_13 {dimension_numbers = #tpu.dot_dimension_numbers<[1], [1], [0], [0], [0, 0, 1, 0], [], []>} : vector<16x32xbf16>, vector<16x32xbf16>, vector<16x16xf32> -> vector<16x16xf32>
    "tpu.trace_stop"() : () -> ()
    %cst_14 = arith.constant dense<0xFF800000> : vector<16xf32>
    %34 = vector.multi_reduction <maximumf>, %33, %cst_14 [1] : vector<16x16xf32> to vector<16xf32>
    %35 = vector.shape_cast %34 : vector<16xf32> to vector<16x1xf32>
    %36 = vector.broadcast %35 : vector<16x1xf32> to vector<16x16xf32>
    %37 = arith.subf %33, %36 : vector<16x16xf32>
    %38 = math.exp %37 : vector<16x16xf32>
    %39 = arith.truncf %38 : vector<16x16xf32> to vector<16x16xbf16>
    %cst_15 = arith.constant dense<0.000000e+00> : vector<16x32xf32>
    %40 = tpu.matmul %39, %32, %cst_15 {dimension_numbers = #tpu.dot_dimension_numbers<[1], [0], [0], [1], [0, 0, 1, 1], [], []>} : vector<16x16xbf16>, vector<16x32xbf16>, vector<16x32xf32> -> vector<16x32xf32>
    %cst_16 = arith.constant dense<0.000000e+00> : vector<16xf32>
    %41 = vector.multi_reduction <add>, %38, %cst_16 [1] : vector<16x16xf32> to vector<16xf32>
    %42 = vector.shape_cast %41 : vector<16xf32> to vector<16x1xf32>
    %43 = tpu.reciprocal %42 {approx = true} : vector<16x1xf32> -> vector<16x1xf32>
    %44 = vector.broadcast %43 : vector<16x1xf32> to vector<16x32xf32>
    %45 = arith.mulf %40, %44 : vector<16x32xf32>
    %46 = arith.truncf %45 : vector<16x32xf32> to vector<16x32xbf16>
    %c0_17 = arith.constant 0 : index
    %c0_18 = arith.constant 0 : index
    %c0_19 = arith.constant 0 : index
    %47 = vector.load %arg3[%c0_17, %c0_18, %c0_19] : memref<4x32x128xbf16, #tpu.memory_space<vmem>>, vector<1x32x128xbf16>
    %48 = vector.shape_cast %47 : vector<1x32x128xbf16> to vector<32x128xbf16>
    %cst_20 = arith.constant dense<0.000000e+00> : vector<16x128xf32>
    %49 = tpu.matmul %46, %48, %cst_20 {dimension_numbers = #tpu.dot_dimension_numbers<[1], [0], [0], [1], [0, 0, 1, 1], [], []>} : vector<16x32xbf16>, vector<32x128xbf16>, vector<16x128xf32> -> vector<16x128xf32>
    %50 = vector.extract_strided_slice %29 {offsets = [0, 32], sizes = [16, 32], strides = [1, 1]} : vector<16x384xbf16> to vector<16x32xbf16>
    %51 = vector.extract_strided_slice %29 {offsets = [0, 160], sizes = [16, 32], strides = [1, 1]} : vector<16x384xbf16> to vector<16x32xbf16>
    %52 = vector.extract_strided_slice %29 {offsets = [0, 288], sizes = [16, 32], strides = [1, 1]} : vector<16x384xbf16> to vector<16x32xbf16>
    "tpu.trace_start"() <{level = 10 : i32, message = "qd,kd->qk"}> : () -> ()
    %cst_21 = arith.constant dense<0.000000e+00> : vector<16x16xf32>
    %53 = tpu.matmul %50, %51, %cst_21 {dimension_numbers = #tpu.dot_dimension_numbers<[1], [1], [0], [0], [0, 0, 1, 0], [], []>} : vector<16x32xbf16>, vector<16x32xbf16>, vector<16x16xf32> -> vector<16x16xf32>
    "tpu.trace_stop"() : () -> ()
    %cst_22 = arith.constant dense<0xFF800000> : vector<16xf32>
    %54 = vector.multi_reduction <maximumf>, %53, %cst_22 [1] : vector<16x16xf32> to vector<16xf32>
    %55 = vector.shape_cast %54 : vector<16xf32> to vector<16x1xf32>
    %56 = vector.broadcast %55 : vector<16x1xf32> to vector<16x16xf32>
    %57 = arith.subf %53, %56 : vector<16x16xf32>
    %58 = math.exp %57 : vector<16x16xf32>
    %59 = arith.truncf %58 : vector<16x16xf32> to vector<16x16xbf16>
    %cst_23 = arith.constant dense<0.000000e+00> : vector<16x32xf32>
    %60 = tpu.matmul %59, %52, %cst_23 {dimension_numbers = #tpu.dot_dimension_numbers<[1], [0], [0], [1], [0, 0, 1, 1], [], []>} : vector<16x16xbf16>, vector<16x32xbf16>, vector<16x32xf32> -> vector<16x32xf32>
    %cst_24 = arith.constant dense<0.000000e+00> : vector<16xf32>
    %61 = vector.multi_reduction <add>, %58, %cst_24 [1] : vector<16x16xf32> to vector<16xf32>
    %62 = vector.shape_cast %61 : vector<16xf32> to vector<16x1xf32>
    %63 = tpu.reciprocal %62 {approx = true} : vector<16x1xf32> -> vector<16x1xf32>
    %64 = vector.broadcast %63 : vector<16x1xf32> to vector<16x32xf32>
    %65 = arith.mulf %60, %64 : vector<16x32xf32>
    %66 = arith.truncf %65 : vector<16x32xf32> to vector<16x32xbf16>
    %c1 = arith.constant 1 : index
    %c0_25 = arith.constant 0 : index
    %c0_26 = arith.constant 0 : index
    %67 = vector.load %arg3[%c1, %c0_25, %c0_26] : memref<4x32x128xbf16, #tpu.memory_space<vmem>>, vector<1x32x128xbf16>
    %68 = vector.shape_cast %67 : vector<1x32x128xbf16> to vector<32x128xbf16>
    %cst_27 = arith.constant dense<0.000000e+00> : vector<16x128xf32>
    %69 = tpu.matmul %66, %68, %cst_27 {dimension_numbers = #tpu.dot_dimension_numbers<[1], [0], [0], [1], [0, 0, 1, 1], [], []>} : vector<16x32xbf16>, vector<32x128xbf16>, vector<16x128xf32> -> vector<16x128xf32>
    %70 = arith.addf %49, %69 : vector<16x128xf32>
    %71 = vector.extract_strided_slice %29 {offsets = [0, 64], sizes = [16, 32], strides = [1, 1]} : vector<16x384xbf16> to vector<16x32xbf16>
    %72 = vector.extract_strided_slice %29 {offsets = [0, 192], sizes = [16, 32], strides = [1, 1]} : vector<16x384xbf16> to vector<16x32xbf16>
    %73 = vector.extract_strided_slice %29 {offsets = [0, 320], sizes = [16, 32], strides = [1, 1]} : vector<16x384xbf16> to vector<16x32xbf16>
    "tpu.trace_start"() <{level = 10 : i32, message = "qd,kd->qk"}> : () -> ()
    %cst_28 = arith.constant dense<0.000000e+00> : vector<16x16xf32>
    %74 = tpu.matmul %71, %72, %cst_28 {dimension_numbers = #tpu.dot_dimension_numbers<[1], [1], [0], [0], [0, 0, 1, 0], [], []>} : vector<16x32xbf16>, vector<16x32xbf16>, vector<16x16xf32> -> vector<16x16xf32>
    "tpu.trace_stop"() : () -> ()
    %cst_29 = arith.constant dense<0xFF800000> : vector<16xf32>
    %75 = vector.multi_reduction <maximumf>, %74, %cst_29 [1] : vector<16x16xf32> to vector<16xf32>
    %76 = vector.shape_cast %75 : vector<16xf32> to vector<16x1xf32>
    %77 = vector.broadcast %76 : vector<16x1xf32> to vector<16x16xf32>
    %78 = arith.subf %74, %77 : vector<16x16xf32>
    %79 = math.exp %78 : vector<16x16xf32>
    %80 = arith.truncf %79 : vector<16x16xf32> to vector<16x16xbf16>
    %cst_30 = arith.constant dense<0.000000e+00> : vector<16x32xf32>
    %81 = tpu.matmul %80, %73, %cst_30 {dimension_numbers = #tpu.dot_dimension_numbers<[1], [0], [0], [1], [0, 0, 1, 1], [], []>} : vector<16x16xbf16>, vector<16x32xbf16>, vector<16x32xf32> -> vector<16x32xf32>
    %cst_31 = arith.constant dense<0.000000e+00> : vector<16xf32>
    %82 = vector.multi_reduction <add>, %79, %cst_31 [1] : vector<16x16xf32> to vector<16xf32>
    %83 = vector.shape_cast %82 : vector<16xf32> to vector<16x1xf32>
    %84 = tpu.reciprocal %83 {approx = true} : vector<16x1xf32> -> vector<16x1xf32>
    %85 = vector.broadcast %84 : vector<16x1xf32> to vector<16x32xf32>
    %86 = arith.mulf %81, %85 : vector<16x32xf32>
    %87 = arith.truncf %86 : vector<16x32xf32> to vector<16x32xbf16>
    %c2 = arith.constant 2 : index
    %c0_32 = arith.constant 0 : index
    %c0_33 = arith.constant 0 : index
    %88 = vector.load %arg3[%c2, %c0_32, %c0_33] : memref<4x32x128xbf16, #tpu.memory_space<vmem>>, vector<1x32x128xbf16>
    %89 = vector.shape_cast %88 : vector<1x32x128xbf16> to vector<32x128xbf16>
    %cst_34 = arith.constant dense<0.000000e+00> : vector<16x128xf32>
    %90 = tpu.matmul %87, %89, %cst_34 {dimension_numbers = #tpu.dot_dimension_numbers<[1], [0], [0], [1], [0, 0, 1, 1], [], []>} : vector<16x32xbf16>, vector<32x128xbf16>, vector<16x128xf32> -> vector<16x128xf32>
    %91 = arith.addf %70, %90 : vector<16x128xf32>
    %92 = vector.extract_strided_slice %29 {offsets = [0, 96], sizes = [16, 32], strides = [1, 1]} : vector<16x384xbf16> to vector<16x32xbf16>
    %93 = vector.extract_strided_slice %29 {offsets = [0, 224], sizes = [16, 32], strides = [1, 1]} : vector<16x384xbf16> to vector<16x32xbf16>
    %94 = vector.extract_strided_slice %29 {offsets = [0, 352], sizes = [16, 32], strides = [1, 1]} : vector<16x384xbf16> to vector<16x32xbf16>
    "tpu.trace_start"() <{level = 10 : i32, message = "qd,kd->qk"}> : () -> ()
    %cst_35 = arith.constant dense<0.000000e+00> : vector<16x16xf32>
    %95 = tpu.matmul %92, %93, %cst_35 {dimension_numbers = #tpu.dot_dimension_numbers<[1], [1], [0], [0], [0, 0, 1, 0], [], []>} : vector<16x32xbf16>, vector<16x32xbf16>, vector<16x16xf32> -> vector<16x16xf32>
    "tpu.trace_stop"() : () -> ()
    %cst_36 = arith.constant dense<0xFF800000> : vector<16xf32>
    %96 = vector.multi_reduction <maximumf>, %95, %cst_36 [1] : vector<16x16xf32> to vector<16xf32>
    %97 = vector.shape_cast %96 : vector<16xf32> to vector<16x1xf32>
    %98 = vector.broadcast %97 : vector<16x1xf32> to vector<16x16xf32>
    %99 = arith.subf %95, %98 : vector<16x16xf32>
    %100 = math.exp %99 : vector<16x16xf32>
    %101 = arith.truncf %100 : vector<16x16xf32> to vector<16x16xbf16>
    %cst_37 = arith.constant dense<0.000000e+00> : vector<16x32xf32>
    %102 = tpu.matmul %101, %94, %cst_37 {dimension_numbers = #tpu.dot_dimension_numbers<[1], [0], [0], [1], [0, 0, 1, 1], [], []>} : vector<16x16xbf16>, vector<16x32xbf16>, vector<16x32xf32> -> vector<16x32xf32>
    %cst_38 = arith.constant dense<0.000000e+00> : vector<16xf32>
    %103 = vector.multi_reduction <add>, %100, %cst_38 [1] : vector<16x16xf32> to vector<16xf32>
    %104 = vector.shape_cast %103 : vector<16xf32> to vector<16x1xf32>
    %105 = tpu.reciprocal %104 {approx = true} : vector<16x1xf32> -> vector<16x1xf32>
    %106 = vector.broadcast %105 : vector<16x1xf32> to vector<16x32xf32>
    %107 = arith.mulf %102, %106 : vector<16x32xf32>
    %108 = arith.truncf %107 : vector<16x32xf32> to vector<16x32xbf16>
    %c3 = arith.constant 3 : index
    %c0_39 = arith.constant 0 : index
    %c0_40 = arith.constant 0 : index
    %109 = vector.load %arg3[%c3, %c0_39, %c0_40] : memref<4x32x128xbf16, #tpu.memory_space<vmem>>, vector<1x32x128xbf16>
    %110 = vector.shape_cast %109 : vector<1x32x128xbf16> to vector<32x128xbf16>
    %cst_41 = arith.constant dense<0.000000e+00> : vector<16x128xf32>
    %111 = tpu.matmul %108, %110, %cst_41 {dimension_numbers = #tpu.dot_dimension_numbers<[1], [0], [0], [1], [0, 0, 1, 1], [], []>} : vector<16x32xbf16>, vector<32x128xbf16>, vector<16x128xf32> -> vector<16x128xf32>
    %112 = arith.addf %91, %111 : vector<16x128xf32>
    %113 = arith.addf %1, %112 : vector<16x128xf32>
    %c0_42 = arith.constant 0 : index
    %c0_43 = arith.constant 0 : index
    %114 = vector.load %arg10[%c0_42, %c0_43] : memref<1x128xf32, #tpu.memory_space<vmem>>, vector<1x128xf32>
    %c0_44 = arith.constant 0 : index
    %c0_45 = arith.constant 0 : index
    %115 = vector.load %arg11[%c0_44, %c0_45] : memref<1x128xf32, #tpu.memory_space<vmem>>, vector<1x128xf32>
    %cst_46 = arith.constant dense<0.000000e+00> : vector<16xf32>
    %116 = vector.multi_reduction <add>, %113, %cst_46 [1] : vector<16x128xf32> to vector<16xf32>
    %117 = vector.shape_cast %116 : vector<16xf32> to vector<16x1xf32>
    %cst_47 = arith.constant 1.280000e+02 : f32
    %118 = vector.broadcast %cst_47 : f32 to vector<16x1xf32>
    %119 = arith.divf %117, %118 : vector<16x1xf32>
    %120 = vector.broadcast %119 : vector<16x1xf32> to vector<16x128xf32>
    %121 = arith.subf %113, %120 : vector<16x128xf32>
    %122 = arith.mulf %121, %121 : vector<16x128xf32>
    %cst_48 = arith.constant dense<0.000000e+00> : vector<16xf32>
    %123 = vector.multi_reduction <add>, %122, %cst_48 [1] : vector<16x128xf32> to vector<16xf32>
    %124 = vector.shape_cast %123 : vector<16xf32> to vector<16x1xf32>
    %cst_49 = arith.constant 0.00787401571 : f32
    %125 = vector.broadcast %cst_49 : f32 to vector<16x1xf32>
    %126 = arith.mulf %124, %125 : vector<16x1xf32>
    %127 = vector.broadcast %119 : vector<16x1xf32> to vector<16x128xf32>
    %128 = arith.subf %113, %127 : vector<16x128xf32>
    %129 = vector.broadcast %114 : vector<1x128xf32> to vector<16x128xf32>
    %130 = arith.mulf %129, %128 : vector<16x128xf32>
    %131 = math.sqrt %126 : vector<16x1xf32>
    %cst_50 = arith.constant 9.99999997E-7 : f32
    %132 = vector.broadcast %cst_50 : f32 to vector<16x1xf32>
    %133 = arith.addf %131, %132 : vector<16x1xf32>
    %134 = vector.broadcast %133 : vector<16x1xf32> to vector<16x128xf32>
    %135 = arith.divf %130, %134 : vector<16x128xf32>
    %136 = vector.broadcast %115 : vector<1x128xf32> to vector<16x128xf32>
    %137 = arith.addf %135, %136 : vector<16x128xf32>
    %138 = arith.truncf %137 : vector<16x128xf32> to vector<16x128xbf16>
    %c0_51 = arith.constant 0 : index
    %c0_52 = arith.constant 0 : index
    %139 = vector.load %arg4[%c0_51, %c0_52] : memref<128x256xbf16, #tpu.memory_space<vmem>>, vector<128x256xbf16>
    %cst_53 = arith.constant dense<0.000000e+00> : vector<16x256xf32>
    %140 = tpu.matmul %138, %139, %cst_53 {dimension_numbers = #tpu.dot_dimension_numbers<[1], [0], [0], [1], [0, 0, 1, 1], [], []>} : vector<16x128xbf16>, vector<128x256xbf16>, vector<16x256xf32> -> vector<16x256xf32>
    %c0_54 = arith.constant 0 : index
    %c0_55 = arith.constant 0 : index
    %141 = vector.load %arg5[%c0_54, %c0_55] : memref<1x256xf32, #tpu.memory_space<vmem>>, vector<1x256xf32>
    %142 = vector.broadcast %141 : vector<1x256xf32> to vector<16x256xf32>
    %143 = arith.addf %140, %142 : vector<16x256xf32>
    %cst_56 = arith.constant 0.000000e+00 : f32
    %144 = vector.broadcast %cst_56 : f32 to vector<16x256xf32>
    %145 = arith.maximumf %143, %144 : vector<16x256xf32>
    %146 = arith.truncf %145 : vector<16x256xf32> to vector<16x256xbf16>
    %c0_57 = arith.constant 0 : index
    %c0_58 = arith.constant 0 : index
    %147 = vector.load %arg6[%c0_57, %c0_58] : memref<256x128xbf16, #tpu.memory_space<vmem>>, vector<256x128xbf16>
    %cst_59 = arith.constant dense<0.000000e+00> : vector<16x128xf32>
    %148 = tpu.matmul %146, %147, %cst_59 {dimension_numbers = #tpu.dot_dimension_numbers<[1], [0], [0], [1], [0, 0, 1, 1], [], []>} : vector<16x256xbf16>, vector<256x128xbf16>, vector<16x128xf32> -> vector<16x128xf32>
    %c0_60 = arith.constant 0 : index
    %c0_61 = arith.constant 0 : index
    %149 = vector.load %arg7[%c0_60, %c0_61] : memref<1x128xf32, #tpu.memory_space<vmem>>, vector<1x128xf32>
    %150 = vector.broadcast %149 : vector<1x128xf32> to vector<16x128xf32>
    %151 = arith.addf %148, %150 : vector<16x128xf32>
    %152 = arith.addf %113, %151 : vector<16x128xf32>
    %c0_62 = arith.constant 0 : index
    %c0_63 = arith.constant 0 : index
    %c0_64 = arith.constant 0 : index
    %153 = vector.load %arg12[%c0_62, %c0_63, %c0_64] : memref<1x16x128xf32, #tpu.memory_space<vmem>>, vector<1x16x128xf32>
    %154 = vector.shape_cast %153 : vector<1x16x128xf32> to vector<16x128xf32>
    %155 = vector.shape_cast %152 : vector<16x128xf32> to vector<1x16x128xf32>
    tpu.vector_store %arg12[%c0_62, %c0_63, %c0_64], %155 {strides = array<i32>} : memref<1x16x128xf32, #tpu.memory_space<vmem>>, vector<1x16x128xf32>,
    return
  }
  func.func @transform_0(%arg0: i32) -> (i32, i32, i32) {
    %c0_i32 = arith.constant 0 : i32
    %c0_i32_0 = arith.constant 0 : i32
    %c0_i32_1 = arith.constant 0 : i32
    return %arg0, %c0_i32, %c0_i32_0 : i32, i32, i32
  }
  func.func @transform_1(%arg0: i32) -> (i32, i32) {
    %c0_i32 = arith.constant 0 : i32
    %c0_i32_0 = arith.constant 0 : i32
    %c0_i32_1 = arith.constant 0 : i32
    return %c0_i32, %c0_i32_0 : i32, i32
  }
  func.func @transform_2(%arg0: i32) -> (i32, i32, i32) {
    %c0_i32 = arith.constant 0 : i32
    %c0_i32_0 = arith.constant 0 : i32
    %c0_i32_1 = arith.constant 0 : i32
    %c0_i32_2 = arith.constant 0 : i32
    return %c0_i32, %c0_i32_0, %c0_i32_1 : i32, i32, i32
  }
  func.func @transform_3(%arg0: i32) -> (i32, i32) {
    %c0_i32 = arith.constant 0 : i32
    %c0_i32_0 = arith.constant 0 : i32
    %c0_i32_1 = arith.constant 0 : i32
    return %c0_i32, %c0_i32_0 : i32, i32
  }
  func.func @transform_4(%arg0: i32) -> (i32, i32) {
    %c0_i32 = arith.constant 0 : i32
    %c0_i32_0 = arith.constant 0 : i32
    %c0_i32_1 = arith.constant 0 : i32
    return %c0_i32, %c0_i32_0 : i32, i32
  }
  func.func @transform_5(%arg0: i32) -> (i32, i32) {
    %c0_i32 = arith.constant 0 : i32
    %c0_i32_0 = arith.constant 0 : i32
    %c0_i32_1 = arith.constant 0 : i32
    return %c0_i32, %c0_i32_0 : i32, i32
  }
  func.func @transform_6(%arg0: i32) -> (i32, i32) {
    %c0_i32 = arith.constant 0 : i32
    %c0_i32_0 = arith.constant 0 : i32
    %c0_i32_1 = arith.constant 0 : i32
    return %c0_i32, %c0_i32_0 : i32, i32
  }
  func.func @transform_7(%arg0: i32) -> (i32, i32) {
    %c0_i32 = arith.constant 0 : i32
    %c0_i32_0 = arith.constant 0 : i32
    %c0_i32_1 = arith.constant 0 : i32
    return %c0_i32, %c0_i32_0 : i32, i32
  }
  func.func @transform_8(%arg0: i32) -> (i32, i32) {
    %c0_i32 = arith.constant 0 : i32
    %c0_i32_0 = arith.constant 0 : i32
    %c0_i32_1 = arith.constant 0 : i32
    return %c0_i32, %c0_i32_0 : i32, i32
  }
  func.func @transform_9(%arg0: i32) -> (i32, i32) {
    %c0_i32 = arith.constant 0 : i32
    %c0_i32_0 = arith.constant 0 : i32
    %c0_i32_1 = arith.constant 0 : i32
    return %c0_i32, %c0_i32_0 : i32, i32
  }
  func.func @transform_10(%arg0: i32) -> (i32, i32) {
    %c0_i32 = arith.constant 0 : i32
    %c0_i32_0 = arith.constant 0 : i32
    %c0_i32_1 = arith.constant 0 : i32
    return %c0_i32, %c0_i32_0 : i32, i32
  }
  func.func @transform_11(%arg0: i32) -> (i32, i32, i32) {
    %c0_i32 = arith.constant 0 : i32
    %c0_i32_0 = arith.constant 0 : i32
    %c0_i32_1 = arith.constant 0 : i32
    return %arg0, %c0_i32, %c0_i32_0 : i32, i32, i32
  }
}

</mosaic_0001>

<llo_original>
// kernel: tpu_custom_call.1
$region0: #{tpu_custom_call.1}
  #allocation0 [shape = 'u32[]', space=smem, size = 0x4, offset = 0x4, fixed_abs, tag = 'smem constant byte address 0x4 - core index']
  #allocation1 [shape = 'u32[72,128]{1,0:T(1,128)}', space=vmem, size = 0x9000, scoped, tag = 'internal scratch']
  %s0 = inlined_call_operand.hbm [shape: f32[2,16,128], index: 0, kind: input, shape index: {}]
  %s1 = inlined_call_operand.hbm [shape: bf16[128,384], index: 1, kind: input, shape index: {}]
  %s2 = inlined_call_operand.hbm [shape: bf16[4,32,128], index: 2, kind: input, shape index: {}]
  %s3 = inlined_call_operand.hbm [shape: bf16[128,256], index: 3, kind: input, shape index: {}]
  %s4 = inlined_call_operand.vmem [shape: f32[1,256], index: 4, kind: input, shape index: {}]
  %s5 = inlined_call_operand.hbm [shape: bf16[256,128], index: 5, kind: input, shape index: {}]
  %s6 = inlined_call_operand.vmem [shape: f32[1,128], index: 6, kind: input, shape index: {}]
  %s7 = inlined_call_operand.vmem [shape: f32[1,128], index: 7, kind: input, shape index: {}]
  %s8 = inlined_call_operand.vmem [shape: f32[1,128], index: 8, kind: input, shape index: {}]
  %s9 = inlined_call_operand.vmem [shape: f32[1,128], index: 9, kind: input, shape index: {}]
  %s10 = inlined_call_operand.vmem [shape: f32[1,128], index: 10, kind: input, shape index: {}]
  %s11 = inlined_call_operand.hbm [shape: f32[2,16,128], index: 11, kind: output, shape index: {}]
  %s12 = sld [smem:[#allocation0]]
  $region97: #{tpu_custom_call.1} parent=0
    _
  %s14 = ssub.s32 1, %s12
  %s15 = scalar_select 0, %s14, %s12
  $region1: #{tpu_custom_call.1} parent=0
    #allocation2 [shape = 'u8[16384]{0}', space=vmem, size = 0x4000, scoped, tag = 'input window, operand 0']
    #allocation3 [shape = 's32[2]{0}', space=sflag, size = 0x8, scoped, tag = 'scoped memory for tpu_custom_call.1']
    #allocation4 [shape = 's32[2]{0}', space=sflag, size = 0x8, scoped, tag = 'scoped memory for tpu_custom_call.1']
    #allocation5 [shape = 'u8[98304]{0}', space=vmem, size = 0x18000, scoped, tag = 'input window, operand 1, single buffered']
    #allocation6 [shape = 's32[1]{0}', space=sflag, size = 0x4, scoped, tag = 'scoped memory for tpu_custom_call.1']
    #allocation7 [shape = 'u8[32768]{0}', space=vmem, size = 0x8000, scoped, tag = 'input window, operand 2, single buffered']
    #allocation8 [shape = 'u8[65536]{0}', space=vmem, size = 0x10000, scoped, tag = 'input window, operand 3, single buffered']
    #allocation9 [shape = 's32[1]{0}', space=sflag, size = 0x4, scoped, tag = 'scoped memory for tpu_custom_call.1']
    #allocation10 [shape = 'u8[65536]{0}', space=vmem, size = 0x10000, scoped, tag = 'input window, operand 5, single buffered']
    #allocation11 [shape = 'u8[16384]{0}', space=vmem, size = 0x4000, scoped, tag = 'output window, operand 0']
    %16 = vsyncpa [#allocation3], 0
    %s17 = scalar_lea.sflag [#allocation3], 1
    %18 = vsyncpa %s17, 0
    %19 = vsyncpa [#allocation6], 0
    %20 = vsyncpa [#allocation9], 0
    %21 = vsyncpa [#allocation4], 0
    %s22 = scalar_lea.sflag [#allocation4], 1
    %23 = vsyncpa %s22, 0
    loop: start=0, step=1, limit=4
    $region2: #{tpu_custom_call.1} parent=1 // loop_pre_header
      _
    $region3: #{tpu_custom_call.1} parent=1 // loop_header
      %s25 = sphi 0, %s29
      %p26 = scmp.ge.s32.totalorder %s25, 4
      %s35 = sphi 0, %s37
      %s38 = sphi 0, %s35
      %s39 = sphi 0, %s38
      %s55 = sphi 0, %s39
      %s59 = sphi 0, %s59
      %s61 = sphi 0, %s59
      %s62 = sphi 0, %s61
      %s76 = sphi 0, %s62
      %s80 = sphi 0, %s80
      %s82 = sphi 0, %s80
      %s83 = sphi 0, %s82
      %s97 = sphi 0, %s83
      %s101 = sphi 0, %s101
      %s103 = sphi 0, %s101
      %s104 = sphi 0, %s103
      %s118 = sphi 0, %s104
      %s122 = sphi 0, %s122
      %s124 = sphi 0, %s122
      %s125 = sphi 0, %s124
      %s139 = sphi 0, %s125
      %s143 = sphi 0, %s143
      %s145 = sphi 0, %s143
      %s146 = sphi 0, %s145
      %s160 = sphi 0, %s146
      %s164 = sphi 0, %s164
      %s166 = sphi 0, %s164
      %s167 = sphi 0, %s166
      %s181 = sphi 0, %s167
      %s185 = sphi 0, %s185
      %s187 = sphi 0, %s185
      %s188 = sphi 0, %s187
      %s202 = sphi 0, %s188
      %s206 = sphi 0, %s206
      %s208 = sphi 0, %s206
      %s209 = sphi 0, %s208
      %s223 = sphi 0, %s209
      %s227 = sphi 0, %s227
      %s229 = sphi 0, %s227
      %s230 = sphi 0, %s229
      %s244 = sphi 0, %s230
      %s248 = sphi 0, %s248
      %s250 = sphi 0, %s248
      %s251 = sphi 0, %s250
      %s265 = sphi 0, %s251
      %s271 = sphi 0, %s273
      %s274 = sphi 0, %s271
      %s275 = sphi 0, %s274
      %s291 = sphi 0, %s275
    $region4: #{tpu_custom_call.1} parent=1 // loop_header_branch
      %28 = sbr.rel (%p26) target = $region8
    $region5: #{tpu_custom_call.1} parent=1 // loop_body
      %s30 = ssub.s32 %s25, 1
      %s31 = ssub.s32 %s25, 2
      %s32 = sadd.s32 %s25, 1
      %s33 = ssub.s32 %s25, %s32
      %p34 = scmp.eq.s32.totalorder %s33, 0
      %s36 = sadd.s32 %s35, 1
      %s37 = scalar_select %p34, %s35, %s36
      %p40 = pneg %p34
      %p41 = scmp.eq.s32.totalorder %s25, 1
      %p42 = por %p40, %p41
      %p43 = scmp.ne.s32.totalorder %s35, %s38
      %p44 = scmp.eq.s32.totalorder %s25, 0
      %p45 = por %p43, %p44
      %p46 = scmp.ne.s32.totalorder %s35, %s38
      %p47 = scmp.eq.s32.totalorder %s30, 1
      %p48 = por %p46, %p47
      %p49 = scmp.ne.s32.totalorder %s38, %s39
      %p50 = scmp.eq.s32.totalorder %s30, 0
      %p51 = por %p49, %p50
      %p52 = scmp.ne.s32.totalorder %s38, %s39
      %p53 = scmp.eq.s32.totalorder %s31, 1
      %p54 = por %p52, %p53
      %p56 = scmp.ne.s32.totalorder %s39, %s55
      %p57 = scmp.eq.s32.totalorder %s31, 0
      %p58 = por %p56, %p57
      %s60 = sadd.s32 %s59, 1
      %p63 = scmp.eq.s32.totalorder %s25, 1
      %p64 = scmp.ne.s32.totalorder %s59, %s61
      %p65 = scmp.eq.s32.totalorder %s25, 0
      %p66 = por %p64, %p65
      %p67 = scmp.ne.s32.totalorder %s59, %s61
      %p68 = scmp.eq.s32.totalorder %s30, 1
      %p69 = por %p67, %p68
      %p70 = scmp.ne.s32.totalorder %s61, %s62
      %p71 = scmp.eq.s32.totalorder %s30, 0
      %p72 = por %p70, %p71
      %p73 = scmp.ne.s32.totalorder %s61, %s62
      %p74 = scmp.eq.s32.totalorder %s31, 1
      %p75 = por %p73, %p74
      %p77 = scmp.ne.s32.totalorder %s62, %s76
      %p78 = scmp.eq.s32.totalorder %s31, 0
      %p79 = por %p77, %p78
      %s81 = sadd.s32 %s80, 1
      %p84 = scmp.eq.s32.totalorder %s25, 1
      %p85 = scmp.ne.s32.totalorder %s80, %s82
      %p86 = scmp.eq.s32.totalorder %s25, 0
      %p87 = por %p85, %p86
      %p88 = scmp.ne.s32.totalorder %s80, %s82
      %p89 = scmp.eq.s32.totalorder %s30, 1
      %p90 = por %p88, %p89
      %p91 = scmp.ne.s32.totalorder %s82, %s83
      %p92 = scmp.eq.s32.totalorder %s30, 0
      %p93 = por %p91, %p92
      %p94 = scmp.ne.s32.totalorder %s82, %s83
      %p95 = scmp.eq.s32.totalorder %s31, 1
      %p96 = por %p94, %p95
      %p98 = scmp.ne.s32.totalorder %s83, %s97
      %p99 = scmp.eq.s32.totalorder %s31, 0
      %p100 = por %p98, %p99
      %s102 = sadd.s32 %s101, 1
      %p105 = scmp.eq.s32.totalorder %s25, 1
      %p106 = scmp.ne.s32.totalorder %s101, %s103
      %p107 = scmp.eq.s32.totalorder %s25, 0
      %p108 = por %p106, %p107
      %p109 = scmp.ne.s32.totalorder %s101, %s103
      %p110 = scmp.eq.s32.totalorder %s30, 1
      %p111 = por %p109, %p110
      %p112 = scmp.ne.s32.totalorder %s103, %s104
      %p113 = scmp.eq.s32.totalorder %s30, 0
      %p114 = por %p112, %p113
      %p115 = scmp.ne.s32.totalorder %s103, %s104
      %p116 = scmp.eq.s32.totalorder %s31, 1
      %p117 = por %p115, %p116
      %p119 = scmp.ne.s32.totalorder %s104, %s118
      %p120 = scmp.eq.s32.totalorder %s31, 0
      %p121 = por %p119, %p120
      %s123 = sadd.s32 %s122, 1
      %p126 = scmp.eq.s32.totalorder %s25, 1
      %p127 = scmp.ne.s32.totalorder %s122, %s124
      %p128 = scmp.eq.s32.totalorder %s25, 0
      %p129 = por %p127, %p128
      %p130 = scmp.ne.s32.totalorder %s122, %s124
      %p131 = scmp.eq.s32.totalorder %s30, 1
      %p132 = por %p130, %p131
      %p133 = scmp.ne.s32.totalorder %s124, %s125
      %p134 = scmp.eq.s32.totalorder %s30, 0
      %p135 = por %p133, %p134
      %p136 = scmp.ne.s32.totalorder %s124, %s125
      %p137 = scmp.eq.s32.totalorder %s31, 1
      %p138 = por %p136, %p137
      %p140 = scmp.ne.s32.totalorder %s125, %s139
      %p141 = scmp.eq.s32.totalorder %s31, 0
      %p142 = por %p140, %p141
      %s144 = sadd.s32 %s143, 1
      %p147 = scmp.eq.s32.totalorder %s25, 1
      %p148 = scmp.ne.s32.totalorder %s143, %s145
      %p149 = scmp.eq.s32.totalorder %s25, 0
      %p150 = por %p148, %p149
      %p151 = scmp.ne.s32.totalorder %s143, %s145
      %p152 = scmp.eq.s32.totalorder %s30, 1
      %p153 = por %p151, %p152
      %p154 = scmp.ne.s32.totalorder %s145, %s146
      %p155 = scmp.eq.s32.totalorder %s30, 0
      %p156 = por %p154, %p155
      %p157 = scmp.ne.s32.totalorder %s145, %s146
      %p158 = scmp.eq.s32.totalorder %s31, 1
      %p159 = por %p157, %p158
      %p161 = scmp.ne.s32.totalorder %s146, %s160
      %p162 = scmp.eq.s32.totalorder %s31, 0
      %p163 = por %p161, %p162
      %s165 = sadd.s32 %s164, 1
      %p168 = scmp.eq.s32.totalorder %s25, 1
      %p169 = scmp.ne.s32.totalorder %s164, %s166
      %p170 = scmp.eq.s32.totalorder %s25, 0
      %p171 = por %p169, %p170
      %p172 = scmp.ne.s32.totalorder %s164, %s166
      %p173 = scmp.eq.s32.totalorder %s30, 1
      %p174 = por %p172, %p173
      %p175 = scmp.ne.s32.totalorder %s166, %s167
      %p176 = scmp.eq.s32.totalorder %s30, 0
      %p177 = por %p175, %p176
      %p178 = scmp.ne.s32.totalorder %s166, %s167
      %p179 = scmp.eq.s32.totalorder %s31, 1
      %p180 = por %p178, %p179
      %p182 = scmp.ne.s32.totalorder %s167, %s181
      %p183 = scmp.eq.s32.totalorder %s31, 0
      %p184 = por %p182, %p183
      %s186 = sadd.s32 %s185, 1
      %p189 = scmp.eq.s32.totalorder %s25, 1
      %p190 = scmp.ne.s32.totalorder %s185, %s187
      %p191 = scmp.eq.s32.totalorder %s25, 0
      %p192 = por %p190, %p191
      %p193 = scmp.ne.s32.totalorder %s185, %s187
      %p194 = scmp.eq.s32.totalorder %s30, 1
      %p195 = por %p193, %p194
      %p196 = scmp.ne.s32.totalorder %s187, %s188
      %p197 = scmp.eq.s32.totalorder %s30, 0
      %p198 = por %p196, %p197
      %p199 = scmp.ne.s32.totalorder %s187, %s188
      %p200 = scmp.eq.s32.totalorder %s31, 1
      %p201 = por %p199, %p200
      %p203 = scmp.ne.s32.totalorder %s188, %s202
      %p204 = scmp.eq.s32.totalorder %s31, 0
      %p205 = por %p203, %p204
      %s207 = sadd.s32 %s206, 1
      %p210 = scmp.eq.s32.totalorder %s25, 1
      %p211 = scmp.ne.s32.totalorder %s206, %s208
      %p212 = scmp.eq.s32.totalorder %s25, 0
      %p213 = por %p211, %p212
      %p214 = scmp.ne.s32.totalorder %s206, %s208
      %p215 = scmp.eq.s32.totalorder %s30, 1
      %p216 = por %p214, %p215
      %p217 = scmp.ne.s32.totalorder %s208, %s209
      %p218 = scmp.eq.s32.totalorder %s30, 0
      %p219 = por %p217, %p218
      %p220 = scmp.ne.s32.totalorder %s208, %s209
      %p221 = scmp.eq.s32.totalorder %s31, 1
      %p222 = por %p220, %p221
      %p224 = scmp.ne.s32.totalorder %s209, %s223
      %p225 = scmp.eq.s32.totalorder %s31, 0
      %p226 = por %p224, %p225
      %s228 = sadd.s32 %s227, 1
      %p231 = scmp.eq.s32.totalorder %s25, 1
      %p232 = scmp.ne.s32.totalorder %s227, %s229
      %p233 = scmp.eq.s32.totalorder %s25, 0
      %p234 = por %p232, %p233
      %p235 = scmp.ne.s32.totalorder %s227, %s229
      %p236 = scmp.eq.s32.totalorder %s30, 1
      %p237 = por %p235, %p236
      %p238 = scmp.ne.s32.totalorder %s229, %s230
      %p239 = scmp.eq.s32.totalorder %s30, 0
      %p240 = por %p238, %p239
      %p241 = scmp.ne.s32.totalorder %s229, %s230
      %p242 = scmp.eq.s32.totalorder %s31, 1
      %p243 = por %p241, %p242
      %p245 = scmp.ne.s32.totalorder %s230, %s244
      %p246 = scmp.eq.s32.totalorder %s31, 0
      %p247 = por %p245, %p246
      %s249 = sadd.s32 %s248, 1
      %p252 = scmp.eq.s32.totalorder %s25, 1
      %p253 = scmp.ne.s32.totalorder %s248, %s250
      %p254 = scmp.eq.s32.totalorder %s25, 0
      %p255 = por %p253, %p254
      %p256 = scmp.ne.s32.totalorder %s248, %s250
      %p257 = scmp.eq.s32.totalorder %s30, 1
      %p258 = por %p256, %p257
      %p259 = scmp.ne.s32.totalorder %s250, %s251
      %p260 = scmp.eq.s32.totalorder %s30, 0
      %p261 = por %p259, %p260
      %p262 = scmp.ne.s32.totalorder %s250, %s251
      %p263 = scmp.eq.s32.totalorder %s31, 1
      %p264 = por %p262, %p263
      %p266 = scmp.ne.s32.totalorder %s251, %s265
      %p267 = scmp.eq.s32.totalorder %s31, 0
      %p268 = por %p266, %p267
      %s269 = ssub.s32 %s25, %s32
      %p270 = scmp.eq.s32.totalorder %s269, 0
      %s272 = sadd.s32 %s271, 1
      %s273 = scalar_select %p270, %s271, %s272
      %p276 = pneg %p270
      %p277 = scmp.eq.s32.totalorder %s25, 1
      %p278 = por %p276, %p277
      %p279 = scmp.ne.s32.totalorder %s271, %s274
      %p280 = scmp.eq.s32.totalorder %s25, 0
      %p281 = por %p279, %p280
      %p282 = scmp.ne.s32.totalorder %s271, %s274
      %p283 = scmp.eq.s32.totalorder %s30, 1
      %p284 = por %p282, %p283
      %p285 = scmp.ne.s32.totalorder %s274, %s275
      %p286 = scmp.eq.s32.totalorder %s30, 0
      %p287 = por %p285, %p286
      %p288 = scmp.ne.s32.totalorder %s274, %s275
      %p289 = scmp.eq.s32.totalorder %s31, 1
      %p290 = por %p288, %p289
      %p292 = scmp.ne.s32.totalorder %s275, %s291
      %p293 = scmp.eq.s32.totalorder %s31, 0
      %p294 = por %p292, %p293
      %p295 = scmp.le.s32.totalorder 1, %s25
      %p296 = scmp.lt.s32.totalorder %s25, 3
      %p297 = pnand %p295, %p296
      %p298 = pneg %p297
      // Predicated region
      $region9: #{tpu_custom_call.1} parent=5 // pred_check
        _
      $region10: #{tpu_custom_call.1} parent=5 // pred_check_branch
        %300 = sbr.rel (%p297) target = $region12
      $region11: #{tpu_custom_call.1} parent=5 // pred_region
        %s301 = ssub.s32 %s25, 1
        // Predicated region
        $region13: #{tpu_custom_call.1} parent=11 // pred_check
          %p302 = pneg %p72
        $region14: #{tpu_custom_call.1} parent=11 // pred_check_branch
          %304 = sbr.rel (%p302) target = $region16
        $region15: #{tpu_custom_call.1} parent=11 // pred_region
          %306 = vsyncadd [#allocation6], 0
          %s307 = sshll.u32 %s1, 4
          %s308 = int_to_ptr.hbm [resolvable:$true] %s307
          %s309 = sshll.u32 [#allocation5], 4
          %s310 = int_to_ptr.vmem [resolvable:$true] %s309
          %315 = dma.hbm_to_vmem [thread:$0]  %s308, 3072, %s310, [#allocation6], 192, 192, 12
        $region16: #{tpu_custom_call.1} parent=11 // pred_fallthru
          _
        // Predicated region
        $region17: #{tpu_custom_call.1} parent=11 // pred_check
          %p316 = pneg %p93
        $region18: #{tpu_custom_call.1} parent=11 // pred_check_branch
          %318 = sbr.rel (%p316) target = $region20
        $region19: #{tpu_custom_call.1} parent=11 // pred_region
          %320 = vsyncadd [#allocation6], 0
          %s321 = sshll.u32 %s2, 4
          %s322 = int_to_ptr.hbm [resolvable:$true] %s321
          %s323 = sshll.u32 [#allocation7], 4
          %s324 = int_to_ptr.vmem [resolvable:$true] %s323
          %329 = dma.hbm_to_vmem [thread:$0]  %s322, 1024, %s324, [#allocation6], 64, 64, 4
        $region20: #{tpu_custom_call.1} parent=11 // pred_fallthru
          _
        // Predicated region
        $region21: #{tpu_custom_call.1} parent=11 // pred_check
          %p330 = pneg %p114
        $region22: #{tpu_custom_call.1} parent=11 // pred_check_branch
          %332 = sbr.rel (%p330) target = $region24
        $region23: #{tpu_custom_call.1} parent=11 // pred_region
          %334 = vsyncadd [#allocation9], 0
          %s335 = sshll.u32 %s3, 4
          %s336 = int_to_ptr.hbm [resolvable:$true] %s335
          %s337 = sshll.u32 [#allocation8], 4
          %s338 = int_to_ptr.vmem [resolvable:$true] %s337
          %343 = dma.hbm_to_vmem [thread:$0]  %s336, 2048, %s338, [#allocation9], 128, 128, 8
        $region24: #{tpu_custom_call.1} parent=11 // pred_fallthru
          _
        // Predicated region
        $region25: #{tpu_custom_call.1} parent=11 // pred_check
          %p344 = pneg %p135
        $region26: #{tpu_custom_call.1} parent=11 // pred_check_branch
          %346 = sbr.rel (%p344) target = $region28
        $region27: #{tpu_custom_call.1} parent=11 // pred_region
          _
        $region28: #{tpu_custom_call.1} parent=11 // pred_fallthru
          _
        // Predicated region
        $region29: #{tpu_custom_call.1} parent=11 // pred_check
          %p347 = pneg %p156
        $region30: #{tpu_custom_call.1} parent=11 // pred_check_branch
          %349 = sbr.rel (%p347) target = $region32
        $region31: #{tpu_custom_call.1} parent=11 // pred_region
          %351 = vsyncadd [#allocation9], 0
          %s352 = sshll.u32 %s5, 4
          %s353 = int_to_ptr.hbm [resolvable:$true] %s352
          %s354 = sshll.u32 [#allocation10], 4
          %s355 = int_to_ptr.vmem [resolvable:$true] %s354
          %360 = dma.hbm_to_vmem [thread:$0]  %s353, 2048, %s355, [#allocation9], 64, 64, 4
        $region32: #{tpu_custom_call.1} parent=11 // pred_fallthru
          _
        // Predicated region
        $region33: #{tpu_custom_call.1} parent=11 // pred_check
          %p361 = pneg %p177
        $region34: #{tpu_custom_call.1} parent=11 // pred_check_branch
          %363 = sbr.rel (%p361) target = $region36
        $region35: #{tpu_custom_call.1} parent=11 // pred_region
          _
        $region36: #{tpu_custom_call.1} parent=11 // pred_fallthru
          _
        // Predicated region
        $region37: #{tpu_custom_call.1} parent=11 // pred_check
          %p364 = pneg %p198
        $region38: #{tpu_custom_call.1} parent=11 // pred_check_branch
          %366 = sbr.rel (%p364) target = $region40
        $region39: #{tpu_custom_call.1} parent=11 // pred_region
          _
        $region40: #{tpu_custom_call.1} parent=11 // pred_fallthru
          _
        // Predicated region
        $region41: #{tpu_custom_call.1} parent=11 // pred_check
          %p367 = pneg %p219
        $region42: #{tpu_custom_call.1} parent=11 // pred_check_branch
          %369 = sbr.rel (%p367) target = $region44
        $region43: #{tpu_custom_call.1} parent=11 // pred_region
          _
        $region44: #{tpu_custom_call.1} parent=11 // pred_fallthru
          _
        // Predicated region
        $region45: #{tpu_custom_call.1} parent=11 // pred_check
          %p370 = pneg %p240
        $region46: #{tpu_custom_call.1} parent=11 // pred_check_branch
          %372 = sbr.rel (%p370) target = $region48
        $region47: #{tpu_custom_call.1} parent=11 // pred_region
          _
        $region48: #{tpu_custom_call.1} parent=11 // pred_fallthru
          _
        // Predicated region
        $region49: #{tpu_custom_call.1} parent=11 // pred_check
          %p373 = pneg %p261
        $region50: #{tpu_custom_call.1} parent=11 // pred_check_branch
          %375 = sbr.rel (%p373) target = $region52
        $region51: #{tpu_custom_call.1} parent=11 // pred_region
          _
        $region52: #{tpu_custom_call.1} parent=11 // pred_fallthru
          _
      $region12: #{tpu_custom_call.1} parent=5 // pred_fallthru
        _
      %p376 = scmp.lt.s32.totalorder %s25, 2
      // Predicated region
      $region53: #{tpu_custom_call.1} parent=5 // pred_check
        %p377 = pneg %p376
      $region54: #{tpu_custom_call.1} parent=5 // pred_check_branch
        %379 = sbr.rel (%p377) target = $region56
      $region55: #{tpu_custom_call.1} parent=5 // pred_region
        // Predicated region
        $region57: #{tpu_custom_call.1} parent=55 // pred_check
          %p380 = pneg %p45
        $region58: #{tpu_custom_call.1} parent=55 // pred_check_branch
          %382 = sbr.rel (%p380) target = $region60
        $region59: #{tpu_custom_call.1} parent=55 // pred_region
          %s383 = sand.u32 %s35, 1
          %s384 = scalar_lea.sflag [#allocation3], %s383
          %s385 = sand.u32 %s35, 1
          %s386 = smul.addr %s385, 16
          %s387 = scalar_lea.vmem [#allocation2], %s386
          %389 = vsyncadd %s384, 0
          %s390 = smul.addr %s25, 2
          %s391 = smul.addr %s390, 8
          %s392 = scalar_lea.hbm %s0, %s391
          %s393 = sshll.u32 %s392, 4
          %s394 = int_to_ptr.hbm [resolvable:$true] %s393
          %s395 = sshll.u32 %s387, 4
          %s396 = int_to_ptr.vmem [resolvable:$true] %s395
          %401 = dma.hbm_to_vmem [thread:$0]  %s394, 256, %s396, %s384, 128, 128, 8
        $region60: #{tpu_custom_call.1} parent=55 // pred_fallthru
          _
      $region56: #{tpu_custom_call.1} parent=5 // pred_fallthru
        _
      %p402 = scmp.le.s32.totalorder 1, %s25
      %p403 = scmp.lt.s32.totalorder %s25, 3
      %p404 = pnand %p402, %p403
      %p405 = pneg %p404
      // Predicated region
      $region61: #{tpu_custom_call.1} parent=5 // pred_check
        _
      $region62: #{tpu_custom_call.1} parent=5 // pred_check_branch
        %407 = sbr.rel (%p404) target = $region64
      $region63: #{tpu_custom_call.1} parent=5 // pred_region
        %s408 = ssub.s32 %s25, 1
        %s409 = sand.u32 %s38, 1
        %s410 = scalar_lea.sflag [#allocation3], %s409
        %s411 = sand.u32 %s38, 1
        %s412 = smul.addr %s411, 16
        %s413 = scalar_lea.vmem [#allocation2], %s412
        // Predicated region
        $region65: #{tpu_custom_call.1} parent=63 // pred_check
          %p414 = pneg %p51
        $region66: #{tpu_custom_call.1} parent=63 // pred_check_branch
          %416 = sbr.rel (%p414) target = $region68
        $region67: #{tpu_custom_call.1} parent=63 // pred_region
          %418 = dma.done %s410, 256
        $region68: #{tpu_custom_call.1} parent=63 // pred_fallthru
          _
        // Predicated region
        $region69: #{tpu_custom_call.1} parent=63 // pred_check
          %p419 = pneg %p72
        $region70: #{tpu_custom_call.1} parent=63 // pred_check_branch
          %421 = sbr.rel (%p419) target = $region72
        $region71: #{tpu_custom_call.1} parent=63 // pred_region
          %423 = dma.done [#allocation6], 3072
        $region72: #{tpu_custom_call.1} parent=63 // pred_fallthru
          _
        // Predicated region
        $region73: #{tpu_custom_call.1} parent=63 // pred_check
          %p424 = pneg %p93
        $region74: #{tpu_custom_call.1} parent=63 // pred_check_branch
          %426 = sbr.rel (%p424) target = $region76
        $region75: #{tpu_custom_call.1} parent=63 // pred_region
          %428 = dma.done [#allocation6], 1024
        $region76: #{tpu_custom_call.1} parent=63 // pred_fallthru
          _
        // Predicated region
        $region77: #{tpu_custom_call.1} parent=63 // pred_check
          %p429 = pneg %p114
        $region78: #{tpu_custom_call.1} parent=63 // pred_check_branch
          %431 = sbr.rel (%p429) target = $region80
        $region79: #{tpu_custom_call.1} parent=63 // pred_region
          %433 = dma.done [#allocation9], 2048
        $region80: #{tpu_custom_call.1} parent=63 // pred_fallthru
          _
        // Predicated region
        $region81: #{tpu_custom_call.1} parent=63 // pred_check
          %p434 = pneg %p156
        $region82: #{tpu_custom_call.1} parent=63 // pred_check_branch
          %436 = sbr.rel (%p434) target = $region84
        $region83: #{tpu_custom_call.1} parent=63 // pred_region
          %438 = dma.done [#allocation9], 2048
        $region84: #{tpu_custom_call.1} parent=63 // pred_fallthru
          _
        %s439 = sand.u32 %s38, 1
        %s440 = scalar_lea.sflag [#allocation3], %s439
        %s441 = sand.u32 %s38, 1
        %s442 = smul.addr %s441, 16
        %s443 = scalar_lea.vmem [#allocation2], %s442
        %p444 = pneg %p51
        %p445 = pneg %p48
        %p446 = pneg %p72
        %p447 = pneg %p69
        %p448 = pneg %p93
        %p449 = pneg %p90
        %p450 = pneg %p114
        %p451 = pneg %p111
        %p452 = pneg %p135
        %p453 = pneg %p132
        %p454 = pneg %p156
        %p455 = pneg %p153
        %p456 = pneg %p177
        %p457 = pneg %p174
        %p458 = pneg %p198
        %p459 = pneg %p195
        %p460 = pneg %p219
        %p461 = pneg %p216
        %p462 = pneg %p240
        %p463 = pneg %p237
        %p464 = pneg %p261
        %p465 = pneg %p258
        %p466 = pneg %p287
        %p467 = pneg %p284
        %s468 = sand.u32 %s274, 1
        %s469 = scalar_lea.sflag [#allocation4], %s468
        %s470 = sand.u32 %s274, 1
        %s471 = smul.addr %s470, 16
        %s472 = scalar_lea.vmem [#allocation11], %s471
        %v474 = vld [vmem:[%s413] sm:$0xff]
        %v475 = vld [vmem:[%s413 + $0x8] sm:$0xff]
        %v476 = vld [vmem:[%s7] sm:$0x1]
        %v477 = vld [vmem:[%s8] sm:$0x1]
        %478 = vadd.xlane.f32.xlu0 %v474
        %v479 = vpop.xlane.xlu0 %478
        %480 = vadd.xlane.f32.xlu0 %v475
        %v481 = vpop.xlane.xlu0 %480
        %v482 = vrcp.pop 128.0
        %v483 = vmul.f32 128.0, %v482
        %v484 = vsub.f32 1.0, %v483
        %v485 = vmul.f32 %v482, %v484
        %v486 = vadd.f32 %v482, %v485
        %vm487 = vweird.f32 %v482
        %v488 = vsel %vm487, %v482, %v486
        %v489 = vmul.f32 %v479, %v488
        %v490 = vmul.f32 %v481, %v488
        %v491 = vsub.f32 %v474, %v489
        %v492 = vsub.f32 %v475, %v490
        %v493 = vmul.f32 %v491, %v491
        %v494 = vmul.f32 %v492, %v492
        %495 = vadd.xlane.f32.xlu0 %v493
        %v496 = vpop.xlane.xlu0 %495
        %497 = vadd.xlane.f32.xlu0 %v494
        %v498 = vpop.xlane.xlu0 %497
        %v499 = vmul.f32 %v496, 0.007874016
        %v500 = vmul.f32 %v498, 0.007874016
        %v502 = vperm.slane %v476, 0
        %v504 = vmul.f32 %v502, %v491
        %v505 = vmul.f32 %v502, %v492
        %v506 = vrsqrt.pop %v499
        %v507 = vmul.f32 %v506, %v499
        %v508 = vmul.f32 %v507, %v506
        %v509 = vmul.f32 0.5, %v508
        %v510 = vsub.f32 1.5, %v509
        %v511 = vmul.f32 %v506, %v510
        %v512 = vmul.f32 %v499, %v511
        %vm513 = vcmp.eq.f32.partialorder %v499, inf
        %v514 = vsel %vm513, %v499, %v512
        %vm515 = vcmp.eq.f32.partialorder %v499, 0.0
        %v516 = vand.u32 %v499, 2147483648
        %v517 = vsel %vm515, %v516, %v514
        %v518 = vrsqrt.pop %v500
        %v519 = vmul.f32 %v518, %v500
        %v520 = vmul.f32 %v519, %v518
        %v521 = vmul.f32 0.5, %v520
        %v522 = vsub.f32 1.5, %v521
        %v523 = vmul.f32 %v518, %v522
        %v524 = vmul.f32 %v500, %v523
        %vm525 = vcmp.eq.f32.partialorder %v500, inf
        %v526 = vsel %vm525, %v500, %v524
        %vm527 = vcmp.eq.f32.partialorder %v500, 0.0
        %v528 = vand.u32 %v500, 2147483648
        %v529 = vsel %vm527, %v528, %v526
        %v530 = vadd.f32 %v517, 1e-06
        %v531 = vadd.f32 %v529, 1e-06
        %v532 = vrcp.pop %v530
        %v533 = vmul.f32 %v530, %v532
        %v534 = vsub.f32 1.0, %v533
        %v535 = vmul.f32 %v532, %v534
        %v536 = vadd.f32 %v532, %v535
        %vm537 = vweird.f32 %v530
        %vm538 = vweird.f32 %v532
        %vm539 = vmor %vm537, %vm538
        %v540 = vsel %vm539, %v532, %v536
        %v541 = vand.u32 2147483647, %v530
        %vm542 = vcmp.eq.f32.partialorder %v541, 8.507059e+37
        %v543 = vand.u32 %v530, 2147483648
        %v544 = vor.u32 1.1754944e-38, %v543
        %v545 = vsel %vm542, %v544, %v540
        %v546 = vmul.f32 %v504, %v545
        %v547 = vrcp.pop %v531
        %v548 = vmul.f32 %v531, %v547
        %v549 = vsub.f32 1.0, %v548
        %v550 = vmul.f32 %v547, %v549
        %v551 = vadd.f32 %v547, %v550
        %vm552 = vweird.f32 %v531
        %vm553 = vweird.f32 %v547
        %vm554 = vmor %vm552, %vm553
        %v555 = vsel %vm554, %v547, %v551
        %v556 = vand.u32 2147483647, %v531
        %vm557 = vcmp.eq.f32.partialorder %v556, 8.507059e+37
        %v558 = vand.u32 %v531, 2147483648
        %v559 = vor.u32 1.1754944e-38, %v558
        %v560 = vsel %vm557, %v559, %v555
        %v561 = vmul.f32 %v505, %v560
        %v563 = vperm.slane %v477, 0
        %v565 = vadd.f32 %v546, %v563
        %v566 = vadd.f32 %v561, %v563
        %v567 = vpack.c.bf16 %v566, %v565
        %v568 = vld [vmem:[#allocation5] sm:$0xff]
        %v569 = vld [vmem:[#allocation5 + $0x8] sm:$0xf]
        %v570 = vld [vmem:[#allocation5 + $0xc] sm:$0xff]
        %v571 = vld [vmem:[#allocation5 + $0x14] sm:$0xf]
        %v572 = vld [vmem:[#allocation5 + $0x18] sm:$0xff]
        %v573 = vld [vmem:[#allocation5 + $0x20] sm:$0xf]
        %v574 = vld [vmem:[#allocation5 + $0x24] sm:$0xff]
        %v575 = vld [vmem:[#allocation5 + $0x2c] sm:$0xf]
        %v576 = vld [vmem:[#allocation5 + $0x30] sm:$0xff]
        %v577 = vld [vmem:[#allocation5 + $0x38] sm:$0xf]
        %v578 = vld [vmem:[#allocation5 + $0x3c] sm:$0xff]
        %v579 = vld [vmem:[#allocation5 + $0x44] sm:$0xf]
        %v580 = vld [vmem:[#allocation5 + $0x48] sm:$0xff]
        %v581 = vld [vmem:[#allocation5 + $0x50] sm:$0xf]
        %v582 = vld [vmem:[#allocation5 + $0x54] sm:$0xff]
        %v583 = vld [vmem:[#allocation5 + $0x5c] sm:$0xf]
        %v584 = vld [vmem:[#allocation5 + $0x60] sm:$0xff]
        %v585 = vld [vmem:[#allocation5 + $0x68] sm:$0xf]
        %v586 = vld [vmem:[#allocation5 + $0x6c] sm:$0xff]
        %v587 = vld [vmem:[#allocation5 + $0x74] sm:$0xf]
        %v588 = vld [vmem:[#allocation5 + $0x78] sm:$0xff]
        %v589 = vld [vmem:[#allocation5 + $0x80] sm:$0xf]
        %v590 = vld [vmem:[#allocation5 + $0x84] sm:$0xff]
        %v591 = vld [vmem:[#allocation5 + $0x8c] sm:$0xf]
        %v592 = vld [vmem:[#allocation5 + $0x90] sm:$0xff]
        %v593 = vld [vmem:[#allocation5 + $0x98] sm:$0xf]
        %v594 = vld [vmem:[#allocation5 + $0x9c] sm:$0xff]
        %v595 = vld [vmem:[#allocation5 + $0xa4] sm:$0xf]
        %v596 = vld [vmem:[#allocation5 + $0xa8] sm:$0xff]
        %v597 = vld [vmem:[#allocation5 + $0xb0] sm:$0xf]
        %v598 = vld [vmem:[#allocation5 + $0xb4] sm:$0xff]
        %v599 = vld [vmem:[#allocation5 + $0xbc] sm:$0xf]
        %v632 = vunpack.c.l.b16 %v568
        %v633 = vunpack.c.h.b16 %v568
        %v634 = vunpack.c.l.b16 %v569
        %v635 = vunpack.c.l.b16 %v570
        %v636 = vunpack.c.h.b16 %v570
        %v637 = vunpack.c.l.b16 %v571
        %v638 = vunpack.c.l.b16 %v572
        %v639 = vunpack.c.h.b16 %v572
        %v640 = vunpack.c.l.b16 %v573
        %v641 = vunpack.c.l.b16 %v574
        %v642 = vunpack.c.h.b16 %v574
        %v643 = vunpack.c.l.b16 %v575
        %v644 = vunpack.c.l.b16 %v576
        %v645 = vunpack.c.h.b16 %v576
        %v646 = vunpack.c.l.b16 %v577
        %v647 = vunpack.c.l.b16 %v578
        %v648 = vunpack.c.h.b16 %v578
        %v649 = vunpack.c.l.b16 %v579
        %v650 = vunpack.c.l.b16 %v580
        %v651 = vunpack.c.h.b16 %v580
        %v652 = vunpack.c.l.b16 %v581
        %v653 = vunpack.c.l.b16 %v582
        %v654 = vunpack.c.h.b16 %v582
        %v655 = vunpack.c.l.b16 %v583
        %v656 = vunpack.c.l.b16 %v584
        %v657 = vunpack.c.h.b16 %v584
        %v658 = vunpack.c.l.b16 %v585
        %v659 = vunpack.c.l.b16 %v586
        %v660 = vunpack.c.h.b16 %v586
        %v661 = vunpack.c.l.b16 %v587
        %v662 = vunpack.c.l.b16 %v588
        %v663 = vunpack.c.h.b16 %v588
        %v664 = vunpack.c.l.b16 %v589
        %v665 = vunpack.c.l.b16 %v590
        %v666 = vunpack.c.h.b16 %v590
        %v667 = vunpack.c.l.b16 %v591
        %v668 = vunpack.c.l.b16 %v592
        %v669 = vunpack.c.h.b16 %v592
        %v670 = vunpack.c.l.b16 %v593
        %v671 = vunpack.c.l.b16 %v594
        %v672 = vunpack.c.h.b16 %v594
        %v673 = vunpack.c.l.b16 %v595
        %v674 = vunpack.c.l.b16 %v596
        %v675 = vunpack.c.h.b16 %v596
        %v676 = vunpack.c.l.b16 %v597
        %v677 = vunpack.c.l.b16 %v598
        %v678 = vunpack.c.h.b16 %v598
        %v679 = vunpack.c.l.b16 %v599
        %v680 = vpack.c.b16 %v635, %v632
        %v681 = vpack.c.b16 %v636, %v633
        %v682 = vpack.c.b16 %v637, %v634
        %v683 = vpack.c.b16 %v641, %v638
        %v684 = vpack.c.b16 %v642, %v639
        %v685 = vpack.c.b16 %v643, %v640
        %v686 = vpack.c.b16 %v647, %v644
        %v687 = vpack.c.b16 %v648, %v645
        %v688 = vpack.c.b16 %v649, %v646
        %v689 = vpack.c.b16 %v653, %v650
        %v690 = vpack.c.b16 %v654, %v651
        %v691 = vpack.c.b16 %v655, %v652
        %v692 = vpack.c.b16 %v659, %v656
        %v693 = vpack.c.b16 %v660, %v657
        %v694 = vpack.c.b16 %v661, %v658
        %v695 = vpack.c.b16 %v665, %v662
        %v696 = vpack.c.b16 %v666, %v663
        %v697 = vpack.c.b16 %v667, %v664
        %v698 = vpack.c.b16 %v671, %v668
        %v699 = vpack.c.b16 %v672, %v669
        %v700 = vpack.c.b16 %v673, %v670
        %v701 = vpack.c.b16 %v677, %v674
        %v702 = vpack.c.b16 %v678, %v675
        %v703 = vpack.c.b16 %v679, %v676
        %728 = vmatpush.bf16.msra.mxu0 %v701
        %729 = vmatpush.bf16.msra.mxu0 %v698
        %730 = vmatpush.bf16.msra.mxu0 %v695
        %731 = vmatpush.bf16.msra.mxu0 %v692
        %732 = vmatpush.bf16.msra.mxu0 %v689
        %733 = vmatpush.bf16.msra.mxu0 %v686
        %734 = vmatpush.bf16.msra.mxu0 %v683
        %735 = vmatpush.bf16.msra.mxu0 %v680
        %736 = vmatmul.bf16.gmra.mxu0 %v567
        %v737 = vpop.f32.mrf.mxu0
        %v738 = vadd.f32 0.0, %v737
        %v739 = vpop.f32.mrf.mxu0
        %v740 = vadd.f32 0.0, %v739
        %741 = vdwg.mxu0
        %742 = vmatpush.bf16.msra.mxu0 %v702
        %743 = vmatpush.bf16.msra.mxu0 %v699
        %744 = vmatpush.bf16.msra.mxu0 %v696
        %745 = vmatpush.bf16.msra.mxu0 %v693
        %746 = vmatpush.bf16.msra.mxu0 %v690
        %747 = vmatpush.bf16.msra.mxu0 %v687
        %748 = vmatpush.bf16.msra.mxu0 %v684
        %749 = vmatpush.bf16.msra.mxu0 %v681
        %750 = vmatmul.bf16.gmra.mxu0 %v567
        %v751 = vpop.f32.mrf.mxu0
        %v752 = vadd.f32 0.0, %v751
        %v753 = vpop.f32.mrf.mxu0
        %v754 = vadd.f32 0.0, %v753
        %755 = vdwg.mxu0
        %756 = vmatpush.bf16.msra.mxu0 %v703
        %757 = vmatpush.bf16.msra.mxu0 %v700
        %758 = vmatpush.bf16.msra.mxu0 %v697
        %759 = vmatpush.bf16.msra.mxu0 %v694
        %760 = vmatpush.bf16.msra.mxu0 %v691
        %761 = vmatpush.bf16.msra.mxu0 %v688
        %762 = vmatpush.bf16.msra.mxu0 %v685
        %763 = vmatpush.bf16.msra.mxu0 %v682
        %764 = vmatmul.bf16.gmra.mxu0 %v567
        %v765 = vpop.f32.mrf.mxu0
        %v766 = vadd.f32 0.0, %v765
        %v767 = vpop.f32.mrf.mxu0
        %v768 = vadd.f32 0.0, %v767
        %769 = vdwg.mxu0
        %v770 = vpack.c.bf16 %v752, %v738
        %v771 = vpack.c.bf16 %v766, %v766
        %v772 = vpack.c.bf16 %v754, %v740
        %v773 = vpack.c.bf16 %v768, %v768
        %v776 = vunpack.c.l.b16 %v770
        %v777 = vunpack.c.l.b16 %v772
        %v778 = vpack.c.b16 %v777, %v776
        %v779 = vunpack.c.h.b16 %v770
        %v780 = vunpack.c.h.b16 %v772
        %v781 = vpack.c.b16 %v780, %v779
        %vm782 = vcmask 261120
        %v784 = vsel %vm782, %v778, 0
        %v787 = vsel %vm782, %v781, 0
        %789 = vmatpush.bf16.xpose.msra.mxu0 0
        %790 = vmatpush.bf16.xpose.msra.mxu0 0
        %791 = vmatpush.bf16.xpose.msra.mxu0 0
        %792 = vmatpush.bf16.xpose.msra.mxu0 0
        %793 = vmatpush.bf16.xpose.msra.mxu0 0
        %794 = vmatpush.bf16.xpose.msra.mxu0 0
        %795 = vmatpush.bf16.xpose.msra.mxu0 0
        %796 = vmatpush.bf16.xpose.msra.mxu0 %v787
        %797 = vmatmul.bf16.gmra.mxu0 %v784
        %v798 = vpop.f32.mrf.mxu0
        %v799 = vadd.f32 0.0, %v798
        %v800 = vpop.f32.mrf.mxu0
        %v801 = vadd.f32 0.0, %v800
        %802 = vdwg.mxu0
        %vm803 = vcmask 130048
        %v804 = vsel %vm803, %v799, -inf
        %805 = vmax.xlane.f32.xlu0 %v804
        %v806 = vpop.xlane.xlu0 %805
        %v807 = vsel %vm803, %v801, -inf
        %808 = vmax.xlane.f32.xlu0 %v807
        %v809 = vpop.xlane.xlu0 %808
        %v810 = vsub.f32 %v799, %v806
        %v811 = vsub.f32 %v801, %v809
        %v812 = vmul.f32 %v810, 1.442695
        %v813 = vpow.pop %v812
        %v814 = vmul.f32 %v811, 1.442695
        %v815 = vpow.pop %v814
        %v816 = vpack.c.bf16 %v815, %v813
        %v819 = vunpack.c.l.b16 %v771
        %v820 = vunpack.c.l.b16 %v773
        %v821 = vpack.c.b16 %v820, %v819
        %v824 = vsel %vm803, %v816, 0
        %826 = vmatpush.bf16.msra.mxu0 0
        %827 = vmatpush.bf16.msra.mxu0 0
        %828 = vmatpush.bf16.msra.mxu0 0
        %829 = vmatpush.bf16.msra.mxu0 0
        %830 = vmatpush.bf16.msra.mxu0 0
        %831 = vmatpush.bf16.msra.mxu0 0
        %832 = vmatpush.bf16.msra.mxu0 0
        %833 = vmatpush.bf16.msra.mxu0 %v821
        %834 = vmatmul.bf16.gmra.mxu0 %v824
        %v835 = vpop.f32.mrf.mxu0
        %v836 = vadd.f32 0.0, %v835
        %v837 = vpop.f32.mrf.mxu0
        %v838 = vadd.f32 0.0, %v837
        %839 = vdwg.mxu0
        %v840 = vsel %vm803, %v813, 0.0
        %841 = vadd.xlane.f32.xlu0 %v840
        %v842 = vpop.xlane.xlu0 %841
        %v843 = vsel %vm803, %v815, 0.0
        %844 = vadd.xlane.f32.xlu0 %v843
        %v845 = vpop.xlane.xlu0 %844
        %v846 = vrcp.pop %v842
        %v847 = vrcp.pop %v845
        %v848 = vmul.f32 %v836, %v846
        %v849 = vmul.f32 %v838, %v847
        %v850 = vpack.c.bf16 %v849, %v848
        %v851 = vld [vmem:[#allocation7] sm:$0xf]
        %v852 = vld [vmem:[#allocation7 + $0x4] sm:$0xf]
        %v853 = vld [vmem:[#allocation7 + $0x8] sm:$0xf]
        %v854 = vld [vmem:[#allocation7 + $0xc] sm:$0xf]
        %855 = vrot.lane.b32.xlu0 %v778, 96
        %v856 = vpop.permute.xlu0 %855
        %857 = vrot.lane.b32.xlu0 %v781, 96
        %v858 = vpop.permute.xlu0 %857
        %v860 = vsel %vm782, %v856, 0
        %v863 = vsel %vm782, %v858, 0
        %865 = vmatpush.bf16.xpose.msra.mxu0 0
        %866 = vmatpush.bf16.xpose.msra.mxu0 0
        %867 = vmatpush.bf16.xpose.msra.mxu0 0
        %868 = vmatpush.bf16.xpose.msra.mxu0 0
        %869 = vmatpush.bf16.xpose.msra.mxu0 0
        %870 = vmatpush.bf16.xpose.msra.mxu0 0
        %871 = vmatpush.bf16.xpose.msra.mxu0 0
        %872 = vmatpush.bf16.xpose.msra.mxu0 %v863
        %873 = vmatmul.bf16.gmra.mxu0 %v860
        %v874 = vpop.f32.mrf.mxu0
        %v875 = vadd.f32 0.0, %v874
        %v876 = vpop.f32.mrf.mxu0
        %v877 = vadd.f32 0.0, %v876
        %878 = vdwg.mxu0
        %v879 = vsel %vm803, %v875, -inf
        %880 = vmax.xlane.f32.xlu0 %v879
        %v881 = vpop.xlane.xlu0 %880
        %v882 = vsel %vm803, %v877, -inf
        %883 = vmax.xlane.f32.xlu0 %v882
        %v884 = vpop.xlane.xlu0 %883
        %v885 = vsub.f32 %v875, %v881
        %v886 = vsub.f32 %v877, %v884
        %v887 = vmul.f32 %v885, 1.442695
        %v888 = vpow.pop %v887
        %v889 = vmul.f32 %v886, 1.442695
        %v890 = vpow.pop %v889
        %v891 = vpack.c.bf16 %v890, %v888
        %892 = vrot.lane.b32.xlu0 %v821, 96
        %v893 = vpop.permute.xlu0 %892
        %v896 = vsel %vm803, %v891, 0
        %898 = vmatpush.bf16.msra.mxu0 0
        %899 = vmatpush.bf16.msra.mxu0 0
        %900 = vmatpush.bf16.msra.mxu0 0
        %901 = vmatpush.bf16.msra.mxu0 0
        %902 = vmatpush.bf16.msra.mxu0 0
        %903 = vmatpush.bf16.msra.mxu0 0
        %904 = vmatpush.bf16.msra.mxu0 0
        %905 = vmatpush.bf16.msra.mxu0 %v893
        %906 = vmatmul.bf16.gmra.mxu0 %v896
        %v907 = vpop.f32.mrf.mxu0
        %v908 = vadd.f32 0.0, %v907
        %v909 = vpop.f32.mrf.mxu0
        %v910 = vadd.f32 0.0, %v909
        %911 = vdwg.mxu0
        %v912 = vsel %vm803, %v888, 0.0
        %913 = vadd.xlane.f32.xlu0 %v912
        %v914 = vpop.xlane.xlu0 %913
        %v915 = vsel %vm803, %v890, 0.0
        %916 = vadd.xlane.f32.xlu0 %v915
        %v917 = vpop.xlane.xlu0 %916
        %v918 = vrcp.pop %v914
        %v919 = vrcp.pop %v917
        %v920 = vmul.f32 %v908, %v918
        %v921 = vmul.f32 %v910, %v919
        %v922 = vpack.c.bf16 %v921, %v920
        %s923 = scalar_lea.vmem [#allocation7], 16
        %v924 = vld [vmem:[%s923] sm:$0xf]
        %v925 = vld [vmem:[%s923 + $0x4] sm:$0xf]
        %v926 = vld [vmem:[%s923 + $0x8] sm:$0xf]
        %v927 = vld [vmem:[%s923 + $0xc] sm:$0xf]
        %v932 = vunpack.c.l.b16 %v924
        %v933 = vunpack.c.l.b16 %v925
        %v934 = vunpack.c.l.b16 %v926
        %v935 = vunpack.c.l.b16 %v927
        %v936 = vpack.c.b16 %v933, %v932
        %v937 = vpack.c.b16 %v935, %v934
        %v941 = vsel %vm782, %v922, 0
        %943 = vmatpush.bf16.msra.mxu0 0
        %944 = vmatpush.bf16.msra.mxu0 0
        %945 = vmatpush.bf16.msra.mxu0 0
        %946 = vmatpush.bf16.msra.mxu0 0
        %947 = vmatpush.bf16.msra.mxu0 0
        %948 = vmatpush.bf16.msra.mxu0 0
        %949 = vmatpush.bf16.msra.mxu0 %v937
        %950 = vmatpush.bf16.msra.mxu0 %v936
        %951 = vmatmul.bf16.gmra.mxu0 %v941
        %v952 = vpop.f32.mrf.mxu0
        %v953 = vadd.f32 0.0, %v952
        %v954 = vpop.f32.mrf.mxu0
        %v955 = vadd.f32 0.0, %v954
        %956 = vdwg.mxu0
        %v961 = vunpack.c.l.b16 %v851
        %v962 = vunpack.c.l.b16 %v852
        %v963 = vunpack.c.l.b16 %v853
        %v964 = vunpack.c.l.b16 %v854
        %v965 = vpack.c.b16 %v962, %v961
        %v966 = vpack.c.b16 %v964, %v963
        %v970 = vsel %vm782, %v850, 0
        %972 = vmatpush.bf16.msra.mxu0 0
        %973 = vmatpush.bf16.msra.mxu0 0
        %974 = vmatpush.bf16.msra.mxu0 0
        %975 = vmatpush.bf16.msra.mxu0 0
        %976 = vmatpush.bf16.msra.mxu0 0
        %977 = vmatpush.bf16.msra.mxu0 0
        %978 = vmatpush.bf16.msra.mxu0 %v966
        %979 = vmatpush.bf16.msra.mxu0 %v965
        %980 = vmatmul.bf16.gmra.mxu0 %v970
        %v981 = vpop.f32.mrf.mxu0
        %v982 = vadd.f32 %v953, %v981
        %v983 = vpop.f32.mrf.mxu0
        %v984 = vadd.f32 %v955, %v983
        %985 = vdwg.mxu0
        %986 = vrot.lane.b32.xlu0 %v778, 64
        %v987 = vpop.permute.xlu0 %986
        %988 = vrot.lane.b32.xlu0 %v781, 64
        %v989 = vpop.permute.xlu0 %988
        %v991 = vsel %vm782, %v987, 0
        %v994 = vsel %vm782, %v989, 0
        %996 = vmatpush.bf16.xpose.msra.mxu0 0
        %997 = vmatpush.bf16.xpose.msra.mxu0 0
        %998 = vmatpush.bf16.xpose.msra.mxu0 0
        %999 = vmatpush.bf16.xpose.msra.mxu0 0
        %1000 = vmatpush.bf16.xpose.msra.mxu0 0
        %1001 = vmatpush.bf16.xpose.msra.mxu0 0
        %1002 = vmatpush.bf16.xpose.msra.mxu0 0
        %1003 = vmatpush.bf16.xpose.msra.mxu0 %v994
        %1004 = vmatmul.bf16.gmra.mxu0 %v991
        %v1005 = vpop.f32.mrf.mxu0
        %v1006 = vadd.f32 0.0, %v1005
        %v1007 = vpop.f32.mrf.mxu0
        %v1008 = vadd.f32 0.0, %v1007
        %1009 = vdwg.mxu0
        %v1010 = vsel %vm803, %v1006, -inf
        %1011 = vmax.xlane.f32.xlu0 %v1010
        %v1012 = vpop.xlane.xlu0 %1011
        %v1013 = vsel %vm803, %v1008, -inf
        %1014 = vmax.xlane.f32.xlu0 %v1013
        %v1015 = vpop.xlane.xlu0 %1014
        %v1016 = vsub.f32 %v1006, %v1012
        %v1017 = vsub.f32 %v1008, %v1015
        %v1018 = vmul.f32 %v1016, 1.442695
        %v1019 = vpow.pop %v1018
        %v1020 = vmul.f32 %v1017, 1.442695
        %v1021 = vpow.pop %v1020
        %v1022 = vpack.c.bf16 %v1021, %v1019
        %1023 = vrot.lane.b32.xlu0 %v821, 64
        %v1024 = vpop.permute.xlu0 %1023
        %v1027 = vsel %vm803, %v1022, 0
        %1029 = vmatpush.bf16.msra.mxu0 0
        %1030 = vmatpush.bf16.msra.mxu0 0
        %1031 = vmatpush.bf16.msra.mxu0 0
        %1032 = vmatpush.bf16.msra.mxu0 0
        %1033 = vmatpush.bf16.msra.mxu0 0
        %1034 = vmatpush.bf16.msra.mxu0 0
        %1035 = vmatpush.bf16.msra.mxu0 0
        %1036 = vmatpush.bf16.msra.mxu0 %v1024
        %1037 = vmatmul.bf16.gmra.mxu0 %v1027
        %v1038 = vpop.f32.mrf.mxu0
        %v1039 = vadd.f32 0.0, %v1038
        %v1040 = vpop.f32.mrf.mxu0
        %v1041 = vadd.f32 0.0, %v1040
        %1042 = vdwg.mxu0
        %v1043 = vsel %vm803, %v1019, 0.0
        %1044 = vadd.xlane.f32.xlu0 %v1043
        %v1045 = vpop.xlane.xlu0 %1044
        %v1046 = vsel %vm803, %v1021, 0.0
        %1047 = vadd.xlane.f32.xlu0 %v1046
        %v1048 = vpop.xlane.xlu0 %1047
        %v1049 = vrcp.pop %v1045
        %v1050 = vrcp.pop %v1048
        %v1051 = vmul.f32 %v1039, %v1049
        %v1052 = vmul.f32 %v1041, %v1050
        %v1053 = vpack.c.bf16 %v1052, %v1051
        %s1054 = scalar_lea.vmem [#allocation7], 32
        %v1055 = vld [vmem:[%s1054] sm:$0xf]
        %v1056 = vld [vmem:[%s1054 + $0x4] sm:$0xf]
        %v1057 = vld [vmem:[%s1054 + $0x8] sm:$0xf]
        %v1058 = vld [vmem:[%s1054 + $0xc] sm:$0xf]
        %v1063 = vunpack.c.l.b16 %v1055
        %v1064 = vunpack.c.l.b16 %v1056
        %v1065 = vunpack.c.l.b16 %v1057
        %v1066 = vunpack.c.l.b16 %v1058
        %v1067 = vpack.c.b16 %v1064, %v1063
        %v1068 = vpack.c.b16 %v1066, %v1065
        %v1072 = vsel %vm782, %v1053, 0
        %1074 = vmatpush.bf16.msra.mxu0 0
        %1075 = vmatpush.bf16.msra.mxu0 0
        %1076 = vmatpush.bf16.msra.mxu0 0
        %1077 = vmatpush.bf16.msra.mxu0 0
        %1078 = vmatpush.bf16.msra.mxu0 0
        %1079 = vmatpush.bf16.msra.mxu0 0
        %1080 = vmatpush.bf16.msra.mxu0 %v1068
        %1081 = vmatpush.bf16.msra.mxu0 %v1067
        %1082 = vmatmul.bf16.gmra.mxu0 %v1072
        %v1083 = vpop.f32.mrf.mxu0
        %v1084 = vadd.f32 0.0, %v1083
        %v1085 = vpop.f32.mrf.mxu0
        %v1086 = vadd.f32 0.0, %v1085
        %1087 = vdwg.mxu0
        %v1088 = vadd.f32 %v982, %v1084
        %v1089 = vadd.f32 %v984, %v1086
        %1090 = vrot.lane.b32.xlu0 %v778, 32
        %v1091 = vpop.permute.xlu0 %1090
        %1092 = vrot.lane.b32.xlu0 %v781, 32
        %v1093 = vpop.permute.xlu0 %1092
        %v1095 = vsel %vm782, %v1091, 0
        %v1098 = vsel %vm782, %v1093, 0
        %1100 = vmatpush.bf16.xpose.msra.mxu0 0
        %1101 = vmatpush.bf16.xpose.msra.mxu0 0
        %1102 = vmatpush.bf16.xpose.msra.mxu0 0
        %1103 = vmatpush.bf16.xpose.msra.mxu0 0
        %1104 = vmatpush.bf16.xpose.msra.mxu0 0
        %1105 = vmatpush.bf16.xpose.msra.mxu0 0
        %1106 = vmatpush.bf16.xpose.msra.mxu0 0
        %1107 = vmatpush.bf16.xpose.msra.mxu0 %v1098
        %1108 = vmatmul.bf16.gmra.mxu0 %v1095
        %v1109 = vpop.f32.mrf.mxu0
        %v1110 = vadd.f32 0.0, %v1109
        %v1111 = vpop.f32.mrf.mxu0
        %v1112 = vadd.f32 0.0, %v1111
        %1113 = vdwg.mxu0
        %v1114 = vsel %vm803, %v1110, -inf
        %1115 = vmax.xlane.f32.xlu0 %v1114
        %v1116 = vpop.xlane.xlu0 %1115
        %v1117 = vsel %vm803, %v1112, -inf
        %1118 = vmax.xlane.f32.xlu0 %v1117
        %v1119 = vpop.xlane.xlu0 %1118
        %v1120 = vsub.f32 %v1110, %v1116
        %v1121 = vsub.f32 %v1112, %v1119
        %v1122 = vmul.f32 %v1120, 1.442695
        %v1123 = vpow.pop %v1122
        %v1124 = vmul.f32 %v1121, 1.442695
        %v1125 = vpow.pop %v1124
        %v1126 = vpack.c.bf16 %v1125, %v1123
        %1127 = vrot.lane.b32.xlu0 %v821, 32
        %v1128 = vpop.permute.xlu0 %1127
        %v1131 = vsel %vm803, %v1126, 0
        %1133 = vmatpush.bf16.msra.mxu0 0
        %1134 = vmatpush.bf16.msra.mxu0 0
        %1135 = vmatpush.bf16.msra.mxu0 0
        %1136 = vmatpush.bf16.msra.mxu0 0
        %1137 = vmatpush.bf16.msra.mxu0 0
        %1138 = vmatpush.bf16.msra.mxu0 0
        %1139 = vmatpush.bf16.msra.mxu0 0
        %1140 = vmatpush.bf16.msra.mxu0 %v1128
        %1141 = vmatmul.bf16.gmra.mxu0 %v1131
        %v1142 = vpop.f32.mrf.mxu0
        %v1143 = vadd.f32 0.0, %v1142
        %v1144 = vpop.f32.mrf.mxu0
        %v1145 = vadd.f32 0.0, %v1144
        %1146 = vdwg.mxu0
        %v1147 = vsel %vm803, %v1123, 0.0
        %1148 = vadd.xlane.f32.xlu0 %v1147
        %v1149 = vpop.xlane.xlu0 %1148
        %v1150 = vsel %vm803, %v1125, 0.0
        %1151 = vadd.xlane.f32.xlu0 %v1150
        %v1152 = vpop.xlane.xlu0 %1151
        %v1153 = vrcp.pop %v1149
        %v1154 = vrcp.pop %v1152
        %v1155 = vmul.f32 %v1143, %v1153
        %v1156 = vmul.f32 %v1145, %v1154
        %v1157 = vpack.c.bf16 %v1156, %v1155
        %s1158 = scalar_lea.vmem [#allocation7], 48
        %v1159 = vld [vmem:[%s1158] sm:$0xf]
        %v1160 = vld [vmem:[%s1158 + $0x4] sm:$0xf]
        %v1161 = vld [vmem:[%s1158 + $0x8] sm:$0xf]
        %v1162 = vld [vmem:[%s1158 + $0xc] sm:$0xf]
        %v1167 = vunpack.c.l.b16 %v1159
        %v1168 = vunpack.c.l.b16 %v1160
        %v1169 = vunpack.c.l.b16 %v1161
        %v1170 = vunpack.c.l.b16 %v1162
        %v1171 = vpack.c.b16 %v1168, %v1167
        %v1172 = vpack.c.b16 %v1170, %v1169
        %v1176 = vsel %vm782, %v1157, 0
        %1178 = vmatpush.bf16.msra.mxu0 0
        %1179 = vmatpush.bf16.msra.mxu0 0
        %1180 = vmatpush.bf16.msra.mxu0 0
        %1181 = vmatpush.bf16.msra.mxu0 0
        %1182 = vmatpush.bf16.msra.mxu0 0
        %1183 = vmatpush.bf16.msra.mxu0 0
        %1184 = vmatpush.bf16.msra.mxu0 %v1172
        %1185 = vmatpush.bf16.msra.mxu0 %v1171
        %1186 = vmatmul.bf16.gmra.mxu0 %v1176
        %v1187 = vpop.f32.mrf.mxu0
        %v1188 = vadd.f32 0.0, %v1187
        %v1189 = vpop.f32.mrf.mxu0
        %v1190 = vadd.f32 0.0, %v1189
        %1191 = vdwg.mxu0
        %v1192 = vadd.f32 %v1088, %v1188
        %v1193 = vadd.f32 %v1089, %v1190
        %v1194 = vadd.f32 %v474, %v1192
        %v1195 = vadd.f32 %v475, %v1193
        %v1196 = vld [vmem:[%s9] sm:$0x1]
        %v1197 = vld [vmem:[%s10] sm:$0x1]
        %1198 = vadd.xlane.f32.xlu0 %v1194
        %v1199 = vpop.xlane.xlu0 %1198
        %1200 = vadd.xlane.f32.xlu0 %v1195
        %v1201 = vpop.xlane.xlu0 %1200
        %v1202 = vmul.f32 %v1199, %v488
        %v1203 = vmul.f32 %v1201, %v488
        %v1204 = vsub.f32 %v1194, %v1202
        %v1205 = vsub.f32 %v1195, %v1203
        %v1206 = vmul.f32 %v1204, %v1204
        %v1207 = vmul.f32 %v1205, %v1205
        %1208 = vadd.xlane.f32.xlu0 %v1206
        %v1209 = vpop.xlane.xlu0 %1208
        %1210 = vadd.xlane.f32.xlu0 %v1207
        %v1211 = vpop.xlane.xlu0 %1210
        %v1212 = vmul.f32 %v1209, 0.007874016
        %v1213 = vmul.f32 %v1211, 0.007874016
        %v1215 = vperm.slane %v1196, 0
        %v1217 = vmul.f32 %v1215, %v1204
        %v1218 = vmul.f32 %v1215, %v1205
        %v1219 = vrsqrt.pop %v1212
        %v1220 = vmul.f32 %v1219, %v1212
        %v1221 = vmul.f32 %v1220, %v1219
        %v1222 = vmul.f32 0.5, %v1221
        %v1223 = vsub.f32 1.5, %v1222
        %v1224 = vmul.f32 %v1219, %v1223
        %v1225 = vmul.f32 %v1212, %v1224
        %vm1226 = vcmp.eq.f32.partialorder %v1212, inf
        %v1227 = vsel %vm1226, %v1212, %v1225
        %vm1228 = vcmp.eq.f32.partialorder %v1212, 0.0
        %v1229 = vand.u32 %v1212, 2147483648
        %v1230 = vsel %vm1228, %v1229, %v1227
        %v1231 = vrsqrt.pop %v1213
        %v1232 = vmul.f32 %v1231, %v1213
        %v1233 = vmul.f32 %v1232, %v1231
        %v1234 = vmul.f32 0.5, %v1233
        %v1235 = vsub.f32 1.5, %v1234
        %v1236 = vmul.f32 %v1231, %v1235
        %v1237 = vmul.f32 %v1213, %v1236
        %vm1238 = vcmp.eq.f32.partialorder %v1213, inf
        %v1239 = vsel %vm1238, %v1213, %v1237
        %vm1240 = vcmp.eq.f32.partialorder %v1213, 0.0
        %v1241 = vand.u32 %v1213, 2147483648
        %v1242 = vsel %vm1240, %v1241, %v1239
        %v1243 = vadd.f32 %v1230, 1e-06
        %v1244 = vadd.f32 %v1242, 1e-06
        %v1245 = vrcp.pop %v1243
        %v1246 = vmul.f32 %v1243, %v1245
        %v1247 = vsub.f32 1.0, %v1246
        %v1248 = vmul.f32 %v1245, %v1247
        %v1249 = vadd.f32 %v1245, %v1248
        %vm1250 = vweird.f32 %v1243
        %vm1251 = vweird.f32 %v1245
        %vm1252 = vmor %vm1250, %vm1251
        %v1253 = vsel %vm1252, %v1245, %v1249
        %v1254 = vand.u32 2147483647, %v1243
        %vm1255 = vcmp.eq.f32.partialorder %v1254, 8.507059e+37
        %v1256 = vand.u32 %v1243, 2147483648
        %v1257 = vor.u32 1.1754944e-38, %v1256
        %v1258 = vsel %vm1255, %v1257, %v1253
        %v1259 = vmul.f32 %v1217, %v1258
        %v1260 = vrcp.pop %v1244
        %v1261 = vmul.f32 %v1244, %v1260
        %v1262 = vsub.f32 1.0, %v1261
        %v1263 = vmul.f32 %v1260, %v1262
        %v1264 = vadd.f32 %v1260, %v1263
        %vm1265 = vweird.f32 %v1244
        %vm1266 = vweird.f32 %v1260
        %vm1267 = vmor %vm1265, %vm1266
        %v1268 = vsel %vm1267, %v1260, %v1264
        %v1269 = vand.u32 2147483647, %v1244
        %vm1270 = vcmp.eq.f32.partialorder %v1269, 8.507059e+37
        %v1271 = vand.u32 %v1244, 2147483648
        %v1272 = vor.u32 1.1754944e-38, %v1271
        %v1273 = vsel %vm1270, %v1272, %v1268
        %v1274 = vmul.f32 %v1218, %v1273
        %v1276 = vperm.slane %v1197, 0
        %v1278 = vadd.f32 %v1259, %v1276
        %v1279 = vadd.f32 %v1274, %v1276
        %v1280 = vpack.c.bf16 %v1279, %v1278
        %v1281 = vld [vmem:[#allocation8] sm:$0xff]
        %v1282 = vld [vmem:[#allocation8 + $0x8] sm:$0xff]
        %v1283 = vld [vmem:[#allocation8 + $0x10] sm:$0xff]
        %v1284 = vld [vmem:[#allocation8 + $0x18] sm:$0xff]
        %v1285 = vld [vmem:[#allocation8 + $0x20] sm:$0xff]
        %v1286 = vld [vmem:[#allocation8 + $0x28] sm:$0xff]
        %v1287 = vld [vmem:[#allocation8 + $0x30] sm:$0xff]
        %v1288 = vld [vmem:[#allocation8 + $0x38] sm:$0xff]
        %v1289 = vld [vmem:[#allocation8 + $0x40] sm:$0xff]
        %v1290 = vld [vmem:[#allocation8 + $0x48] sm:$0xff]
        %v1291 = vld [vmem:[#allocation8 + $0x50] sm:$0xff]
        %v1292 = vld [vmem:[#allocation8 + $0x58] sm:$0xff]
        %v1293 = vld [vmem:[#allocation8 + $0x60] sm:$0xff]
        %v1294 = vld [vmem:[#allocation8 + $0x68] sm:$0xff]
        %v1295 = vld [vmem:[#allocation8 + $0x70] sm:$0xff]
        %v1296 = vld [vmem:[#allocation8 + $0x78] sm:$0xff]
        %v1297 = vld [vmem:[%s4] sm:$0x3]
        %v1299 = vperm.slane %v1297, 0
        %v1300 = vperm.slane %v1297, 1
        %v1319 = vunpack.c.l.b16 %v1281
        %v1320 = vunpack.c.h.b16 %v1281
        %v1321 = vunpack.c.l.b16 %v1282
        %v1322 = vunpack.c.h.b16 %v1282
        %v1323 = vunpack.c.l.b16 %v1283
        %v1324 = vunpack.c.h.b16 %v1283
        %v1325 = vunpack.c.l.b16 %v1284
        %v1326 = vunpack.c.h.b16 %v1284
        %v1327 = vunpack.c.l.b16 %v1285
        %v1328 = vunpack.c.h.b16 %v1285
        %v1329 = vunpack.c.l.b16 %v1286
        %v1330 = vunpack.c.h.b16 %v1286
        %v1331 = vunpack.c.l.b16 %v1287
        %v1332 = vunpack.c.h.b16 %v1287
        %v1333 = vunpack.c.l.b16 %v1288
        %v1334 = vunpack.c.h.b16 %v1288
        %v1335 = vunpack.c.l.b16 %v1289
        %v1336 = vunpack.c.h.b16 %v1289
        %v1337 = vunpack.c.l.b16 %v1290
        %v1338 = vunpack.c.h.b16 %v1290
        %v1339 = vunpack.c.l.b16 %v1291
        %v1340 = vunpack.c.h.b16 %v1291
        %v1341 = vunpack.c.l.b16 %v1292
        %v1342 = vunpack.c.h.b16 %v1292
        %v1343 = vunpack.c.l.b16 %v1293
        %v1344 = vunpack.c.h.b16 %v1293
        %v1345 = vunpack.c.l.b16 %v1294
        %v1346 = vunpack.c.h.b16 %v1294
        %v1347 = vunpack.c.l.b16 %v1295
        %v1348 = vunpack.c.h.b16 %v1295
        %v1349 = vunpack.c.l.b16 %v1296
        %v1350 = vunpack.c.h.b16 %v1296
        %v1351 = vpack.c.b16 %v1321, %v1319
        %v1352 = vpack.c.b16 %v1322, %v1320
        %v1353 = vpack.c.b16 %v1325, %v1323
        %v1354 = vpack.c.b16 %v1326, %v1324
        %v1355 = vpack.c.b16 %v1329, %v1327
        %v1356 = vpack.c.b16 %v1330, %v1328
        %v1357 = vpack.c.b16 %v1333, %v1331
        %v1358 = vpack.c.b16 %v1334, %v1332
        %v1359 = vpack.c.b16 %v1337, %v1335
        %v1360 = vpack.c.b16 %v1338, %v1336
        %v1361 = vpack.c.b16 %v1341, %v1339
        %v1362 = vpack.c.b16 %v1342, %v1340
        %v1363 = vpack.c.b16 %v1345, %v1343
        %v1364 = vpack.c.b16 %v1346, %v1344
        %v1365 = vpack.c.b16 %v1349, %v1347
        %v1366 = vpack.c.b16 %v1350, %v1348
        %1383 = vmatpush.bf16.msra.mxu0 %v1365
        %1384 = vmatpush.bf16.msra.mxu0 %v1363
        %1385 = vmatpush.bf16.msra.mxu0 %v1361
        %1386 = vmatpush.bf16.msra.mxu0 %v1359
        %1387 = vmatpush.bf16.msra.mxu0 %v1357
        %1388 = vmatpush.bf16.msra.mxu0 %v1355
        %1389 = vmatpush.bf16.msra.mxu0 %v1353
        %1390 = vmatpush.bf16.msra.mxu0 %v1351
        %1391 = vmatmul.bf16.gmra.mxu0 %v1280
        %v1392 = vpop.f32.mrf.mxu0
        %v1393 = vadd.f32 %v1299, %v1392
        %v1394 = vpop.f32.mrf.mxu0
        %v1395 = vadd.f32 %v1299, %v1394
        %1396 = vdwg.mxu0
        %1397 = vmatpush.bf16.msra.mxu0 %v1366
        %1398 = vmatpush.bf16.msra.mxu0 %v1364
        %1399 = vmatpush.bf16.msra.mxu0 %v1362
        %1400 = vmatpush.bf16.msra.mxu0 %v1360
        %1401 = vmatpush.bf16.msra.mxu0 %v1358
        %1402 = vmatpush.bf16.msra.mxu0 %v1356
        %1403 = vmatpush.bf16.msra.mxu0 %v1354
        %1404 = vmatpush.bf16.msra.mxu0 %v1352
        %1405 = vmatmul.bf16.gmra.mxu0 %v1280
        %v1406 = vpop.f32.mrf.mxu0
        %v1407 = vadd.f32 %v1300, %v1406
        %v1408 = vpop.f32.mrf.mxu0
        %v1409 = vadd.f32 %v1300, %v1408
        %1410 = vdwg.mxu0
        %v1411 = vmax.f32 %v1393, 0.0
        %v1412 = vmax.f32 %v1407, 0.0
        %v1413 = vmax.f32 %v1395, 0.0
        %v1414 = vmax.f32 %v1409, 0.0
        %v1415 = vpack.c.bf16 %v1413, %v1411
        %v1416 = vpack.c.bf16 %v1414, %v1412
        %v1417 = vld [vmem:[#allocation10] sm:$0xf]
        %v1418 = vld [vmem:[#allocation10 + $0x4] sm:$0xf]
        %v1419 = vld [vmem:[#allocation10 + $0x8] sm:$0xf]
        %v1420 = vld [vmem:[#allocation10 + $0xc] sm:$0xf]
        %v1421 = vld [vmem:[#allocation10 + $0x10] sm:$0xf]
        %v1422 = vld [vmem:[#allocation10 + $0x14] sm:$0xf]
        %v1423 = vld [vmem:[#allocation10 + $0x18] sm:$0xf]
        %v1424 = vld [vmem:[#allocation10 + $0x1c] sm:$0xf]
        %v1425 = vld [vmem:[#allocation10 + $0x20] sm:$0xf]
        %v1426 = vld [vmem:[#allocation10 + $0x24] sm:$0xf]
        %v1427 = vld [vmem:[#allocation10 + $0x28] sm:$0xf]
        %v1428 = vld [vmem:[#allocation10 + $0x2c] sm:$0xf]
        %v1429 = vld [vmem:[#allocation10 + $0x30] sm:$0xf]
        %v1430 = vld [vmem:[#allocation10 + $0x34] sm:$0xf]
        %v1431 = vld [vmem:[#allocation10 + $0x38] sm:$0xf]
        %v1432 = vld [vmem:[#allocation10 + $0x3c] sm:$0xf]
        %v1433 = vld [vmem:[#allocation10 + $0x40] sm:$0xf]
        %v1434 = vld [vmem:[#allocation10 + $0x44] sm:$0xf]
        %v1435 = vld [vmem:[#allocation10 + $0x48] sm:$0xf]
        %v1436 = vld [vmem:[#allocation10 + $0x4c] sm:$0xf]
        %v1437 = vld [vmem:[#allocation10 + $0x50] sm:$0xf]
        %v1438 = vld [vmem:[#allocation10 + $0x54] sm:$0xf]
        %v1439 = vld [vmem:[#allocation10 + $0x58] sm:$0xf]
        %v1440 = vld [vmem:[#allocation10 + $0x5c] sm:$0xf]
        %v1441 = vld [vmem:[#allocation10 + $0x60] sm:$0xf]
        %v1442 = vld [vmem:[#allocation10 + $0x64] sm:$0xf]
        %v1443 = vld [vmem:[#allocation10 + $0x68] sm:$0xf]
        %v1444 = vld [vmem:[#allocation10 + $0x6c] sm:$0xf]
        %v1445 = vld [vmem:[#allocation10 + $0x70] sm:$0xf]
        %v1446 = vld [vmem:[#allocation10 + $0x74] sm:$0xf]
        %v1447 = vld [vmem:[#allocation10 + $0x78] sm:$0xf]
        %v1448 = vld [vmem:[#allocation10 + $0x7c] sm:$0xf]
        %v1449 = vld [vmem:[%s6] sm:$0x1]
        %v1451 = vperm.slane %v1449, 0
        %v1485 = vunpack.c.l.b16 %v1417
        %v1486 = vunpack.c.l.b16 %v1418
        %v1487 = vunpack.c.l.b16 %v1419
        %v1488 = vunpack.c.l.b16 %v1420
        %v1489 = vunpack.c.l.b16 %v1421
        %v1490 = vunpack.c.l.b16 %v1422
        %v1491 = vunpack.c.l.b16 %v1423
        %v1492 = vunpack.c.l.b16 %v1424
        %v1493 = vunpack.c.l.b16 %v1425
        %v1494 = vunpack.c.l.b16 %v1426
        %v1495 = vunpack.c.l.b16 %v1427
        %v1496 = vunpack.c.l.b16 %v1428
        %v1497 = vunpack.c.l.b16 %v1429
        %v1498 = vunpack.c.l.b16 %v1430
        %v1499 = vunpack.c.l.b16 %v1431
        %v1500 = vunpack.c.l.b16 %v1432
        %v1501 = vunpack.c.l.b16 %v1433
        %v1502 = vunpack.c.l.b16 %v1434
        %v1503 = vunpack.c.l.b16 %v1435
        %v1504 = vunpack.c.l.b16 %v1436
        %v1505 = vunpack.c.l.b16 %v1437
        %v1506 = vunpack.c.l.b16 %v1438
        %v1507 = vunpack.c.l.b16 %v1439
        %v1508 = vunpack.c.l.b16 %v1440
        %v1509 = vunpack.c.l.b16 %v1441
        %v1510 = vunpack.c.l.b16 %v1442
        %v1511 = vunpack.c.l.b16 %v1443
        %v1512 = vunpack.c.l.b16 %v1444
        %v1513 = vunpack.c.l.b16 %v1445
        %v1514 = vunpack.c.l.b16 %v1446
        %v1515 = vunpack.c.l.b16 %v1447
        %v1516 = vunpack.c.l.b16 %v1448
        %v1517 = vpack.c.b16 %v1486, %v1485
        %v1518 = vpack.c.b16 %v1488, %v1487
        %v1519 = vpack.c.b16 %v1490, %v1489
        %v1520 = vpack.c.b16 %v1492, %v1491
        %v1521 = vpack.c.b16 %v1494, %v1493
        %v1522 = vpack.c.b16 %v1496, %v1495
        %v1523 = vpack.c.b16 %v1498, %v1497
        %v1524 = vpack.c.b16 %v1500, %v1499
        %v1525 = vpack.c.b16 %v1502, %v1501
        %v1526 = vpack.c.b16 %v1504, %v1503
        %v1527 = vpack.c.b16 %v1506, %v1505
        %v1528 = vpack.c.b16 %v1508, %v1507
        %v1529 = vpack.c.b16 %v1510, %v1509
        %v1530 = vpack.c.b16 %v1512, %v1511
        %v1531 = vpack.c.b16 %v1514, %v1513
        %v1532 = vpack.c.b16 %v1516, %v1515
        %1549 = vmatpush.bf16.msra.mxu0 %v1524
        %1550 = vmatpush.bf16.msra.mxu0 %v1523
        %1551 = vmatpush.bf16.msra.mxu0 %v1522
        %1552 = vmatpush.bf16.msra.mxu0 %v1521
        %1553 = vmatpush.bf16.msra.mxu0 %v1520
        %1554 = vmatpush.bf16.msra.mxu0 %v1519
        %1555 = vmatpush.bf16.msra.mxu0 %v1518
        %1556 = vmatpush.bf16.msra.mxu0 %v1517
        %1557 = vmatmul.bf16.gmra.mxu0 %v1415
        %v1558 = vpop.f32.mrf.mxu0
        %v1559 = vadd.f32 %v1451, %v1558
        %v1560 = vpop.f32.mrf.mxu0
        %v1561 = vadd.f32 %v1451, %v1560
        %1562 = vdwg.mxu0
        %1563 = vmatpush.bf16.msra.mxu0 %v1532
        %1564 = vmatpush.bf16.msra.mxu0 %v1531
        %1565 = vmatpush.bf16.msra.mxu0 %v1530
        %1566 = vmatpush.bf16.msra.mxu0 %v1529
        %1567 = vmatpush.bf16.msra.mxu0 %v1528
        %1568 = vmatpush.bf16.msra.mxu0 %v1527
        %1569 = vmatpush.bf16.msra.mxu0 %v1526
        %1570 = vmatpush.bf16.msra.mxu0 %v1525
        %1571 = vmatmul.bf16.gmra.mxu0 %v1416
        %v1572 = vpop.f32.mrf.mxu0
        %v1573 = vadd.f32 %v1559, %v1572
        %v1574 = vpop.f32.mrf.mxu0
        %v1575 = vadd.f32 %v1561, %v1574
        %1576 = vdwg.mxu0
        %v1577 = vadd.f32 %v1194, %v1573
        %v1578 = vadd.f32 %v1195, %v1575
        %1579 = vst [vmem:[%s472] sm:$0xff] %v1577
        %1580 = vst [vmem:[%s472 + $0x8] sm:$0xff] %v1578
        %s1581 = sand.u32 %s274, 1
        %s1582 = scalar_lea.sflag [#allocation4], %s1581
        %s1583 = sand.u32 %s274, 1
        %s1584 = smul.addr %s1583, 16
        %s1585 = scalar_lea.vmem [#allocation11], %s1584
        // Predicated region
        $region85: #{tpu_custom_call.1} parent=63 // pred_check
          %p1586 = pneg %p284
        $region86: #{tpu_custom_call.1} parent=63 // pred_check_branch
          %1588 = sbr.rel (%p1586) target = $region88
        $region87: #{tpu_custom_call.1} parent=63 // pred_region
          %1590 = vsyncadd %s1582, 0
          %s1591 = smul.addr %s30, 2
          %s1592 = smul.addr %s1591, 8
          %s1593 = scalar_lea.hbm %s11, %s1592
          %s1594 = sshll.u32 %s1585, 4
          %s1595 = int_to_ptr.vmem [resolvable:$true] %s1594
          %s1596 = sshll.u32 %s1593, 4
          %s1597 = int_to_ptr.hbm [resolvable:$true] %s1596
          %1602 = dma.vmem_to_hbm [thread:$0]  %s1595, 256, %s1597, %s1582, 128, 128, 8
        $region88: #{tpu_custom_call.1} parent=63 // pred_fallthru
          _
      $region64: #{tpu_custom_call.1} parent=5 // pred_fallthru
        _
      %p1603 = scmp.le.s32.totalorder 2, %s25
      // Predicated region
      $region89: #{tpu_custom_call.1} parent=5 // pred_check
        %p1604 = pneg %p1603
      $region90: #{tpu_custom_call.1} parent=5 // pred_check_branch
        %1606 = sbr.rel (%p1604) target = $region92
      $region91: #{tpu_custom_call.1} parent=5 // pred_region
        %s1607 = ssub.s32 %s25, 2
        // Predicated region
        $region93: #{tpu_custom_call.1} parent=91 // pred_check
          %p1608 = pneg %p290
        $region94: #{tpu_custom_call.1} parent=91 // pred_check_branch
          %1610 = sbr.rel (%p1608) target = $region96
        $region95: #{tpu_custom_call.1} parent=91 // pred_region
          %s1611 = sand.u32 %s275, 1
          %s1612 = scalar_lea.sflag [#allocation4], %s1611
          %s1613 = sand.u32 %s275, 1
          %s1614 = smul.addr %s1613, 16
          %s1615 = scalar_lea.vmem [#allocation11], %s1614
          %1617 = dma.done %s1612, 256
        $region96: #{tpu_custom_call.1} parent=91 // pred_fallthru
          _
      $region92: #{tpu_custom_call.1} parent=5 // pred_fallthru
        _
    $region6: #{tpu_custom_call.1} parent=1 // loop_footer
      %s29 = sadd.s32 1, %s25
    $region7: #{tpu_custom_call.1} parent=1 // loop_footer_branch
      %24 = sbr.rel target = $region3
    $region8: #{tpu_custom_call.1} parent=1 // loop_exit
      _
    %1618 = vsyncpa [#allocation3], 1
    %s1619 = scalar_lea.sflag [#allocation3], 1
    %1620 = vsyncpa %s1619, 1
    %1621 = vsyncpa [#allocation6], 1
    %1622 = vsyncpa [#allocation9], 1
    %1623 = vsyncpa [#allocation4], 1
    %s1624 = scalar_lea.sflag [#allocation4], 1
    %1625 = vsyncpa %s1624, 1

// kernel: tpu_custom_call.1
$region0: #{tpu_custom_call.1}
  #allocation0 [shape = 'u32[]', space=smem, size = 0x4, offset = 0x4, fixed_abs, tag = 'smem constant byte address 0x4 - core index']
  #allocation1 [shape = 'u32[72,128]{1,0:T(1,128)}', space=vmem, size = 0x9000, scoped, tag = 'internal scratch']
  %s0 = inlined_call_operand.hbm [shape: f32[2,16,128], index: 0, kind: input, shape index: {}]
  %s1 = inlined_call_operand.hbm [shape: bf16[128,384], index: 1, kind: input, shape index: {}]
  %s2 = inlined_call_operand.hbm [shape: bf16[4,32,128], index: 2, kind: input, shape index: {}]
  %s3 = inlined_call_operand.hbm [shape: bf16[128,256], index: 3, kind: input, shape index: {}]
  %s4 = inlined_call_operand.vmem [shape: f32[1,256], index: 4, kind: input, shape index: {}]
  %s5 = inlined_call_operand.hbm [shape: bf16[256,128], index: 5, kind: input, shape index: {}]
  %s6 = inlined_call_operand.vmem [shape: f32[1,128], index: 6, kind: input, shape index: {}]
  %s7 = inlined_call_operand.vmem [shape: f32[1,128], index: 7, kind: input, shape index: {}]
  %s8 = inlined_call_operand.vmem [shape: f32[1,128], index: 8, kind: input, shape index: {}]
  %s9 = inlined_call_operand.vmem [shape: f32[1,128], index: 9, kind: input, shape index: {}]
  %s10 = inlined_call_operand.vmem [shape: f32[1,128], index: 10, kind: input, shape index: {}]
  %s11 = inlined_call_operand.hbm [shape: f32[2,16,128], index: 11, kind: output, shape index: {}]
  %s12 = sld [smem:[#allocation0]]
  $region97: #{tpu_custom_call.1} parent=0
    _
  %s14 = ssub.s32 1, %s12
  %s15 = scalar_select 0, %s14, %s12
  $region1: #{tpu_custom_call.1} parent=0
    #allocation2 [shape = 'u8[16384]{0}', space=vmem, size = 0x4000, scoped, tag = 'input window, operand 0']
    #allocation3 [shape = 's32[2]{0}', space=sflag, size = 0x8, scoped, tag = 'scoped memory for tpu_custom_call.1']
    #allocation4 [shape = 's32[2]{0}', space=sflag, size = 0x8, scoped, tag = 'scoped memory for tpu_custom_call.1']
    #allocation5 [shape = 'u8[98304]{0}', space=vmem, size = 0x18000, scoped, tag = 'input window, operand 1, single buffered']
    #allocation6 [shape = 's32[1]{0}', space=sflag, size = 0x4, scoped, tag = 'scoped memory for tpu_custom_call.1']
    #allocation7 [shape = 'u8[32768]{0}', space=vmem, size = 0x8000, scoped, tag = 'input window, operand 2, single buffered']
    #allocation8 [shape = 'u8[65536]{0}', space=vmem, size = 0x10000, scoped, tag = 'input window, operand 3, single buffered']
    #allocation9 [shape = 's32[1]{0}', space=sflag, size = 0x4, scoped, tag = 'scoped memory for tpu_custom_call.1']
    #allocation10 [shape = 'u8[65536]{0}', space=vmem, size = 0x10000, scoped, tag = 'input window, operand 5, single buffered']
    #allocation11 [shape = 'u8[16384]{0}', space=vmem, size = 0x4000, scoped, tag = 'output window, operand 0']
    %16 = vsyncpa [#allocation3], 0
    %s17 = scalar_lea.sflag [#allocation3], 1
    %18 = vsyncpa %s17, 0
    %19 = vsyncpa [#allocation6], 0
    %20 = vsyncpa [#allocation9], 0
    %21 = vsyncpa [#allocation4], 0
    %s22 = scalar_lea.sflag [#allocation4], 1
    %23 = vsyncpa %s22, 0
    loop: start=0, step=1, limit=4
    $region2: #{tpu_custom_call.1} parent=1 // loop_pre_header
      _
    $region3: #{tpu_custom_call.1} parent=1 // loop_header
      %s25 = sphi 0, %s29
      %p26 = scmp.ge.s32.totalorder %s25, 4
      %s35 = sphi 0, %s37
      %s38 = sphi 0, %s35
      %s39 = sphi 0, %s38
      %s55 = sphi 0, %s39
      %s59 = sphi 0, %s59
      %s61 = sphi 0, %s59
      %s62 = sphi 0, %s61
      %s76 = sphi 0, %s62
      %s80 = sphi 0, %s80
      %s82 = sphi 0, %s80
      %s83 = sphi 0, %s82
      %s97 = sphi 0, %s83
      %s101 = sphi 0, %s101
      %s103 = sphi 0, %s101
      %s104 = sphi 0, %s103
      %s118 = sphi 0, %s104
      %s122 = sphi 0, %s122
      %s124 = sphi 0, %s122
      %s125 = sphi 0, %s124
      %s139 = sphi 0, %s125
      %s143 = sphi 0, %s143
      %s145 = sphi 0, %s143
      %s146 = sphi 0, %s145
      %s160 = sphi 0, %s146
      %s164 = sphi 0, %s164
      %s166 = sphi 0, %s164
      %s167 = sphi 0, %s166
      %s181 = sphi 0, %s167
      %s185 = sphi 0, %s185
      %s187 = sphi 0, %s185
      %s188 = sphi 0, %s187
      %s202 = sphi 0, %s188
      %s206 = sphi 0, %s206
      %s208 = sphi 0, %s206
      %s209 = sphi 0, %s208
      %s223 = sphi 0, %s209
      %s227 = sphi 0, %s227
      %s229 = sphi 0, %s227
      %s230 = sphi 0, %s229
      %s244 = sphi 0, %s230
      %s248 = sphi 0, %s248
      %s250 = sphi 0, %s248
      %s251 = sphi 0, %s250
      %s265 = sphi 0, %s251
      %s271 = sphi 0, %s273
      %s274 = sphi 0, %s271
      %s275 = sphi 0, %s274
      %s291 = sphi 0, %s275
    $region4: #{tpu_custom_call.1} parent=1 // loop_header_branch
      %28 = sbr.rel (%p26) target = $region8
    $region5: #{tpu_custom_call.1} parent=1 // loop_body
      %s30 = ssub.s32 %s25, 1
      %s31 = ssub.s32 %s25, 2
      %s32 = sadd.s32 %s25, 1
      %s33 = ssub.s32 %s25, %s32
      %p34 = scmp.eq.s32.totalorder %s33, 0
      %s36 = sadd.s32 %s35, 1
      %s37 = scalar_select %p34, %s35, %s36
      %p40 = pneg %p34
      %p41 = scmp.eq.s32.totalorder %s25, 1
      %p42 = por %p40, %p41
      %p43 = scmp.ne.s32.totalorder %s35, %s38
      %p44 = scmp.eq.s32.totalorder %s25, 0
      %p45 = por %p43, %p44
      %p46 = scmp.ne.s32.totalorder %s35, %s38
      %p47 = scmp.eq.s32.totalorder %s30, 1
      %p48 = por %p46, %p47
      %p49 = scmp.ne.s32.totalorder %s38, %s39
      %p50 = scmp.eq.s32.totalorder %s30, 0
      %p51 = por %p49, %p50
      %p52 = scmp.ne.s32.totalorder %s38, %s39
      %p53 = scmp.eq.s32.totalorder %s31, 1
      %p54 = por %p52, %p53
      %p56 = scmp.ne.s32.totalorder %s39, %s55
      %p57 = scmp.eq.s32.totalorder %s31, 0
      %p58 = por %p56, %p57
      %s60 = sadd.s32 %s59, 1
      %p63 = scmp.eq.s32.totalorder %s25, 1
      %p64 = scmp.ne.s32.totalorder %s59, %s61
      %p65 = scmp.eq.s32.totalorder %s25, 0
      %p66 = por %p64, %p65
      %p67 = scmp.ne.s32.totalorder %s59, %s61
      %p68 = scmp.eq.s32.totalorder %s30, 1
      %p69 = por %p67, %p68
      %p70 = scmp.ne.s32.totalorder %s61, %s62
      %p71 = scmp.eq.s32.totalorder %s30, 0
      %p72 = por %p70, %p71
      %p73 = scmp.ne.s32.totalorder %s61, %s62
      %p74 = scmp.eq.s32.totalorder %s31, 1
      %p75 = por %p73, %p74
      %p77 = scmp.ne.s32.totalorder %s62, %s76
      %p78 = scmp.eq.s32.totalorder %s31, 0
      %p79 = por %p77, %p78
      %s81 = sadd.s32 %s80, 1
      %p84 = scmp.eq.s32.totalorder %s25, 1
      %p85 = scmp.ne.s32.totalorder %s80, %s82
      %p86 = scmp.eq.s32.totalorder %s25, 0
      %p87 = por %p85, %p86
      %p88 = scmp.ne.s32.totalorder %s80, %s82
      %p89 = scmp.eq.s32.totalorder %s30, 1
      %p90 = por %p88, %p89
      %p91 = scmp.ne.s32.totalorder %s82, %s83
      %p92 = scmp.eq.s32.totalorder %s30, 0
      %p93 = por %p91, %p92
      %p94 = scmp.ne.s32.totalorder %s82, %s83
      %p95 = scmp.eq.s32.totalorder %s31, 1
      %p96 = por %p94, %p95
      %p98 = scmp.ne.s32.totalorder %s83, %s97
      %p99 = scmp.eq.s32.totalorder %s31, 0
      %p100 = por %p98, %p99
      %s102 = sadd.s32 %s101, 1
      %p105 = scmp.eq.s32.totalorder %s25, 1
      %p106 = scmp.ne.s32.totalorder %s101, %s103
      %p107 = scmp.eq.s32.totalorder %s25, 0
      %p108 = por %p106, %p107
      %p109 = scmp.ne.s32.totalorder %s101, %s103
      %p110 = scmp.eq.s32.totalorder %s30, 1
      %p111 = por %p109, %p110
      %p112 = scmp.ne.s32.totalorder %s103, %s104
      %p113 = scmp.eq.s32.totalorder %s30, 0
      %p114 = por %p112, %p113
      %p115 = scmp.ne.s32.totalorder %s103, %s104
      %p116 = scmp.eq.s32.totalorder %s31, 1
      %p117 = por %p115, %p116
      %p119 = scmp.ne.s32.totalorder %s104, %s118
      %p120 = scmp.eq.s32.totalorder %s31, 0
      %p121 = por %p119, %p120
      %s123 = sadd.s32 %s122, 1
      %p126 = scmp.eq.s32.totalorder %s25, 1
      %p127 = scmp.ne.s32.totalorder %s122, %s124
      %p128 = scmp.eq.s32.totalorder %s25, 0
      %p129 = por %p127, %p128
      %p130 = scmp.ne.s32.totalorder %s122, %s124
      %p131 = scmp.eq.s32.totalorder %s30, 1
      %p132 = por %p130, %p131
      %p133 = scmp.ne.s32.totalorder %s124, %s125
      %p134 = scmp.eq.s32.totalorder %s30, 0
      %p135 = por %p133, %p134
      %p136 = scmp.ne.s32.totalorder %s124, %s125
      %p137 = scmp.eq.s32.totalorder %s31, 1
      %p138 = por %p136, %p137
      %p140 = scmp.ne.s32.totalorder %s125, %s139
      %p141 = scmp.eq.s32.totalorder %s31, 0
      %p142 = por %p140, %p141
      %s144 = sadd.s32 %s143, 1
      %p147 = scmp.eq.s32.totalorder %s25, 1
      %p148 = scmp.ne.s32.totalorder %s143, %s145
      %p149 = scmp.eq.s32.totalorder %s25, 0
      %p150 = por %p148, %p149
      %p151 = scmp.ne.s32.totalorder %s143, %s145
      %p152 = scmp.eq.s32.totalorder %s30, 1
      %p153 = por %p151, %p152
      %p154 = scmp.ne.s32.totalorder %s145, %s146
      %p155 = scmp.eq.s32.totalorder %s30, 0
      %p156 = por %p154, %p155
      %p157 = scmp.ne.s32.totalorder %s145, %s146
      %p158 = scmp.eq.s32.totalorder %s31, 1
      %p159 = por %p157, %p158
      %p161 = scmp.ne.s32.totalorder %s146, %s160
      %p162 = scmp.eq.s32.totalorder %s31, 0
      %p163 = por %p161, %p162
      %s165 = sadd.s32 %s164, 1
      %p168 = scmp.eq.s32.totalorder %s25, 1
      %p169 = scmp.ne.s32.totalorder %s164, %s166
      %p170 = scmp.eq.s32.totalorder %s25, 0
      %p171 = por %p169, %p170
      %p172 = scmp.ne.s32.totalorder %s164, %s166
      %p173 = scmp.eq.s32.totalorder %s30, 1
      %p174 = por %p172, %p173
      %p175 = scmp.ne.s32.totalorder %s166, %s167
      %p176 = scmp.eq.s32.totalorder %s30, 0
      %p177 = por %p175, %p176
      %p178 = scmp.ne.s32.totalorder %s166, %s167
      %p179 = scmp.eq.s32.totalorder %s31, 1
      %p180 = por %p178, %p179
      %p182 = scmp.ne.s32.totalorder %s167, %s181
      %p183 = scmp.eq.s32.totalorder %s31, 0
      %p184 = por %p182, %p183
      %s186 = sadd.s32 %s185, 1
      %p189 = scmp.eq.s32.totalorder %s25, 1
      %p190 = scmp.ne.s32.totalorder %s185, %s187
      %p191 = scmp.eq.s32.totalorder %s25, 0
      %p192 = por %p190, %p191
      %p193 = scmp.ne.s32.totalorder %s185, %s187
      %p194 = scmp.eq.s32.totalorder %s30, 1
      %p195 = por %p193, %p194
      %p196 = scmp.ne.s32.totalorder %s187, %s188
      %p197 = scmp.eq.s32.totalorder %s30, 0
      %p198 = por %p196, %p197
      %p199 = scmp.ne.s32.totalorder %s187, %s188
      %p200 = scmp.eq.s32.totalorder %s31, 1
      %p201 = por %p199, %p200
      %p203 = scmp.ne.s32.totalorder %s188, %s202
      %p204 = scmp.eq.s32.totalorder %s31, 0
      %p205 = por %p203, %p204
      %s207 = sadd.s32 %s206, 1
      %p210 = scmp.eq.s32.totalorder %s25, 1
      %p211 = scmp.ne.s32.totalorder %s206, %s208
      %p212 = scmp.eq.s32.totalorder %s25, 0
      %p213 = por %p211, %p212
      %p214 = scmp.ne.s32.totalorder %s206, %s208
      %p215 = scmp.eq.s32.totalorder %s30, 1
      %p216 = por %p214, %p215
      %p217 = scmp.ne.s32.totalorder %s208, %s209
      %p218 = scmp.eq.s32.totalorder %s30, 0
      %p219 = por %p217, %p218
      %p220 = scmp.ne.s32.totalorder %s208, %s209
      %p221 = scmp.eq.s32.totalorder %s31, 1
      %p222 = por %p220, %p221
      %p224 = scmp.ne.s32.totalorder %s209, %s223
      %p225 = scmp.eq.s32.totalorder %s31, 0
      %p226 = por %p224, %p225
      %s228 = sadd.s32 %s227, 1
      %p231 = scmp.eq.s32.totalorder %s25, 1
      %p232 = scmp.ne.s32.totalorder %s227, %s229
      %p233 = scmp.eq.s32.totalorder %s25, 0
      %p234 = por %p232, %p233
      %p235 = scmp.ne.s32.totalorder %s227, %s229
      %p236 = scmp.eq.s32.totalorder %s30, 1
      %p237 = por %p235, %p236
      %p238 = scmp.ne.s32.totalorder %s229, %s230
      %p239 = scmp.eq.s32.totalorder %s30, 0
      %p240 = por %p238, %p239
      %p241 = scmp.ne.s32.totalorder %s229, %s230
      %p242 = scmp.eq.s32.totalorder %s31, 1
      %p243 = por %p241, %p242
      %p245 = scmp.ne.s32.totalorder %s230, %s244
      %p246 = scmp.eq.s32.totalorder %s31, 0
      %p247 = por %p245, %p246
      %s249 = sadd.s32 %s248, 1
      %p252 = scmp.eq.s32.totalorder %s25, 1
      %p253 = scmp.ne.s32.totalorder %s248, %s250
      %p254 = scmp.eq.s32.totalorder %s25, 0
      %p255 = por %p253, %p254
      %p256 = scmp.ne.s32.totalorder %s248, %s250
      %p257 = scmp.eq.s32.totalorder %s30, 1
      %p258 = por %p256, %p257
      %p259 = scmp.ne.s32.totalorder %s250, %s251
      %p260 = scmp.eq.s32.totalorder %s30, 0
      %p261 = por %p259, %p260
      %p262 = scmp.ne.s32.totalorder %s250, %s251
      %p263 = scmp.eq.s32.totalorder %s31, 1
      %p264 = por %p262, %p263
      %p266 = scmp.ne.s32.totalorder %s251, %s265
      %p267 = scmp.eq.s32.totalorder %s31, 0
      %p268 = por %p266, %p267
      %s269 = ssub.s32 %s25, %s32
      %p270 = scmp.eq.s32.totalorder %s269, 0
      %s272 = sadd.s32 %s271, 1
      %s273 = scalar_select %p270, %s271, %s272
      %p276 = pneg %p270
      %p277 = scmp.eq.s32.totalorder %s25, 1
      %p278 = por %p276, %p277
      %p279 = scmp.ne.s32.totalorder %s271, %s274
      %p280 = scmp.eq.s32.totalorder %s25, 0
      %p281 = por %p279, %p280
      %p282 = scmp.ne.s32.totalorder %s271, %s274
      %p283 = scmp.eq.s32.totalorder %s30, 1
      %p284 = por %p282, %p283
      %p285 = scmp.ne.s32.totalorder %s274, %s275
      %p286 = scmp.eq.s32.totalorder %s30, 0
      %p287 = por %p285, %p286
      %p288 = scmp.ne.s32.totalorder %s274, %s275
      %p289 = scmp.eq.s32.totalorder %s31, 1
      %p290 = por %p288, %p289
      %p292 = scmp.ne.s32.totalorder %s275, %s291
      %p293 = scmp.eq.s32.totalorder %s31, 0
      %p294 = por %p292, %p293
      %p295 = scmp.le.s32.totalorder 1, %s25
      %p296 = scmp.lt.s32.totalorder %s25, 3
      %p297 = pnand %p295, %p296
      %p298 = pneg %p297
      // Predicated region
      $region9: #{tpu_custom_call.1} parent=5 // pred_check
        _
      $region10: #{tpu_custom_call.1} parent=5 // pred_check_branch
        %300 = sbr.rel (%p297) target = $region12
      $region11: #{tpu_custom_call.1} parent=5 // pred_region
        %s301 = ssub.s32 %s25, 1
        // Predicated region
        $region13: #{tpu_custom_call.1} parent=11 // pred_check
          %p302 = pneg %p72
        $region14: #{tpu_custom_call.1} parent=11 // pred_check_branch
          %304 = sbr.rel (%p302) target = $region16
        $region15: #{tpu_custom_call.1} parent=11 // pred_region
          %306 = vsyncadd [#allocation6], 0
          %s307 = sshll.u32 %s1, 4
          %s308 = int_to_ptr.hbm [resolvable:$true] %s307
          %s309 = sshll.u32 [#allocation5], 4
          %s310 = int_to_ptr.vmem [resolvable:$true] %s309
          %315 = dma.hbm_to_vmem [thread:$0]  %s308, 3072, %s310, [#allocation6], 192, 192, 12
        $region16: #{tpu_custom_call.1} parent=11 // pred_fallthru
          _
        // Predicated region
        $region17: #{tpu_custom_call.1} parent=11 // pred_check
          %p316 = pneg %p93
        $region18: #{tpu_custom_call.1} parent=11 // pred_check_branch
          %318 = sbr.rel (%p316) target = $region20
        $region19: #{tpu_custom_call.1} parent=11 // pred_region
          %320 = vsyncadd [#allocation6], 0
          %s321 = sshll.u32 %s2, 4
          %s322 = int_to_ptr.hbm [resolvable:$true] %s321
          %s323 = sshll.u32 [#allocation7], 4
          %s324 = int_to_ptr.vmem [resolvable:$true] %s323
          %329 = dma.hbm_to_vmem [thread:$0]  %s322, 1024, %s324, [#allocation6], 64, 64, 4
        $region20: #{tpu_custom_call.1} parent=11 // pred_fallthru
          _
        // Predicated region
        $region21: #{tpu_custom_call.1} parent=11 // pred_check
          %p330 = pneg %p114
        $region22: #{tpu_custom_call.1} parent=11 // pred_check_branch
          %332 = sbr.rel (%p330) target = $region24
        $region23: #{tpu_custom_call.1} parent=11 // pred_region
          %334 = vsyncadd [#allocation9], 0
          %s335 = sshll.u32 %s3, 4
          %s336 = int_to_ptr.hbm [resolvable:$true] %s335
          %s337 = sshll.u32 [#allocation8], 4
          %s338 = int_to_ptr.vmem [resolvable:$true] %s337
          %343 = dma.hbm_to_vmem [thread:$0]  %s336, 2048, %s338, [#allocation9], 128, 128, 8
        $region24: #{tpu_custom_call.1} parent=11 // pred_fallthru
          _
        // Predicated region
        $region25: #{tpu_custom_call.1} parent=11 // pred_check
          %p344 = pneg %p135
        $region26: #{tpu_custom_call.1} parent=11 // pred_check_branch
          %346 = sbr.rel (%p344) target = $region28
        $region27: #{tpu_custom_call.1} parent=11 // pred_region
          _
        $region28: #{tpu_custom_call.1} parent=11 // pred_fallthru
          _
        // Predicated region
        $region29: #{tpu_custom_call.1} parent=11 // pred_check
          %p347 = pneg %p156
        $region30: #{tpu_custom_call.1} parent=11 // pred_check_branch
          %349 = sbr.rel (%p347) target = $region32
        $region31: #{tpu_custom_call.1} parent=11 // pred_region
          %351 = vsyncadd [#allocation9], 0
          %s352 = sshll.u32 %s5, 4
          %s353 = int_to_ptr.hbm [resolvable:$true] %s352
          %s354 = sshll.u32 [#allocation10], 4
          %s355 = int_to_ptr.vmem [resolvable:$true] %s354
          %360 = dma.hbm_to_vmem [thread:$0]  %s353, 2048, %s355, [#allocation9], 64, 64, 4
        $region32: #{tpu_custom_call.1} parent=11 // pred_fallthru
          _
        // Predicated region
        $region33: #{tpu_custom_call.1} parent=11 // pred_check
          %p361 = pneg %p177
        $region34: #{tpu_custom_call.1} parent=11 // pred_check_branch
          %363 = sbr.rel (%p361) target = $region36
        $region35: #{tpu_custom_call.1} parent=11 // pred_region
          _
        $region36: #{tpu_custom_call.1} parent=11 // pred_fallthru
          _
        // Predicated region
        $region37: #{tpu_custom_call.1} parent=11 // pred_check
          %p364 = pneg %p198
        $region38: #{tpu_custom_call.1} parent=11 // pred_check_branch
          %366 = sbr.rel (%p364) target = $region40
        $region39: #{tpu_custom_call.1} parent=11 // pred_region
          _
        $region40: #{tpu_custom_call.1} parent=11 // pred_fallthru
          _
        // Predicated region
        $region41: #{tpu_custom_call.1} parent=11 // pred_check
          %p367 = pneg %p219
        $region42: #{tpu_custom_call.1} parent=11 // pred_check_branch
          %369 = sbr.rel (%p367) target = $region44
        $region43: #{tpu_custom_call.1} parent=11 // pred_region
          _
        $region44: #{tpu_custom_call.1} parent=11 // pred_fallthru
          _
        // Predicated region
        $region45: #{tpu_custom_call.1} parent=11 // pred_check
          %p370 = pneg %p240
        $region46: #{tpu_custom_call.1} parent=11 // pred_check_branch
          %372 = sbr.rel (%p370) target = $region48
        $region47: #{tpu_custom_call.1} parent=11 // pred_region
          _
        $region48: #{tpu_custom_call.1} parent=11 // pred_fallthru
          _
        // Predicated region
        $region49: #{tpu_custom_call.1} parent=11 // pred_check
          %p373 = pneg %p261
        $region50: #{tpu_custom_call.1} parent=11 // pred_check_branch
          %375 = sbr.rel (%p373) target = $region52
        $region51: #{tpu_custom_call.1} parent=11 // pred_region
          _
        $region52: #{tpu_custom_call.1} parent=11 // pred_fallthru
          _
      $region12: #{tpu_custom_call.1} parent=5 // pred_fallthru
        _
      %p376 = scmp.lt.s32.totalorder %s25, 2
      // Predicated region
      $region53: #{tpu_custom_call.1} parent=5 // pred_check
        %p377 = pneg %p376
      $region54: #{tpu_custom_call.1} parent=5 // pred_check_branch
        %379 = sbr.rel (%p377) target = $region56
      $region55: #{tpu_custom_call.1} parent=5 // pred_region
        // Predicated region
        $region57: #{tpu_custom_call.1} parent=55 // pred_check
          %p380 = pneg %p45
        $region58: #{tpu_custom_call.1} parent=55 // pred_check_branch
          %382 = sbr.rel (%p380) target = $region60
        $region59: #{tpu_custom_call.1} parent=55 // pred_region
          %s383 = sand.u32 %s35, 1
          %s384 = scalar_lea.sflag [#allocation3], %s383
          %s385 = sand.u32 %s35, 1
          %s386 = smul.addr %s385, 16
          %s387 = scalar_lea.vmem [#allocation2], %s386
          %389 = vsyncadd %s384, 0
          %s390 = smul.addr %s25, 2
          %s391 = smul.addr %s390, 8
          %s392 = scalar_lea.hbm %s0, %s391
          %s393 = sshll.u32 %s392, 4
          %s394 = int_to_ptr.hbm [resolvable:$true] %s393
          %s395 = sshll.u32 %s387, 4
          %s396 = int_to_ptr.vmem [resolvable:$true] %s395
          %401 = dma.hbm_to_vmem [thread:$0]  %s394, 256, %s396, %s384, 128, 128, 8
        $region60: #{tpu_custom_call.1} parent=55 // pred_fallthru
          _
      $region56: #{tpu_custom_call.1} parent=5 // pred_fallthru
        _
      %p402 = scmp.le.s32.totalorder 1, %s25
      %p403 = scmp.lt.s32.totalorder %s25, 3
      %p404 = pnand %p402, %p403
      %p405 = pneg %p404
      // Predicated region
      $region61: #{tpu_custom_call.1} parent=5 // pred_check
        _
      $region62: #{tpu_custom_call.1} parent=5 // pred_check_branch
        %407 = sbr.rel (%p404) target = $region64
      $region63: #{tpu_custom_call.1} parent=5 // pred_region
        %s408 = ssub.s32 %s25, 1
        %s409 = sand.u32 %s38, 1
        %s410 = scalar_lea.sflag [#allocation3], %s409
        %s411 = sand.u32 %s38, 1
        %s412 = smul.addr %s411, 16
        %s413 = scalar_lea.vmem [#allocation2], %s412
        // Predicated region
        $region65: #{tpu_custom_call.1} parent=63 // pred_check
          %p414 = pneg %p51
        $region66: #{tpu_custom_call.1} parent=63 // pred_check_branch
          %416 = sbr.rel (%p414) target = $region68
        $region67: #{tpu_custom_call.1} parent=63 // pred_region
          %418 = dma.done %s410, 256
        $region68: #{tpu_custom_call.1} parent=63 // pred_fallthru
          _
        // Predicated region
        $region69: #{tpu_custom_call.1} parent=63 // pred_check
          %p419 = pneg %p72
        $region70: #{tpu_custom_call.1} parent=63 // pred_check_branch
          %421 = sbr.rel (%p419) target = $region72
        $region71: #{tpu_custom_call.1} parent=63 // pred_region
          %423 = dma.done [#allocation6], 3072
        $region72: #{tpu_custom_call.1} parent=63 // pred_fallthru
          _
        // Predicated region
        $region73: #{tpu_custom_call.1} parent=63 // pred_check
          %p424 = pneg %p93
        $region74: #{tpu_custom_call.1} parent=63 // pred_check_branch
          %426 = sbr.rel (%p424) target = $region76
        $region75: #{tpu_custom_call.1} parent=63 // pred_region
          %428 = dma.done [#allocation6], 1024
        $region76: #{tpu_custom_call.1} parent=63 // pred_fallthru
          _
        // Predicated region
        $region77: #{tpu_custom_call.1} parent=63 // pred_check
          %p429 = pneg %p114
        $region78: #{tpu_custom_call.1} parent=63 // pred_check_branch
          %431 = sbr.rel (%p429) target = $region80
        $region79: #{tpu_custom_call.1} parent=63 // pred_region
          %433 = dma.done [#allocation9], 2048
        $region80: #{tpu_custom_call.1} parent=63 // pred_fallthru
          _
        // Predicated region
        $region81: #{tpu_custom_call.1} parent=63 // pred_check
          %p434 = pneg %p156
        $region82: #{tpu_custom_call.1} parent=63 // pred_check_branch
          %436 = sbr.rel (%p434) target = $region84
        $region83: #{tpu_custom_call.1} parent=63 // pred_region
          %438 = dma.done [#allocation9], 2048
        $region84: #{tpu_custom_call.1} parent=63 // pred_fallthru
          _
        %s439 = sand.u32 %s38, 1
        %s440 = scalar_lea.sflag [#allocation3], %s439
        %s441 = sand.u32 %s38, 1
        %s442 = smul.addr %s441, 16
        %s443 = scalar_lea.vmem [#allocation2], %s442
        %p444 = pneg %p51
        %p445 = pneg %p48
        %p446 = pneg %p72
        %p447 = pneg %p69
        %p448 = pneg %p93
        %p449 = pneg %p90
        %p450 = pneg %p114
        %p451 = pneg %p111
        %p452 = pneg %p135
        %p453 = pneg %p132
        %p454 = pneg %p156
        %p455 = pneg %p153
        %p456 = pneg %p177
        %p457 = pneg %p174
        %p458 = pneg %p198
        %p459 = pneg %p195
        %p460 = pneg %p219
        %p461 = pneg %p216
        %p462 = pneg %p240
        %p463 = pneg %p237
        %p464 = pneg %p261
        %p465 = pneg %p258
        %p466 = pneg %p287
        %p467 = pneg %p284
        %s468 = sand.u32 %s274, 1
        %s469 = scalar_lea.sflag [#allocation4], %s468
        %s470 = sand.u32 %s274, 1
        %s471 = smul.addr %s470, 16
        %s472 = scalar_lea.vmem [#allocation11], %s471
        %v474 = vld [vmem:[%s413] sm:$0xff]
        %v475 = vld [vmem:[%s413 + $0x8] sm:$0xff]
        %v476 = vld [vmem:[%s7] sm:$0x1]
        %v477 = vld [vmem:[%s8] sm:$0x1]
        %478 = vadd.xlane.f32.xlu0 %v474
        %v479 = vpop.xlane.xlu0 %478
        %480 = vadd.xlane.f32.xlu0 %v475
        %v481 = vpop.xlane.xlu0 %480
        %v482 = vrcp.pop 128.0
        %v483 = vmul.f32 128.0, %v482
        %v484 = vsub.f32 1.0, %v483
        %v485 = vmul.f32 %v482, %v484
        %v486 = vadd.f32 %v482, %v485
        %vm487 = vweird.f32 %v482
        %v488 = vsel %vm487, %v482, %v486
        %v489 = vmul.f32 %v479, %v488
        %v490 = vmul.f32 %v481, %v488
        %v491 = vsub.f32 %v474, %v489
        %v492 = vsub.f32 %v475, %v490
        %v493 = vmul.f32 %v491, %v491
        %v494 = vmul.f32 %v492, %v492
        %495 = vadd.xlane.f32.xlu0 %v493
        %v496 = vpop.xlane.xlu0 %495
        %497 = vadd.xlane.f32.xlu0 %v494
        %v498 = vpop.xlane.xlu0 %497
        %v499 = vmul.f32 %v496, 0.007874016
        %v500 = vmul.f32 %v498, 0.007874016
        %v502 = vperm.slane %v476, 0
        %v504 = vmul.f32 %v502, %v491
        %v505 = vmul.f32 %v502, %v492
        %v506 = vrsqrt.pop %v499
        %v507 = vmul.f32 %v506, %v499
        %v508 = vmul.f32 %v507, %v506
        %v509 = vmul.f32 0.5, %v508
        %v510 = vsub.f32 1.5, %v509
        %v511 = vmul.f32 %v506, %v510
        %v512 = vmul.f32 %v499, %v511
        %vm513 = vcmp.eq.f32.partialorder %v499, inf
        %v514 = vsel %vm513, %v499, %v512
        %vm515 = vcmp.eq.f32.partialorder %v499, 0.0
        %v516 = vand.u32 %v499, 2147483648
        %v517 = vsel %vm515, %v516, %v514
        %v518 = vrsqrt.pop %v500
        %v519 = vmul.f32 %v518, %v500
        %v520 = vmul.f32 %v519, %v518
        %v521 = vmul.f32 0.5, %v520
        %v522 = vsub.f32 1.5, %v521
        %v523 = vmul.f32 %v518, %v522
        %v524 = vmul.f32 %v500, %v523
        %vm525 = vcmp.eq.f32.partialorder %v500, inf
        %v526 = vsel %vm525, %v500, %v524
        %vm527 = vcmp.eq.f32.partialorder %v500, 0.0
        %v528 = vand.u32 %v500, 2147483648
        %v529 = vsel %vm527, %v528, %v526
        %v530 = vadd.f32 %v517, 1e-06
        %v531 = vadd.f32 %v529, 1e-06
        %v532 = vrcp.pop %v530
        %v533 = vmul.f32 %v530, %v532
        %v534 = vsub.f32 1.0, %v533
        %v535 = vmul.f32 %v532, %v534
        %v536 = vadd.f32 %v532, %v535
        %vm537 = vweird.f32 %v530
        %vm538 = vweird.f32 %v532
        %vm539 = vmor %vm537, %vm538
        %v540 = vsel %vm539, %v532, %v536
        %v541 = vand.u32 2147483647, %v530
        %vm542 = vcmp.eq.f32.partialorder %v541, 8.507059e+37
        %v543 = vand.u32 %v530, 2147483648
        %v544 = vor.u32 1.1754944e-38, %v543
        %v545 = vsel %vm542, %v544, %v540
        %v546 = vmul.f32 %v504, %v545
        %v547 = vrcp.pop %v531
        %v548 = vmul.f32 %v531, %v547
        %v549 = vsub.f32 1.0, %v548
        %v550 = vmul.f32 %v547, %v549
        %v551 = vadd.f32 %v547, %v550
        %vm552 = vweird.f32 %v531
        %vm553 = vweird.f32 %v547
        %vm554 = vmor %vm552, %vm553
        %v555 = vsel %vm554, %v547, %v551
        %v556 = vand.u32 2147483647, %v531
        %vm557 = vcmp.eq.f32.partialorder %v556, 8.507059e+37
        %v558 = vand.u32 %v531, 2147483648
        %v559 = vor.u32 1.1754944e-38, %v558
        %v560 = vsel %vm557, %v559, %v555
        %v561 = vmul.f32 %v505, %v560
        %v563 = vperm.slane %v477, 0
        %v565 = vadd.f32 %v546, %v563
        %v566 = vadd.f32 %v561, %v563
        %v567 = vpack.c.bf16 %v566, %v565
        %v568 = vld [vmem:[#allocation5] sm:$0xff]
        %v569 = vld [vmem:[#allocation5 + $0x8] sm:$0xf]
        %v570 = vld [vmem:[#allocation5 + $0xc] sm:$0xff]
        %v571 = vld [vmem:[#allocation5 + $0x14] sm:$0xf]
        %v572 = vld [vmem:[#allocation5 + $0x18] sm:$0xff]
        %v573 = vld [vmem:[#allocation5 + $0x20] sm:$0xf]
        %v574 = vld [vmem:[#allocation5 + $0x24] sm:$0xff]
        %v575 = vld [vmem:[#allocation5 + $0x2c] sm:$0xf]
        %v576 = vld [vmem:[#allocation5 + $0x30] sm:$0xff]
        %v577 = vld [vmem:[#allocation5 + $0x38] sm:$0xf]
        %v578 = vld [vmem:[#allocation5 + $0x3c] sm:$0xff]
        %v579 = vld [vmem:[#allocation5 + $0x44] sm:$0xf]
        %v580 = vld [vmem:[#allocation5 + $0x48] sm:$0xff]
        %v581 = vld [vmem:[#allocation5 + $0x50] sm:$0xf]
        %v582 = vld [vmem:[#allocation5 + $0x54] sm:$0xff]
        %v583 = vld [vmem:[#allocation5 + $0x5c] sm:$0xf]
        %v584 = vld [vmem:[#allocation5 + $0x60] sm:$0xff]
        %v585 = vld [vmem:[#allocation5 + $0x68] sm:$0xf]
        %v586 = vld [vmem:[#allocation5 + $0x6c] sm:$0xff]
        %v587 = vld [vmem:[#allocation5 + $0x74] sm:$0xf]
        %v588 = vld [vmem:[#allocation5 + $0x78] sm:$0xff]
        %v589 = vld [vmem:[#allocation5 + $0x80] sm:$0xf]
        %v590 = vld [vmem:[#allocation5 + $0x84] sm:$0xff]
        %v591 = vld [vmem:[#allocation5 + $0x8c] sm:$0xf]
        %v592 = vld [vmem:[#allocation5 + $0x90] sm:$0xff]
        %v593 = vld [vmem:[#allocation5 + $0x98] sm:$0xf]
        %v594 = vld [vmem:[#allocation5 + $0x9c] sm:$0xff]
        %v595 = vld [vmem:[#allocation5 + $0xa4] sm:$0xf]
        %v596 = vld [vmem:[#allocation5 + $0xa8] sm:$0xff]
        %v597 = vld [vmem:[#allocation5 + $0xb0] sm:$0xf]
        %v598 = vld [vmem:[#allocation5 + $0xb4] sm:$0xff]
        %v599 = vld [vmem:[#allocation5 + $0xbc] sm:$0xf]
        %v632 = vunpack.c.l.b16 %v568
        %v633 = vunpack.c.h.b16 %v568
        %v634 = vunpack.c.l.b16 %v569
        %v635 = vunpack.c.l.b16 %v570
        %v636 = vunpack.c.h.b16 %v570
        %v637 = vunpack.c.l.b16 %v571
        %v638 = vunpack.c.l.b16 %v572
        %v639 = vunpack.c.h.b16 %v572
        %v640 = vunpack.c.l.b16 %v573
        %v641 = vunpack.c.l.b16 %v574
        %v642 = vunpack.c.h.b16 %v574
        %v643 = vunpack.c.l.b16 %v575
        %v644 = vunpack.c.l.b16 %v576
        %v645 = vunpack.c.h.b16 %v576
        %v646 = vunpack.c.l.b16 %v577
        %v647 = vunpack.c.l.b16 %v578
        %v648 = vunpack.c.h.b16 %v578
        %v649 = vunpack.c.l.b16 %v579
        %v650 = vunpack.c.l.b16 %v580
        %v651 = vunpack.c.h.b16 %v580
        %v652 = vunpack.c.l.b16 %v581
        %v653 = vunpack.c.l.b16 %v582
        %v654 = vunpack.c.h.b16 %v582
        %v655 = vunpack.c.l.b16 %v583
        %v656 = vunpack.c.l.b16 %v584
        %v657 = vunpack.c.h.b16 %v584
        %v658 = vunpack.c.l.b16 %v585
        %v659 = vunpack.c.l.b16 %v586
        %v660 = vunpack.c.h.b16 %v586
        %v661 = vunpack.c.l.b16 %v587
        %v662 = vunpack.c.l.b16 %v588
        %v663 = vunpack.c.h.b16 %v588
        %v664 = vunpack.c.l.b16 %v589
        %v665 = vunpack.c.l.b16 %v590
        %v666 = vunpack.c.h.b16 %v590
        %v667 = vunpack.c.l.b16 %v591
        %v668 = vunpack.c.l.b16 %v592
        %v669 = vunpack.c.h.b16 %v592
        %v670 = vunpack.c.l.b16 %v593
        %v671 = vunpack.c.l.b16 %v594
        %v672 = vunpack.c.h.b16 %v594
        %v673 = vunpack.c.l.b16 %v595
        %v674 = vunpack.c.l.b16 %v596
        %v675 = vunpack.c.h.b16 %v596
        %v676 = vunpack.c.l.b16 %v597
        %v677 = vunpack.c.l.b16 %v598
        %v678 = vunpack.c.h.b16 %v598
        %v679 = vunpack.c.l.b16 %v599
        %v680 = vpack.c.b16 %v635, %v632
        %v681 = vpack.c.b16 %v636, %v633
        %v682 = vpack.c.b16 %v637, %v634
        %v683 = vpack.c.b16 %v641, %v638
        %v684 = vpack.c.b16 %v642, %v639
        %v685 = vpack.c.b16 %v643, %v640
        %v686 = vpack.c.b16 %v647, %v644
        %v687 = vpack.c.b16 %v648, %v645
        %v688 = vpack.c.b16 %v649, %v646
        %v689 = vpack.c.b16 %v653, %v650
        %v690 = vpack.c.b16 %v654, %v651
        %v691 = vpack.c.b16 %v655, %v652
        %v692 = vpack.c.b16 %v659, %v656
        %v693 = vpack.c.b16 %v660, %v657
        %v694 = vpack.c.b16 %v661, %v658
        %v695 = vpack.c.b16 %v665, %v662
        %v696 = vpack.c.b16 %v666, %v663
        %v697 = vpack.c.b16 %v667, %v664
        %v698 = vpack.c.b16 %v671, %v668
        %v699 = vpack.c.b16 %v672, %v669
        %v700 = vpack.c.b16 %v673, %v670
        %v701 = vpack.c.b16 %v677, %v674
        %v702 = vpack.c.b16 %v678, %v675
        %v703 = vpack.c.b16 %v679, %v676
        %728 = vmatpush.bf16.msra.mxu0 %v701
        %729 = vmatpush.bf16.msra.mxu0 %v698
        %730 = vmatpush.bf16.msra.mxu0 %v695
        %731 = vmatpush.bf16.msra.mxu0 %v692
        %732 = vmatpush.bf16.msra.mxu0 %v689
        %733 = vmatpush.bf16.msra.mxu0 %v686
        %734 = vmatpush.bf16.msra.mxu0 %v683
        %735 = vmatpush.bf16.msra.mxu0 %v680
        %736 = vmatmul.bf16.gmra.mxu0 %v567
        %v737 = vpop.f32.mrf.mxu0
        %v738 = vadd.f32 0.0, %v737
        %v739 = vpop.f32.mrf.mxu0
        %v740 = vadd.f32 0.0, %v739
        %741 = vdwg.mxu0
        %742 = vmatpush.bf16.msra.mxu0 %v702
        %743 = vmatpush.bf16.msra.mxu0 %v699
        %744 = vmatpush.bf16.msra.mxu0 %v696
        %745 = vmatpush.bf16.msra.mxu0 %v693
        %746 = vmatpush.bf16.msra.mxu0 %v690
        %747 = vmatpush.bf16.msra.mxu0 %v687
        %748 = vmatpush.bf16.msra.mxu0 %v684
        %749 = vmatpush.bf16.msra.mxu0 %v681
        %750 = vmatmul.bf16.gmra.mxu0 %v567
        %v751 = vpop.f32.mrf.mxu0
        %v752 = vadd.f32 0.0, %v751
        %v753 = vpop.f32.mrf.mxu0
        %v754 = vadd.f32 0.0, %v753
        %755 = vdwg.mxu0
        %756 = vmatpush.bf16.msra.mxu0 %v703
        %757 = vmatpush.bf16.msra.mxu0 %v700
        %758 = vmatpush.bf16.msra.mxu0 %v697
        %759 = vmatpush.bf16.msra.mxu0 %v694
        %760 = vmatpush.bf16.msra.mxu0 %v691
        %761 = vmatpush.bf16.msra.mxu0 %v688
        %762 = vmatpush.bf16.msra.mxu0 %v685
        %763 = vmatpush.bf16.msra.mxu0 %v682
        %764 = vmatmul.bf16.gmra.mxu0 %v567
        %v765 = vpop.f32.mrf.mxu0
        %v766 = vadd.f32 0.0, %v765
        %v767 = vpop.f32.mrf.mxu0
        %v768 = vadd.f32 0.0, %v767
        %769 = vdwg.mxu0
        %v770 = vpack.c.bf16 %v752, %v738
        %v771 = vpack.c.bf16 %v766, %v766
        %v772 = vpack.c.bf16 %v754, %v740
        %v773 = vpack.c.bf16 %v768, %v768
        %v776 = vunpack.c.l.b16 %v770
        %v777 = vunpack.c.l.b16 %v772
        %v778 = vpack.c.b16 %v777, %v776
        %v779 = vunpack.c.h.b16 %v770
        %v780 = vunpack.c.h.b16 %v772
        %v781 = vpack.c.b16 %v780, %v779
        %vm782 = vcmask 261120
        %v784 = vsel %vm782, %v778, 0
        %v787 = vsel %vm782, %v781, 0
        %789 = vmatpush.bf16.xpose.msra.mxu0 0
        %790 = vmatpush.bf16.xpose.msra.mxu0 0
        %791 = vmatpush.bf16.xpose.msra.mxu0 0
        %792 = vmatpush.bf16.xpose.msra.mxu0 0
        %793 = vmatpush.bf16.xpose.msra.mxu0 0
        %794 = vmatpush.bf16.xpose.msra.mxu0 0
        %795 = vmatpush.bf16.xpose.msra.mxu0 0
        %796 = vmatpush.bf16.xpose.msra.mxu0 %v787
        %797 = vmatmul.bf16.gmra.mxu0 %v784
        %v798 = vpop.f32.mrf.mxu0
        %v799 = vadd.f32 0.0, %v798
        %v800 = vpop.f32.mrf.mxu0
        %v801 = vadd.f32 0.0, %v800
        %802 = vdwg.mxu0
        %vm803 = vcmask 130048
        %v804 = vsel %vm803, %v799, -inf
        %805 = vmax.xlane.f32.xlu0 %v804
        %v806 = vpop.xlane.xlu0 %805
        %v807 = vsel %vm803, %v801, -inf
        %808 = vmax.xlane.f32.xlu0 %v807
        %v809 = vpop.xlane.xlu0 %808
        %v810 = vsub.f32 %v799, %v806
        %v811 = vsub.f32 %v801, %v809
        %v812 = vmul.f32 %v810, 1.442695
        %v813 = vpow.pop %v812
        %v814 = vmul.f32 %v811, 1.442695
        %v815 = vpow.pop %v814
        %v816 = vpack.c.bf16 %v815, %v813
        %v819 = vunpack.c.l.b16 %v771
        %v820 = vunpack.c.l.b16 %v773
        %v821 = vpack.c.b16 %v820, %v819
        %v824 = vsel %vm803, %v816, 0
        %826 = vmatpush.bf16.msra.mxu0 0
        %827 = vmatpush.bf16.msra.mxu0 0
        %828 = vmatpush.bf16.msra.mxu0 0
        %829 = vmatpush.bf16.msra.mxu0 0
        %830 = vmatpush.bf16.msra.mxu0 0
        %831 = vmatpush.bf16.msra.mxu0 0
        %832 = vmatpush.bf16.msra.mxu0 0
        %833 = vmatpush.bf16.msra.mxu0 %v821
        %834 = vmatmul.bf16.gmra.mxu0 %v824
        %v835 = vpop.f32.mrf.mxu0
        %v836 = vadd.f32 0.0, %v835
        %v837 = vpop.f32.mrf.mxu0
        %v838 = vadd.f32 0.0, %v837
        %839 = vdwg.mxu0
        %v840 = vsel %vm803, %v813, 0.0
        %841 = vadd.xlane.f32.xlu0 %v840
        %v842 = vpop.xlane.xlu0 %841
        %v843 = vsel %vm803, %v815, 0.0
        %844 = vadd.xlane.f32.xlu0 %v843
        %v845 = vpop.xlane.xlu0 %844
        %v846 = vrcp.pop %v842
        %v847 = vrcp.pop %v845
        %v848 = vmul.f32 %v836, %v846
        %v849 = vmul.f32 %v838, %v847
        %v850 = vpack.c.bf16 %v849, %v848
        %v851 = vld [vmem:[#allocation7] sm:$0xf]
        %v852 = vld [vmem:[#allocation7 + $0x4] sm:$0xf]
        %v853 = vld [vmem:[#allocation7 + $0x8] sm:$0xf]
        %v854 = vld [vmem:[#allocation7 + $0xc] sm:$0xf]
        %855 = vrot.lane.b32.xlu0 %v778, 96
        %v856 = vpop.permute.xlu0 %855
        %857 = vrot.lane.b32.xlu0 %v781, 96
        %v858 = vpop.permute.xlu0 %857
        %v860 = vsel %vm782, %v856, 0
        %v863 = vsel %vm782, %v858, 0
        %865 = vmatpush.bf16.xpose.msra.mxu0 0
        %866 = vmatpush.bf16.xpose.msra.mxu0 0
        %867 = vmatpush.bf16.xpose.msra.mxu0 0
        %868 = vmatpush.bf16.xpose.msra.mxu0 0
        %869 = vmatpush.bf16.xpose.msra.mxu0 0
        %870 = vmatpush.bf16.xpose.msra.mxu0 0
        %871 = vmatpush.bf16.xpose.msra.mxu0 0
        %872 = vmatpush.bf16.xpose.msra.mxu0 %v863
        %873 = vmatmul.bf16.gmra.mxu0 %v860
        %v874 = vpop.f32.mrf.mxu0
        %v875 = vadd.f32 0.0, %v874
        %v876 = vpop.f32.mrf.mxu0
        %v877 = vadd.f32 0.0, %v876
        %878 = vdwg.mxu0
        %v879 = vsel %vm803, %v875, -inf
        %880 = vmax.xlane.f32.xlu0 %v879
        %v881 = vpop.xlane.xlu0 %880
        %v882 = vsel %vm803, %v877, -inf
        %883 = vmax.xlane.f32.xlu0 %v882
        %v884 = vpop.xlane.xlu0 %883
        %v885 = vsub.f32 %v875, %v881
        %v886 = vsub.f32 %v877, %v884
        %v887 = vmul.f32 %v885, 1.442695
        %v888 = vpow.pop %v887
        %v889 = vmul.f32 %v886, 1.442695
        %v890 = vpow.pop %v889
        %v891 = vpack.c.bf16 %v890, %v888
        %892 = vrot.lane.b32.xlu0 %v821, 96
        %v893 = vpop.permute.xlu0 %892
        %v896 = vsel %vm803, %v891, 0
        %898 = vmatpush.bf16.msra.mxu0 0
        %899 = vmatpush.bf16.msra.mxu0 0
        %900 = vmatpush.bf16.msra.mxu0 0
        %901 = vmatpush.bf16.msra.mxu0 0
        %902 = vmatpush.bf16.msra.mxu0 0
        %903 = vmatpush.bf16.msra.mxu0 0
        %904 = vmatpush.bf16.msra.mxu0 0
        %905 = vmatpush.bf16.msra.mxu0 %v893
        %906 = vmatmul.bf16.gmra.mxu0 %v896
        %v907 = vpop.f32.mrf.mxu0
        %v908 = vadd.f32 0.0, %v907
        %v909 = vpop.f32.mrf.mxu0
        %v910 = vadd.f32 0.0, %v909
        %911 = vdwg.mxu0
        %v912 = vsel %vm803, %v888, 0.0
        %913 = vadd.xlane.f32.xlu0 %v912
        %v914 = vpop.xlane.xlu0 %913
        %v915 = vsel %vm803, %v890, 0.0
        %916 = vadd.xlane.f32.xlu0 %v915
        %v917 = vpop.xlane.xlu0 %916
        %v918 = vrcp.pop %v914
        %v919 = vrcp.pop %v917
        %v920 = vmul.f32 %v908, %v918
        %v921 = vmul.f32 %v910, %v919
        %v922 = vpack.c.bf16 %v921, %v920
        %s923 = scalar_lea.vmem [#allocation7], 16
        %v924 = vld [vmem:[%s923] sm:$0xf]
        %v925 = vld [vmem:[%s923 + $0x4] sm:$0xf]
        %v926 = vld [vmem:[%s923 + $0x8] sm:$0xf]
        %v927 = vld [vmem:[%s923 + $0xc] sm:$0xf]
        %v932 = vunpack.c.l.b16 %v924
        %v933 = vunpack.c.l.b16 %v925
        %v934 = vunpack.c.l.b16 %v926
        %v935 = vunpack.c.l.b16 %v927
        %v936 = vpack.c.b16 %v933, %v932
        %v937 = vpack.c.b16 %v935, %v934
        %v941 = vsel %vm782, %v922, 0
        %943 = vmatpush.bf16.msra.mxu0 0
        %944 = vmatpush.bf16.msra.mxu0 0
        %945 = vmatpush.bf16.msra.mxu0 0
        %946 = vmatpush.bf16.msra.mxu0 0
        %947 = vmatpush.bf16.msra.mxu0 0
        %948 = vmatpush.bf16.msra.mxu0 0
        %949 = vmatpush.bf16.msra.mxu0 %v937
        %950 = vmatpush.bf16.msra.mxu0 %v936
        %951 = vmatmul.bf16.gmra.mxu0 %v941
        %v952 = vpop.f32.mrf.mxu0
        %v953 = vadd.f32 0.0, %v952
        %v954 = vpop.f32.mrf.mxu0
        %v955 = vadd.f32 0.0, %v954
        %956 = vdwg.mxu0
        %v961 = vunpack.c.l.b16 %v851
        %v962 = vunpack.c.l.b16 %v852
        %v963 = vunpack.c.l.b16 %v853
        %v964 = vunpack.c.l.b16 %v854
        %v965 = vpack.c.b16 %v962, %v961
        %v966 = vpack.c.b16 %v964, %v963
        %v970 = vsel %vm782, %v850, 0
        %972 = vmatpush.bf16.msra.mxu0 0
        %973 = vmatpush.bf16.msra.mxu0 0
        %974 = vmatpush.bf16.msra.mxu0 0
        %975 = vmatpush.bf16.msra.mxu0 0
        %976 = vmatpush.bf16.msra.mxu0 0
        %977 = vmatpush.bf16.msra.mxu0 0
        %978 = vmatpush.bf16.msra.mxu0 %v966
        %979 = vmatpush.bf16.msra.mxu0 %v965
        %980 = vmatmul.bf16.gmra.mxu0 %v970
        %v981 = vpop.f32.mrf.mxu0
        %v982 = vadd.f32 %v953, %v981
        %v983 = vpop.f32.mrf.mxu0
        %v984 = vadd.f32 %v955, %v983
        %985 = vdwg.mxu0
        %986 = vrot.lane.b32.xlu0 %v778, 64
        %v987 = vpop.permute.xlu0 %986
        %988 = vrot.lane.b32.xlu0 %v781, 64
        %v989 = vpop.permute.xlu0 %988
        %v991 = vsel %vm782, %v987, 0
        %v994 = vsel %vm782, %v989, 0
        %996 = vmatpush.bf16.xpose.msra.mxu0 0
        %997 = vmatpush.bf16.xpose.msra.mxu0 0
        %998 = vmatpush.bf16.xpose.msra.mxu0 0
        %999 = vmatpush.bf16.xpose.msra.mxu0 0
        %1000 = vmatpush.bf16.xpose.msra.mxu0 0
        %1001 = vmatpush.bf16.xpose.msra.mxu0 0
        %1002 = vmatpush.bf16.xpose.msra.mxu0 0
        %1003 = vmatpush.bf16.xpose.msra.mxu0 %v994
        %1004 = vmatmul.bf16.gmra.mxu0 %v991
        %v1005 = vpop.f32.mrf.mxu0
        %v1006 = vadd.f32 0.0, %v1005
        %v1007 = vpop.f32.mrf.mxu0
        %v1008 = vadd.f32 0.0, %v1007
        %1009 = vdwg.mxu0
        %v1010 = vsel %vm803, %v1006, -inf
        %1011 = vmax.xlane.f32.xlu0 %v1010
        %v1012 = vpop.xlane.xlu0 %1011
        %v1013 = vsel %vm803, %v1008, -inf
        %1014 = vmax.xlane.f32.xlu0 %v1013
        %v1015 = vpop.xlane.xlu0 %1014
        %v1016 = vsub.f32 %v1006, %v1012
        %v1017 = vsub.f32 %v1008, %v1015
        %v1018 = vmul.f32 %v1016, 1.442695
        %v1019 = vpow.pop %v1018
        %v1020 = vmul.f32 %v1017, 1.442695
        %v1021 = vpow.pop %v1020
        %v1022 = vpack.c.bf16 %v1021, %v1019
        %1023 = vrot.lane.b32.xlu0 %v821, 64
        %v1024 = vpop.permute.xlu0 %1023
        %v1027 = vsel %vm803, %v1022, 0
        %1029 = vmatpush.bf16.msra.mxu0 0
        %1030 = vmatpush.bf16.msra.mxu0 0
        %1031 = vmatpush.bf16.msra.mxu0 0
        %1032 = vmatpush.bf16.msra.mxu0 0
        %1033 = vmatpush.bf16.msra.mxu0 0
        %1034 = vmatpush.bf16.msra.mxu0 0
        %1035 = vmatpush.bf16.msra.mxu0 0
        %1036 = vmatpush.bf16.msra.mxu0 %v1024
        %1037 = vmatmul.bf16.gmra.mxu0 %v1027
        %v1038 = vpop.f32.mrf.mxu0
        %v1039 = vadd.f32 0.0, %v1038
        %v1040 = vpop.f32.mrf.mxu0
        %v1041 = vadd.f32 0.0, %v1040
        %1042 = vdwg.mxu0
        %v1043 = vsel %vm803, %v1019, 0.0
        %1044 = vadd.xlane.f32.xlu0 %v1043
        %v1045 = vpop.xlane.xlu0 %1044
        %v1046 = vsel %vm803, %v1021, 0.0
        %1047 = vadd.xlane.f32.xlu0 %v1046
        %v1048 = vpop.xlane.xlu0 %1047
        %v1049 = vrcp.pop %v1045
        %v1050 = vrcp.pop %v1048
        %v1051 = vmul.f32 %v1039, %v1049
        %v1052 = vmul.f32 %v1041, %v1050
        %v1053 = vpack.c.bf16 %v1052, %v1051
        %s1054 = scalar_lea.vmem [#allocation7], 32
        %v1055 = vld [vmem:[%s1054] sm:$0xf]
        %v1056 = vld [vmem:[%s1054 + $0x4] sm:$0xf]
        %v1057 = vld [vmem:[%s1054 + $0x8] sm:$0xf]
        %v1058 = vld [vmem:[%s1054 + $0xc] sm:$0xf]
        %v1063 = vunpack.c.l.b16 %v1055
        %v1064 = vunpack.c.l.b16 %v1056
        %v1065 = vunpack.c.l.b16 %v1057
        %v1066 = vunpack.c.l.b16 %v1058
        %v1067 = vpack.c.b16 %v1064, %v1063
        %v1068 = vpack.c.b16 %v1066, %v1065
        %v1072 = vsel %vm782, %v1053, 0
        %1074 = vmatpush.bf16.msra.mxu0 0
        %1075 = vmatpush.bf16.msra.mxu0 0
        %1076 = vmatpush.bf16.msra.mxu0 0
        %1077 = vmatpush.bf16.msra.mxu0 0
        %1078 = vmatpush.bf16.msra.mxu0 0
        %1079 = vmatpush.bf16.msra.mxu0 0
        %1080 = vmatpush.bf16.msra.mxu0 %v1068
        %1081 = vmatpush.bf16.msra.mxu0 %v1067
        %1082 = vmatmul.bf16.gmra.mxu0 %v1072
        %v1083 = vpop.f32.mrf.mxu0
        %v1084 = vadd.f32 0.0, %v1083
        %v1085 = vpop.f32.mrf.mxu0
        %v1086 = vadd.f32 0.0, %v1085
        %1087 = vdwg.mxu0
        %v1088 = vadd.f32 %v982, %v1084
        %v1089 = vadd.f32 %v984, %v1086
        %1090 = vrot.lane.b32.xlu0 %v778, 32
        %v1091 = vpop.permute.xlu0 %1090
        %1092 = vrot.lane.b32.xlu0 %v781, 32
        %v1093 = vpop.permute.xlu0 %1092
        %v1095 = vsel %vm782, %v1091, 0
        %v1098 = vsel %vm782, %v1093, 0
        %1100 = vmatpush.bf16.xpose.msra.mxu0 0
        %1101 = vmatpush.bf16.xpose.msra.mxu0 0
        %1102 = vmatpush.bf16.xpose.msra.mxu0 0
        %1103 = vmatpush.bf16.xpose.msra.mxu0 0
        %1104 = vmatpush.bf16.xpose.msra.mxu0 0
        %1105 = vmatpush.bf16.xpose.msra.mxu0 0
        %1106 = vmatpush.bf16.xpose.msra.mxu0 0
        %1107 = vmatpush.bf16.xpose.msra.mxu0 %v1098
        %1108 = vmatmul.bf16.gmra.mxu0 %v1095
        %v1109 = vpop.f32.mrf.mxu0
        %v1110 = vadd.f32 0.0, %v1109
        %v1111 = vpop.f32.mrf.mxu0
        %v1112 = vadd.f32 0.0, %v1111
        %1113 = vdwg.mxu0
        %v1114 = vsel %vm803, %v1110, -inf
        %1115 = vmax.xlane.f32.xlu0 %v1114
        %v1116 = vpop.xlane.xlu0 %1115
        %v1117 = vsel %vm803, %v1112, -inf
        %1118 = vmax.xlane.f32.xlu0 %v1117
        %v1119 = vpop.xlane.xlu0 %1118
        %v1120 = vsub.f32 %v1110, %v1116
        %v1121 = vsub.f32 %v1112, %v1119
        %v1122 = vmul.f32 %v1120, 1.442695
        %v1123 = vpow.pop %v1122
        %v1124 = vmul.f32 %v1121, 1.442695
        %v1125 = vpow.pop %v1124
        %v1126 = vpack.c.bf16 %v1125, %v1123
        %1127 = vrot.lane.b32.xlu0 %v821, 32
        %v1128 = vpop.permute.xlu0 %1127
        %v1131 = vsel %vm803, %v1126, 0
        %1133 = vmatpush.bf16.msra.mxu0 0
        %1134 = vmatpush.bf16.msra.mxu0 0
        %1135 = vmatpush.bf16.msra.mxu0 0
        %1136 = vmatpush.bf16.msra.mxu0 0
        %1137 = vmatpush.bf16.msra.mxu0 0
        %1138 = vmatpush.bf16.msra.mxu0 0
        %1139 = vmatpush.bf16.msra.mxu0 0
        %1140 = vmatpush.bf16.msra.mxu0 %v1128
        %1141 = vmatmul.bf16.gmra.mxu0 %v1131
        %v1142 = vpop.f32.mrf.mxu0
        %v1143 = vadd.f32 0.0, %v1142
        %v1144 = vpop.f32.mrf.mxu0
        %v1145 = vadd.f32 0.0, %v1144
        %1146 = vdwg.mxu0
        %v1147 = vsel %vm803, %v1123, 0.0
        %1148 = vadd.xlane.f32.xlu0 %v1147
        %v1149 = vpop.xlane.xlu0 %1148
        %v1150 = vsel %vm803, %v1125, 0.0
        %1151 = vadd.xlane.f32.xlu0 %v1150
        %v1152 = vpop.xlane.xlu0 %1151
        %v1153 = vrcp.pop %v1149
        %v1154 = vrcp.pop %v1152
        %v1155 = vmul.f32 %v1143, %v1153
        %v1156 = vmul.f32 %v1145, %v1154
        %v1157 = vpack.c.bf16 %v1156, %v1155
        %s1158 = scalar_lea.vmem [#allocation7], 48
        %v1159 = vld [vmem:[%s1158] sm:$0xf]
        %v1160 = vld [vmem:[%s1158 + $0x4] sm:$0xf]
        %v1161 = vld [vmem:[%s1158 + $0x8] sm:$0xf]
        %v1162 = vld [vmem:[%s1158 + $0xc] sm:$0xf]
        %v1167 = vunpack.c.l.b16 %v1159
        %v1168 = vunpack.c.l.b16 %v1160
        %v1169 = vunpack.c.l.b16 %v1161
        %v1170 = vunpack.c.l.b16 %v1162
        %v1171 = vpack.c.b16 %v1168, %v1167
        %v1172 = vpack.c.b16 %v1170, %v1169
        %v1176 = vsel %vm782, %v1157, 0
        %1178 = vmatpush.bf16.msra.mxu0 0
        %1179 = vmatpush.bf16.msra.mxu0 0
        %1180 = vmatpush.bf16.msra.mxu0 0
        %1181 = vmatpush.bf16.msra.mxu0 0
        %1182 = vmatpush.bf16.msra.mxu0 0
        %1183 = vmatpush.bf16.msra.mxu0 0
        %1184 = vmatpush.bf16.msra.mxu0 %v1172
        %1185 = vmatpush.bf16.msra.mxu0 %v1171
        %1186 = vmatmul.bf16.gmra.mxu0 %v1176
        %v1187 = vpop.f32.mrf.mxu0
        %v1188 = vadd.f32 0.0, %v1187
        %v1189 = vpop.f32.mrf.mxu0
        %v1190 = vadd.f32 0.0, %v1189
        %1191 = vdwg.mxu0
        %v1192 = vadd.f32 %v1088, %v1188
        %v1193 = vadd.f32 %v1089, %v1190
        %v1194 = vadd.f32 %v474, %v1192
        %v1195 = vadd.f32 %v475, %v1193
        %v1196 = vld [vmem:[%s9] sm:$0x1]
        %v1197 = vld [vmem:[%s10] sm:$0x1]
        %1198 = vadd.xlane.f32.xlu0 %v1194
        %v1199 = vpop.xlane.xlu0 %1198
        %1200 = vadd.xlane.f32.xlu0 %v1195
        %v1201 = vpop.xlane.xlu0 %1200
        %v1202 = vmul.f32 %v1199, %v488
        %v1203 = vmul.f32 %v1201, %v488
        %v1204 = vsub.f32 %v1194, %v1202
        %v1205 = vsub.f32 %v1195, %v1203
        %v1206 = vmul.f32 %v1204, %v1204
        %v1207 = vmul.f32 %v1205, %v1205
        %1208 = vadd.xlane.f32.xlu0 %v1206
        %v1209 = vpop.xlane.xlu0 %1208
        %1210 = vadd.xlane.f32.xlu0 %v1207
        %v1211 = vpop.xlane.xlu0 %1210
        %v1212 = vmul.f32 %v1209, 0.007874016
        %v1213 = vmul.f32 %v1211, 0.007874016
        %v1215 = vperm.slane %v1196, 0
        %v1217 = vmul.f32 %v1215, %v1204
        %v1218 = vmul.f32 %v1215, %v1205
        %v1219 = vrsqrt.pop %v1212
        %v1220 = vmul.f32 %v1219, %v1212
        %v1221 = vmul.f32 %v1220, %v1219
        %v1222 = vmul.f32 0.5, %v1221
        %v1223 = vsub.f32 1.5, %v1222
        %v1224 = vmul.f32 %v1219, %v1223
        %v1225 = vmul.f32 %v1212, %v1224
        %vm1226 = vcmp.eq.f32.partialorder %v1212, inf
        %v1227 = vsel %vm1226, %v1212, %v1225
        %vm1228 = vcmp.eq.f32.partialorder %v1212, 0.0
        %v1229 = vand.u32 %v1212, 2147483648
        %v1230 = vsel %vm1228, %v1229, %v1227
        %v1231 = vrsqrt.pop %v1213
        %v1232 = vmul.f32 %v1231, %v1213
        %v1233 = vmul.f32 %v1232, %v1231
        %v1234 = vmul.f32 0.5, %v1233
        %v1235 = vsub.f32 1.5, %v1234
        %v1236 = vmul.f32 %v1231, %v1235
        %v1237 = vmul.f32 %v1213, %v1236
        %vm1238 = vcmp.eq.f32.partialorder %v1213, inf
        %v1239 = vsel %vm1238, %v1213, %v1237
        %vm1240 = vcmp.eq.f32.partialorder %v1213, 0.0
        %v1241 = vand.u32 %v1213, 2147483648
        %v1242 = vsel %vm1240, %v1241, %v1239
        %v1243 = vadd.f32 %v1230, 1e-06
        %v1244 = vadd.f32 %v1242, 1e-06
        %v1245 = vrcp.pop %v1243
        %v1246 = vmul.f32 %v1243, %v1245
        %v1247 = vsub.f32 1.0, %v1246
        %v1248 = vmul.f32 %v1245, %v1247
        %v1249 = vadd.f32 %v1245, %v1248
        %vm1250 = vweird.f32 %v1243
        %vm1251 = vweird.f32 %v1245
        %vm1252 = vmor %vm1250, %vm1251
        %v1253 = vsel %vm1252, %v1245, %v1249
        %v1254 = vand.u32 2147483647, %v1243
        %vm1255 = vcmp.eq.f32.partialorder %v1254, 8.507059e+37
        %v1256 = vand.u32 %v1243, 2147483648
        %v1257 = vor.u32 1.1754944e-38, %v1256
        %v1258 = vsel %vm1255, %v1257, %v1253
        %v1259 = vmul.f32 %v1217, %v1258
        %v1260 = vrcp.pop %v1244
        %v1261 = vmul.f32 %v1244, %v1260
        %v1262 = vsub.f32 1.0, %v1261
        %v1263 = vmul.f32 %v1260, %v1262
        %v1264 = vadd.f32 %v1260, %v1263
        %vm1265 = vweird.f32 %v1244
        %vm1266 = vweird.f32 %v1260
        %vm1267 = vmor %vm1265, %vm1266
        %v1268 = vsel %vm1267, %v1260, %v1264
        %v1269 = vand.u32 2147483647, %v1244
        %vm1270 = vcmp.eq.f32.partialorder %v1269, 8.507059e+37
        %v1271 = vand.u32 %v1244, 2147483648
        %v1272 = vor.u32 1.1754944e-38, %v1271
        %v1273 = vsel %vm1270, %v1272, %v1268
        %v1274 = vmul.f32 %v1218, %v1273
        %v1276 = vperm.slane %v1197, 0
        %v1278 = vadd.f32 %v1259, %v1276
        %v1279 = vadd.f32 %v1274, %v1276
        %v1280 = vpack.c.bf16 %v1279, %v1278
        %v1281 = vld [vmem:[#allocation8] sm:$0xff]
        %v1282 = vld [vmem:[#allocation8 + $0x8] sm:$0xff]
        %v1283 = vld [vmem:[#allocation8 + $0x10] sm:$0xff]
        %v1284 = vld [vmem:[#allocation8 + $0x18] sm:$0xff]
        %v1285 = vld [vmem:[#allocation8 + $0x20] sm:$0xff]
        %v1286 = vld [vmem:[#allocation8 + $0x28] sm:$0xff]
        %v1287 = vld [vmem:[#allocation8 + $0x30] sm:$0xff]
        %v1288 = vld [vmem:[#allocation8 + $0x38] sm:$0xff]
        %v1289 = vld [vmem:[#allocation8 + $0x40] sm:$0xff]
        %v1290 = vld [vmem:[#allocation8 + $0x48] sm:$0xff]
        %v1291 = vld [vmem:[#allocation8 + $0x50] sm:$0xff]
        %v1292 = vld [vmem:[#allocation8 + $0x58] sm:$0xff]
        %v1293 = vld [vmem:[#allocation8 + $0x60] sm:$0xff]
        %v1294 = vld [vmem:[#allocation8 + $0x68] sm:$0xff]
        %v1295 = vld [vmem:[#allocation8 + $0x70] sm:$0xff]
        %v1296 = vld [vmem:[#allocation8 + $0x78] sm:$0xff]
        %v1297 = vld [vmem:[%s4] sm:$0x3]
        %v1299 = vperm.slane %v1297, 0
        %v1300 = vperm.slane %v1297, 1
        %v1319 = vunpack.c.l.b16 %v1281
        %v1320 = vunpack.c.h.b16 %v1281
        %v1321 = vunpack.c.l.b16 %v1282
        %v1322 = vunpack.c.h.b16 %v1282
        %v1323 = vunpack.c.l.b16 %v1283
        %v1324 = vunpack.c.h.b16 %v1283
        %v1325 = vunpack.c.l.b16 %v1284
        %v1326 = vunpack.c.h.b16 %v1284
        %v1327 = vunpack.c.l.b16 %v1285
        %v1328 = vunpack.c.h.b16 %v1285
        %v1329 = vunpack.c.l.b16 %v1286
        %v1330 = vunpack.c.h.b16 %v1286
        %v1331 = vunpack.c.l.b16 %v1287
        %v1332 = vunpack.c.h.b16 %v1287
        %v1333 = vunpack.c.l.b16 %v1288
        %v1334 = vunpack.c.h.b16 %v1288
        %v1335 = vunpack.c.l.b16 %v1289
        %v1336 = vunpack.c.h.b16 %v1289
        %v1337 = vunpack.c.l.b16 %v1290
        %v1338 = vunpack.c.h.b16 %v1290
        %v1339 = vunpack.c.l.b16 %v1291
        %v1340 = vunpack.c.h.b16 %v1291
        %v1341 = vunpack.c.l.b16 %v1292
        %v1342 = vunpack.c.h.b16 %v1292
        %v1343 = vunpack.c.l.b16 %v1293
        %v1344 = vunpack.c.h.b16 %v1293
        %v1345 = vunpack.c.l.b16 %v1294
        %v1346 = vunpack.c.h.b16 %v1294
        %v1347 = vunpack.c.l.b16 %v1295
        %v1348 = vunpack.c.h.b16 %v1295
        %v1349 = vunpack.c.l.b16 %v1296
        %v1350 = vunpack.c.h.b16 %v1296
        %v1351 = vpack.c.b16 %v1321, %v1319
        %v1352 = vpack.c.b16 %v1322, %v1320
        %v1353 = vpack.c.b16 %v1325, %v1323
        %v1354 = vpack.c.b16 %v1326, %v1324
        %v1355 = vpack.c.b16 %v1329, %v1327
        %v1356 = vpack.c.b16 %v1330, %v1328
        %v1357 = vpack.c.b16 %v1333, %v1331
        %v1358 = vpack.c.b16 %v1334, %v1332
        %v1359 = vpack.c.b16 %v1337, %v1335
        %v1360 = vpack.c.b16 %v1338, %v1336
        %v1361 = vpack.c.b16 %v1341, %v1339
        %v1362 = vpack.c.b16 %v1342, %v1340
        %v1363 = vpack.c.b16 %v1345, %v1343
        %v1364 = vpack.c.b16 %v1346, %v1344
        %v1365 = vpack.c.b16 %v1349, %v1347
        %v1366 = vpack.c.b16 %v1350, %v1348
        %1383 = vmatpush.bf16.msra.mxu0 %v1365
        %1384 = vmatpush.bf16.msra.mxu0 %v1363
        %1385 = vmatpush.bf16.msra.mxu0 %v1361
        %1386 = vmatpush.bf16.msra.mxu0 %v1359
        %1387 = vmatpush.bf16.msra.mxu0 %v1357
        %1388 = vmatpush.bf16.msra.mxu0 %v1355
        %1389 = vmatpush.bf16.msra.mxu0 %v1353
        %1390 = vmatpush.bf16.msra.mxu0 %v1351
        %1391 = vmatmul.bf16.gmra.mxu0 %v1280
        %v1392 = vpop.f32.mrf.mxu0
        %v1393 = vadd.f32 %v1299, %v1392
        %v1394 = vpop.f32.mrf.mxu0
        %v1395 = vadd.f32 %v1299, %v1394
        %1396 = vdwg.mxu0
        %1397 = vmatpush.bf16.msra.mxu0 %v1366
        %1398 = vmatpush.bf16.msra.mxu0 %v1364
        %1399 = vmatpush.bf16.msra.mxu0 %v1362
        %1400 = vmatpush.bf16.msra.mxu0 %v1360
        %1401 = vmatpush.bf16.msra.mxu0 %v1358
        %1402 = vmatpush.bf16.msra.mxu0 %v1356
        %1403 = vmatpush.bf16.msra.mxu0 %v1354
        %1404 = vmatpush.bf16.msra.mxu0 %v1352
        %1405 = vmatmul.bf16.gmra.mxu0 %v1280
        %v1406 = vpop.f32.mrf.mxu0
        %v1407 = vadd.f32 %v1300, %v1406
        %v1408 = vpop.f32.mrf.mxu0
        %v1409 = vadd.f32 %v1300, %v1408
        %1410 = vdwg.mxu0
        %v1411 = vmax.f32 %v1393, 0.0
        %v1412 = vmax.f32 %v1407, 0.0
        %v1413 = vmax.f32 %v1395, 0.0
        %v1414 = vmax.f32 %v1409, 0.0
        %v1415 = vpack.c.bf16 %v1413, %v1411
        %v1416 = vpack.c.bf16 %v1414, %v1412
        %v1417 = vld [vmem:[#allocation10] sm:$0xf]
        %v1418 = vld [vmem:[#allocation10 + $0x4] sm:$0xf]
        %v1419 = vld [vmem:[#allocation10 + $0x8] sm:$0xf]
        %v1420 = vld [vmem:[#allocation10 + $0xc] sm:$0xf]
        %v1421 = vld [vmem:[#allocation10 + $0x10] sm:$0xf]
        %v1422 = vld [vmem:[#allocation10 + $0x14] sm:$0xf]
        %v1423 = vld [vmem:[#allocation10 + $0x18] sm:$0xf]
        %v1424 = vld [vmem:[#allocation10 + $0x1c] sm:$0xf]
        %v1425 = vld [vmem:[#allocation10 + $0x20] sm:$0xf]
        %v1426 = vld [vmem:[#allocation10 + $0x24] sm:$0xf]
        %v1427 = vld [vmem:[#allocation10 + $0x28] sm:$0xf]
        %v1428 = vld [vmem:[#allocation10 + $0x2c] sm:$0xf]
        %v1429 = vld [vmem:[#allocation10 + $0x30] sm:$0xf]
        %v1430 = vld [vmem:[#allocation10 + $0x34] sm:$0xf]
        %v1431 = vld [vmem:[#allocation10 + $0x38] sm:$0xf]
        %v1432 = vld [vmem:[#allocation10 + $0x3c] sm:$0xf]
        %v1433 = vld [vmem:[#allocation10 + $0x40] sm:$0xf]
        %v1434 = vld [vmem:[#allocation10 + $0x44] sm:$0xf]
        %v1435 = vld [vmem:[#allocation10 + $0x48] sm:$0xf]
        %v1436 = vld [vmem:[#allocation10 + $0x4c] sm:$0xf]
        %v1437 = vld [vmem:[#allocation10 + $0x50] sm:$0xf]
        %v1438 = vld [vmem:[#allocation10 + $0x54] sm:$0xf]
        %v1439 = vld [vmem:[#allocation10 + $0x58] sm:$0xf]
        %v1440 = vld [vmem:[#allocation10 + $0x5c] sm:$0xf]
        %v1441 = vld [vmem:[#allocation10 + $0x60] sm:$0xf]
        %v1442 = vld [vmem:[#allocation10 + $0x64] sm:$0xf]
        %v1443 = vld [vmem:[#allocation10 + $0x68] sm:$0xf]
        %v1444 = vld [vmem:[#allocation10 + $0x6c] sm:$0xf]
        %v1445 = vld [vmem:[#allocation10 + $0x70] sm:$0xf]
        %v1446 = vld [vmem:[#allocation10 + $0x74] sm:$0xf]
        %v1447 = vld [vmem:[#allocation10 + $0x78] sm:$0xf]
        %v1448 = vld [vmem:[#allocation10 + $0x7c] sm:$0xf]
        %v1449 = vld [vmem:[%s6] sm:$0x1]
        %v1451 = vperm.slane %v1449, 0
        %v1485 = vunpack.c.l.b16 %v1417
        %v1486 = vunpack.c.l.b16 %v1418
        %v1487 = vunpack.c.l.b16 %v1419
        %v1488 = vunpack.c.l.b16 %v1420
        %v1489 = vunpack.c.l.b16 %v1421
        %v1490 = vunpack.c.l.b16 %v1422
        %v1491 = vunpack.c.l.b16 %v1423
        %v1492 = vunpack.c.l.b16 %v1424
        %v1493 = vunpack.c.l.b16 %v1425
        %v1494 = vunpack.c.l.b16 %v1426
        %v1495 = vunpack.c.l.b16 %v1427
        %v1496 = vunpack.c.l.b16 %v1428
        %v1497 = vunpack.c.l.b16 %v1429
        %v1498 = vunpack.c.l.b16 %v1430
        %v1499 = vunpack.c.l.b16 %v1431
        %v1500 = vunpack.c.l.b16 %v1432
        %v1501 = vunpack.c.l.b16 %v1433
        %v1502 = vunpack.c.l.b16 %v1434
        %v1503 = vunpack.c.l.b16 %v1435
        %v1504 = vunpack.c.l.b16 %v1436
        %v1505 = vunpack.c.l.b16 %v1437
        %v1506 = vunpack.c.l.b16 %v1438
        %v1507 = vunpack.c.l.b16 %v1439
        %v1508 = vunpack.c.l.b16 %v1440
        %v1509 = vunpack.c.l.b16 %v1441
        %v1510 = vunpack.c.l.b16 %v1442
        %v1511 = vunpack.c.l.b16 %v1443
        %v1512 = vunpack.c.l.b16 %v1444
        %v1513 = vunpack.c.l.b16 %v1445
        %v1514 = vunpack.c.l.b16 %v1446
        %v1515 = vunpack.c.l.b16 %v1447
        %v1516 = vunpack.c.l.b16 %v1448
        %v1517 = vpack.c.b16 %v1486, %v1485
        %v1518 = vpack.c.b16 %v1488, %v1487
        %v1519 = vpack.c.b16 %v1490, %v1489
        %v1520 = vpack.c.b16 %v1492, %v1491
        %v1521 = vpack.c.b16 %v1494, %v1493
        %v1522 = vpack.c.b16 %v1496, %v1495
        %v1523 = vpack.c.b16 %v1498, %v1497
        %v1524 = vpack.c.b16 %v1500, %v1499
        %v1525 = vpack.c.b16 %v1502, %v1501
        %v1526 = vpack.c.b16 %v1504, %v1503
        %v1527 = vpack.c.b16 %v1506, %v1505
        %v1528 = vpack.c.b16 %v1508, %v1507
        %v1529 = vpack.c.b16 %v1510, %v1509
        %v1530 = vpack.c.b16 %v1512, %v1511
        %v1531 = vpack.c.b16 %v1514, %v1513
        %v1532 = vpack.c.b16 %v1516, %v1515
        %1549 = vmatpush.bf16.msra.mxu0 %v1524
        %1550 = vmatpush.bf16.msra.mxu0 %v1523
        %1551 = vmatpush.bf16.msra.mxu0 %v1522
        %1552 = vmatpush.bf16.msra.mxu0 %v1521
        %1553 = vmatpush.bf16.msra.mxu0 %v1520
        %1554 = vmatpush.bf16.msra.mxu0 %v1519
        %1555 = vmatpush.bf16.msra.mxu0 %v1518
        %1556 = vmatpush.bf16.msra.mxu0 %v1517
        %1557 = vmatmul.bf16.gmra.mxu0 %v1415
        %v1558 = vpop.f32.mrf.mxu0
        %v1559 = vadd.f32 %v1451, %v1558
        %v1560 = vpop.f32.mrf.mxu0
        %v1561 = vadd.f32 %v1451, %v1560
        %1562 = vdwg.mxu0
        %1563 = vmatpush.bf16.msra.mxu0 %v1532
        %1564 = vmatpush.bf16.msra.mxu0 %v1531
        %1565 = vmatpush.bf16.msra.mxu0 %v1530
        %1566 = vmatpush.bf16.msra.mxu0 %v1529
        %1567 = vmatpush.bf16.msra.mxu0 %v1528
        %1568 = vmatpush.bf16.msra.mxu0 %v1527
        %1569 = vmatpush.bf16.msra.mxu0 %v1526
        %1570 = vmatpush.bf16.msra.mxu0 %v1525
        %1571 = vmatmul.bf16.gmra.mxu0 %v1416
        %v1572 = vpop.f32.mrf.mxu0
        %v1573 = vadd.f32 %v1559, %v1572
        %v1574 = vpop.f32.mrf.mxu0
        %v1575 = vadd.f32 %v1561, %v1574
        %1576 = vdwg.mxu0
        %v1577 = vadd.f32 %v1194, %v1573
        %v1578 = vadd.f32 %v1195, %v1575
        %1579 = vst [vmem:[%s472] sm:$0xff] %v1577
        %1580 = vst [vmem:[%s472 + $0x8] sm:$0xff] %v1578
        %s1581 = sand.u32 %s274, 1
        %s1582 = scalar_lea.sflag [#allocation4], %s1581
        %s1583 = sand.u32 %s274, 1
        %s1584 = smul.addr %s1583, 16
        %s1585 = scalar_lea.vmem [#allocation11], %s1584
        // Predicated region
        $region85: #{tpu_custom_call.1} parent=63 // pred_check
          %p1586 = pneg %p284
        $region86: #{tpu_custom_call.1} parent=63 // pred_check_branch
          %1588 = sbr.rel (%p1586) target = $region88
        $region87: #{tpu_custom_call.1} parent=63 // pred_region
          %1590 = vsyncadd %s1582, 0
          %s1591 = smul.addr %s30, 2
          %s1592 = smul.addr %s1591, 8
          %s1593 = scalar_lea.hbm %s11, %s1592
          %s1594 = sshll.u32 %s1585, 4
          %s1595 = int_to_ptr.vmem [resolvable:$true] %s1594
          %s1596 = sshll.u32 %s1593, 4
          %s1597 = int_to_ptr.hbm [resolvable:$true] %s1596
          %1602 = dma.vmem_to_hbm [thread:$0]  %s1595, 256, %s1597, %s1582, 128, 128, 8
        $region88: #{tpu_custom_call.1} parent=63 // pred_fallthru
          _
      $region64: #{tpu_custom_call.1} parent=5 // pred_fallthru
        _
      %p1603 = scmp.le.s32.totalorder 2, %s25
      // Predicated region
      $region89: #{tpu_custom_call.1} parent=5 // pred_check
        %p1604 = pneg %p1603
      $region90: #{tpu_custom_call.1} parent=5 // pred_check_branch
        %1606 = sbr.rel (%p1604) target = $region92
      $region91: #{tpu_custom_call.1} parent=5 // pred_region
        %s1607 = ssub.s32 %s25, 2
        // Predicated region
        $region93: #{tpu_custom_call.1} parent=91 // pred_check
          %p1608 = pneg %p290
        $region94: #{tpu_custom_call.1} parent=91 // pred_check_branch
          %1610 = sbr.rel (%p1608) target = $region96
        $region95: #{tpu_custom_call.1} parent=91 // pred_region
          %s1611 = sand.u32 %s275, 1
          %s1612 = scalar_lea.sflag [#allocation4], %s1611
          %s1613 = sand.u32 %s275, 1
          %s1614 = smul.addr %s1613, 16
          %s1615 = scalar_lea.vmem [#allocation11], %s1614
          %1617 = dma.done %s1612, 256
        $region96: #{tpu_custom_call.1} parent=91 // pred_fallthru
          _
      $region92: #{tpu_custom_call.1} parent=5 // pred_fallthru
        _
    $region6: #{tpu_custom_call.1} parent=1 // loop_footer
      %s29 = sadd.s32 1, %s25
    $region7: #{tpu_custom_call.1} parent=1 // loop_footer_branch
      %24 = sbr.rel target = $region3
    $region8: #{tpu_custom_call.1} parent=1 // loop_exit
      _
    %1618 = vsyncpa [#allocation3], 1
    %s1619 = scalar_lea.sflag [#allocation3], 1
    %1620 = vsyncpa %s1619, 1
    %1621 = vsyncpa [#allocation6], 1
    %1622 = vsyncpa [#allocation9], 1
    %1623 = vsyncpa [#allocation4], 1
    %s1624 = scalar_lea.sflag [#allocation4], 1
    %1625 = vsyncpa %s1624, 1

</llo_original>
